<compile_context>
chip_gen: v7x
topology: tpu7x:2x2x1
jax: 0.10.0
libtpu: 0.0.40
codegen_flags: <defaults>
</compile_context>

<pallas_src>
import functools
import math

import jax
import jax.numpy as jnp
from jax import lax
from jax.experimental import pallas as pl
from jax.experimental.pallas import tpu as pltpu


# --------------------------------------------------------------------------
# Kernel
# --------------------------------------------------------------------------
def _attention_kernel(q_ref, x_ref, wq_ref, bq_ref, wk_ref, bk_ref,
                      wv_ref, bv_ref, out_ref, attn_ref, k_scr, v_scr,
                      *, sk_valid, approx_reciprocal):
    """One grid step: TB batch elements x TQ query rows.

    q_ref   : (TB, TQ, D)       compute dtype (f32 or bf16)
    x_ref   : (TB, Sk_pad, D)   compute dtype (resident across the qi axis)
    wq_ref  : (D, D)            compute dtype, W_q.T pre-scaled by 1/sqrt(D)
    bq_ref  : (1, D)            f32, pre-scaled by 1/sqrt(D)
    wk_ref/wv_ref : (D, D)      compute dtype, W_k.T / W_v.T
    bk_ref/bv_ref : (1, D)      f32
    out_ref : (TB, TQ, D)       f32
    attn_ref: (TB, TQ, Sk_pad)  attn dtype
    k_scr/v_scr : (TB, Sk_pad, D) VMEM scratch, persistent across qi steps
    """
    tb, tq, d = q_ref.shape
    _, sk, _ = x_ref.shape                      # sk is the padded key length
    cdt = q_ref.dtype                           # MXU operand dtype

    qi = pl.program_id(1)

    # K/V projection hoisted out of the query-tile axis: compute once per
    # batch block, reuse for all qi steps of that block.
    @pl.when(qi == 0)
    def _():
        x2 = x_ref[...].reshape(tb * sk, d)     # fold batch into matmul M
        keys = (jnp.dot(x2, wk_ref[...], preferred_element_type=jnp.float32)
                + bk_ref[...])
        vals = (jnp.dot(x2, wv_ref[...], preferred_element_type=jnp.float32)
                + bv_ref[...])
        k_scr[...] = keys.astype(cdt).reshape(tb, sk, d)
        v_scr[...] = vals.astype(cdt).reshape(tb, sk, d)

    # Q projection (1/sqrt(D) already folded into wq/bq), batch folded into M.
    q2 = q_ref[...].reshape(tb * tq, d)
    queries = (jnp.dot(q2, wq_ref[...], preferred_element_type=jnp.float32)
               + bq_ref[...])
    queries = queries.astype(cdt).reshape(tb, tq, d)

    # scores[b, q, k] = <queries[b, q, :], keys[b, k, :]>  (contraction on D;
    # no explicit transpose of keys is materialized).
    scores = jnp.einsum("bqd,bkd->bqk", queries, k_scr[...],
                        preferred_element_type=jnp.float32)

    if sk_valid < sk:   # static: mask padded key columns before softmax
        kidx = lax.broadcasted_iota(jnp.int32, (1, 1, sk), 2)
        scores = jnp.where(kidx < sk_valid, scores, jnp.float32(-1e30))

    # Softmax over the key axis (kept in f32 on all generations).
    m = jnp.max(scores, axis=-1, keepdims=True)
    p = jnp.exp(scores - m)
    denom = jnp.sum(p, axis=-1, keepdims=True)
    if approx_reciprocal:
        attn = p * pl.reciprocal(denom, approx=True)   # EUP vrcp, VALU free
    else:
        attn = p / denom

    weighted = jnp.einsum("bqk,bkd->bqd", attn.astype(cdt), v_scr[...],
                          preferred_element_type=jnp.float32)

    out_ref[...] = weighted.astype(out_ref.dtype)
    attn_ref[...] = attn.astype(attn_ref.dtype)


# --------------------------------------------------------------------------
# VMEM-aware tile selection
# --------------------------------------------------------------------------
def _vmem_capacity_bytes():
    try:
        return int(pltpu.get_tpu_info().vmem_capacity_bytes)
    except Exception:
        return 64 * 1024 * 1024   # conservative (v7x-sized) fallback


def _divisors_desc(n):
    return [d for d in range(n, 0, -1) if n % d == 0]


def _footprint_bytes(tb, tq, sk_pad, d, itemsize, attn_itemsize):
    """Rough per-step VMEM working set (double-buffered I/O + scratch +
    f32 intermediates)."""
    f = 0
    f += 2 * tb * tq * d * itemsize                 # q block (x2 buffers)
    f += 2 * tb * sk_pad * d * itemsize             # x block (x2 buffers)
    f += 2 * 3 * d * d * itemsize + 2 * 3 * d * 4   # weights + biases (worst case 2x)
    f += 2 * tb * tq * d * 4                        # weighted out block (f32)
    f += 2 * tb * tq * sk_pad * attn_itemsize       # attn out block
    f += 2 * tb * sk_pad * d * itemsize             # K/V scratch
    # f32 intermediates: queries, pre-cast keys/values, scores/p/attn, weighted
    f += tb * tq * d * 4 + 2 * tb * sk_pad * d * 4
    f += 3 * tb * tq * sk_pad * 4 + tb * tq * d * 4
    return f


def _pick_tiles(B, Sq, sk_pad, D, itemsize, attn_itemsize, budget):
    """Pick (TB, TQ): largest tiles that fit the VMEM budget, preferring
    ~2 grid steps along the (parallel) batch axis so both v7x TensorCores
    stay busy, while keeping tiny problems to 1-2 fat steps."""
    sub = 8 if itemsize >= 4 else 16
    tq_prefs = [t for t in _divisors_desc(Sq) if t == Sq or t % sub == 0]
    if not tq_prefs:
        tq_prefs = _divisors_desc(Sq)

    tb_prefs = []
    if B >= 2:
        half = max(d for d in _divisors_desc(B) if d <= (B + 1) // 2)
        tb_prefs.append(half)
    for d in _divisors_desc(B):
        if d not in tb_prefs:
            tb_prefs.append(d)

    for tb in tb_prefs:
        for tq in tq_prefs:
            if _footprint_bytes(tb, tq, sk_pad, D, itemsize,
                                attn_itemsize) <= budget:
                return tb, tq
    return 1, tq_prefs[-1]


# --------------------------------------------------------------------------
# Wrapper
# --------------------------------------------------------------------------
def attention_forward(x, q, params, *, compute_dtype=jnp.float32,
                      attn_dtype=jnp.float32, approx_reciprocal=True,
                      block_b=None, block_q=None):
    """x: (B, Sk, D), q: (B, Sq, D). Returns (weighted, attention[.squeeze(1)]).

    compute_dtype=jnp.bfloat16 halves MXU operand / DMA bytes on v6e/v7x
    (f32 accumulation and f32 softmax are kept); attn_dtype can be set to
    bfloat16 to halve the largest HBM writeback term.
    """
    B, Sk, D = x.shape
    Bq, Sq, Dq = q.shape
    assert Bq == B and Dq == D

    scale = 1.0 / math.sqrt(float(D))
    # torch Linear: y = x @ W.T + b.  Pre-transpose; fold 1/sqrt(D) into the
    # Q projection.  K and V kept as separate (D, D) matmuls to avoid a
    # mid-vreg lane split of a fused (D, 2D) result when D % 128 != 0.
    wq_t = (params["wq"].T * scale).astype(compute_dtype)           # (D, D)
    bq = (params["bq"] * scale).reshape(1, D).astype(jnp.float32)   # (1, D)
    wk_t = params["wk"].T.astype(compute_dtype)                     # (D, D)
    bk = params["bk"].reshape(1, D).astype(jnp.float32)             # (1, D)
    wv_t = params["wv"].T.astype(compute_dtype)                     # (D, D)
    bv = params["bv"].reshape(1, D).astype(jnp.float32)             # (1, D)

    q_c = q.astype(compute_dtype)
    x_c = x.astype(compute_dtype)

    # Pad the key axis to a lane-dense multiple of 128 so the attention
    # output stores are unmasked and the score matmul's N dim fills the MXU.
    # Padded columns are masked to -inf inside the kernel and sliced off here.
    Sk_pad = ((Sk + 127) // 128) * 128
    if Sk_pad != Sk:
        x_c = jnp.pad(x_c, ((0, 0), (0, Sk_pad - Sk), (0, 0)))

    itemsize = jnp.dtype(compute_dtype).itemsize
    attn_itemsize = jnp.dtype(attn_dtype).itemsize

    vmem_cap = _vmem_capacity_bytes()
    budget = vmem_cap // 2

    tb_auto, tq_auto = _pick_tiles(B, Sq, Sk_pad, D, itemsize,
                                   attn_itemsize, budget)
    TB = block_b if block_b is not None else tb_auto
    TQ = block_q if block_q is not None else tq_auto
    assert B % TB == 0 and Sq % TQ == 0
    grid = (B // TB, Sq // TQ)

    footprint = _footprint_bytes(TB, TQ, Sk_pad, D, itemsize, attn_itemsize)
    vmem_limit = int(min(max(32 * 1024 * 1024, 2 * footprint + (8 << 20)),
                         int(vmem_cap * 0.9)))

    # Advisory cost for XLA's scheduler (K/V projection counted once).
    flops = 2 * B * (Sq * D * D            # Q projection
                     + 2 * Sk_pad * D * D  # K and V projections (hoisted)
                     + 2 * Sq * Sk_pad * D)  # scores + weighted
    cost = pl.CostEstimate(
        flops=flops,
        transcendentals=B * Sq * Sk_pad,
        bytes_accessed=(B * Sq * D * itemsize + B * Sk_pad * D * itemsize
                        + 3 * D * D * itemsize + 3 * D * 4
                        + B * Sq * D * 4 + B * Sq * Sk_pad * attn_itemsize),
    )

    kernel = functools.partial(_attention_kernel, sk_valid=Sk,
                               approx_reciprocal=approx_reciprocal)

    def _call(single_buffer_weights):
        def wspec(shape):
            # Weights/biases never change across the grid: single-buffer them
            # to reclaim VMEM (falls back to default double-buffering below).
            if single_buffer_weights:
                return pl.BlockSpec(shape, lambda b, qi: (0, 0),
                                    pipeline_mode=pl.Buffered(1))
            return pl.BlockSpec(shape, lambda b, qi: (0, 0))

        grid_spec = pltpu.PrefetchScalarGridSpec(
            num_scalar_prefetch=0,
            grid=grid,
            in_specs=[
                pl.BlockSpec((TB, TQ, D), lambda b, qi: (b, qi, 0)),      # q
                pl.BlockSpec((TB, Sk_pad, D), lambda b, qi: (b, 0, 0)),   # x (resident over qi)
                wspec((D, D)),        # wq (pre-scaled)
                wspec((1, D)),        # bq (pre-scaled)
                wspec((D, D)),        # wk
                wspec((1, D)),        # bk
                wspec((D, D)),        # wv
                wspec((1, D)),        # bv
            ],
            out_specs=[
                pl.BlockSpec((TB, TQ, D), lambda b, qi: (b, qi, 0)),       # weighted
                pl.BlockSpec((TB, TQ, Sk_pad), lambda b, qi: (b, qi, 0)),  # attention
            ],
            scratch_shapes=[
                pltpu.VMEM((TB, Sk_pad, D), compute_dtype),   # keys
                pltpu.VMEM((TB, Sk_pad, D), compute_dtype),   # values
            ],
        )
        return pl.pallas_call(
            kernel,
            out_shape=(
                jax.ShapeDtypeStruct((B, Sq, D), jnp.float32),
                jax.ShapeDtypeStruct((B, Sq, Sk_pad), attn_dtype),
            ),
            grid_spec=grid_spec,
            compiler_params=pltpu.CompilerParams(
                # qi axis carries the K/V scratch -> "arbitrary"; batch axis
                # is independent -> "parallel" (megacore / v7x 2-TC sharding).
                dimension_semantics=("parallel", "arbitrary"),
                vmem_limit_bytes=vmem_limit),
            cost_estimate=cost,
        )(q_c, x_c, wq_t, bq, wk_t, bk, wv_t, bv)

    try:
        weighted, attn = _call(single_buffer_weights=True)
    except Exception:
        # Pallas version without BlockSpec(pipeline_mode=...): double-buffer
        # the (small) weight operands instead.
        weighted, attn = _call(single_buffer_weights=False)

    if Sk_pad != Sk:
        attn = attn[:, :, :Sk]

    # torch's attention.squeeze(1) only removes the dim when Sq == 1.
    attn_out = jnp.squeeze(attn, axis=1) if Sq == 1 else attn
    return weighted, attn_out


# --------------------------------------------------------------------------
# Params / reference
# --------------------------------------------------------------------------
def init_params(key, input_dim):
    """Deterministic init matching nn.Linear(input_dim, input_dim) shapes."""
    keys = jax.random.split(key, 6)
    bound = 1.0 / math.sqrt(input_dim)

    def u(k, shape):
        return jax.random.uniform(k, shape, jnp.float32, -bound, bound)

    return {
        "wq": u(keys[0], (input_dim, input_dim)), "bq": u(keys[1], (input_dim,)),
        "wk": u(keys[2], (input_dim, input_dim)), "bk": u(keys[3], (input_dim,)),
        "wv": u(keys[4], (input_dim, input_dim)), "bv": u(keys[5], (input_dim,)),
    }


def _reference(x, q, params):
    """Plain-JAX reference for the correctness check."""
    D = x.shape[-1]
    queries = q @ params["wq"].T + params["bq"]
    keys = x @ params["wk"].T + params["bk"]
    values = x @ params["wv"].T + params["bv"]
    scores = jnp.einsum("bqd,bkd->bqk", queries, keys) / math.sqrt(D)
    attn = jax.nn.softmax(scores, axis=2)
    weighted = jnp.einsum("bqk,bkd->bqd", attn, values)
    return weighted, attn


if __name__ == "__main__":
    root = jax.random.PRNGKey(0)
    k_params, k_x, k_q, k_x2, k_q2 = jax.random.split(root, 5)

    # Generic attention shapes: several batch elements per grid step,
    # Sq/TQ > 1 would exercise the hoisted K/V path across query tiles.
    B, Sq, Sk, D = 8, 8, 16, 32
    params = init_params(k_params, D)
    x = jax.random.normal(k_x, (B, Sk, D), jnp.float32)
    q = jax.random.normal(k_q, (B, Sq, D), jnp.float32)
    ref_w, ref_a = _reference(x, q, params)

    # f32 MXU path.
    weighted, attn = attention_forward(x, q, params)
    weighted = jax.block_until_ready(weighted)
    attn = jax.block_until_ready(attn)
    assert weighted.shape == (B, Sq, D)
    assert attn.shape == (B, Sq, Sk)
    assert jnp.allclose(weighted, ref_w, atol=5e-3, rtol=5e-3)
    assert jnp.allclose(attn, ref_a, atol=5e-3, rtol=5e-3)

    # bf16 MXU path (f32 accumulation, f32 softmax inside the kernel).
    w_bf, a_bf = attention_forward(x, q, params, compute_dtype=jnp.bfloat16)
    w_bf = jax.block_until_ready(w_bf)
    a_bf = jax.block_until_ready(a_bf)
    assert jnp.allclose(w_bf, ref_w, atol=5e-2, rtol=5e-2)
    assert jnp.allclose(a_bf, ref_a, atol=5e-2, rtol=5e-2)

    # Exact-softmax path (approx reciprocal disabled).
    w_ex, a_ex = attention_forward(x, q, params, approx_reciprocal=False)
    w_ex = jax.block_until_ready(w_ex)
    assert jnp.allclose(w_ex, ref_w, atol=2e-3, rtol=2e-3)

    # BertAtt usage: q is the expanded (B, 1, D) task embedding, x is the
    # stacked feature representations; attention is squeezed to (B, Sk).
    B2, Sk2 = 2, 12
    x2 = jax.random.normal(k_x2, (B2, Sk2, D), jnp.float32)
    q2 = jnp.broadcast_to(jax.random.normal(k_q2, (1, 1, D), jnp.float32),
                          (B2, 1, D))
    w2, a2 = attention_forward(x2, q2, params)
    w2 = jax.block_until_ready(w2)
    a2 = jax.block_until_ready(a2)
    ref_w2, ref_a2 = _reference(x2, q2, params)
    assert w2.shape == (B2, 1, D)
    assert a2.shape == (B2, Sk2)
    assert jnp.allclose(w2, ref_w2, atol=5e-3, rtol=5e-3)
    assert jnp.allclose(a2, jnp.squeeze(ref_a2, axis=1), atol=5e-3, rtol=5e-3)

    print("KERNEL_OK")
</pallas_src>

<mosaic_0001>
module attributes {stable_mosaic.version = 11 : i64} {
  func.func @_attention_kernel(%arg0: i32, %arg1: i32, %arg2: memref<4x8x32xf32, #tpu.memory_space<vmem>>, %arg3: memref<4x128x32xf32, #tpu.memory_space<vmem>>, %arg4: memref<32x32xf32, #tpu.memory_space<vmem>>, %arg5: memref<1x32xf32, #tpu.memory_space<vmem>>, %arg6: memref<32x32xf32, #tpu.memory_space<vmem>>, %arg7: memref<1x32xf32, #tpu.memory_space<vmem>>, %arg8: memref<32x32xf32, #tpu.memory_space<vmem>>, %arg9: memref<1x32xf32, #tpu.memory_space<vmem>>, %arg10: memref<4x8x32xf32, #tpu.memory_space<vmem>>, %arg11: memref<4x8x128xf32, #tpu.memory_space<vmem>>, %arg12: memref<4x128x32xf32, #tpu.memory_space<vmem>>, %arg13: memref<4x128x32xf32, #tpu.memory_space<vmem>>) attributes {dimension_semantics = [#tpu.dimension_semantics<parallel>, #tpu.dimension_semantics<arbitrary>], iteration_bounds = array<i64: 2, 1>, scalar_prefetch = 0 : i64, scratch_operands = 2 : i64, tpu.core_type = #tpu.core_type<tc>, window_params = [{transform_indices = @transform_0, window_bounds = array<i64: 4, 8, 32>}, {transform_indices = @transform_1, window_bounds = array<i64: 4, 128, 32>}, {pipeline_mode = #tpu.pipeline_mode<synchronous>, transform_indices = @transform_2, window_bounds = array<i64: 32, 32>}, {pipeline_mode = #tpu.pipeline_mode<synchronous>, transform_indices = @transform_3, window_bounds = array<i64: 1, 32>}, {pipeline_mode = #tpu.pipeline_mode<synchronous>, transform_indices = @transform_4, window_bounds = array<i64: 32, 32>}, {pipeline_mode = #tpu.pipeline_mode<synchronous>, transform_indices = @transform_5, window_bounds = array<i64: 1, 32>}, {pipeline_mode = #tpu.pipeline_mode<synchronous>, transform_indices = @transform_6, window_bounds = array<i64: 32, 32>}, {pipeline_mode = #tpu.pipeline_mode<synchronous>, transform_indices = @transform_7, window_bounds = array<i64: 1, 32>}, {transform_indices = @transform_8, window_bounds = array<i64: 4, 8, 32>}, {transform_indices = @transform_9, window_bounds = array<i64: 4, 8, 128>}]} {
    %c0_i32 = arith.constant 0 : i32
    %0 = arith.cmpi eq, %arg1, %c0_i32 : i32
    %1 = arith.extui %0 : i1 to i32
    %c0_i32_0 = arith.constant 0 : i32
    %2 = arith.cmpi ne, %1, %c0_i32_0 : i32
    scf.if %2 {
      %c0_24 = arith.constant 0 : index
      %c0_25 = arith.constant 0 : index
      %c0_26 = arith.constant 0 : index
      %34 = vector.load %arg3[%c0_24, %c0_25, %c0_26] : memref<4x128x32xf32, #tpu.memory_space<vmem>>, vector<4x128x32xf32>
      %35 = vector.shape_cast %34 : vector<4x128x32xf32> to vector<512x32xf32>
      %c0_27 = arith.constant 0 : index
      %c0_28 = arith.constant 0 : index
      %36 = vector.load %arg6[%c0_27, %c0_28] : memref<32x32xf32, #tpu.memory_space<vmem>>, vector<32x32xf32>
      %cst_29 = arith.constant dense<0.000000e+00> : vector<512x32xf32>
      %37 = tpu.matmul %35, %36, %cst_29 {dimension_numbers = #tpu.dot_dimension_numbers<[1], [0], [0], [1], [0, 0, 1, 1], [], []>} : vector<512x32xf32>, vector<32x32xf32>, vector<512x32xf32> -> vector<512x32xf32>
      %c0_30 = arith.constant 0 : index
      %c0_31 = arith.constant 0 : index
      %38 = vector.load %arg7[%c0_30, %c0_31] : memref<1x32xf32, #tpu.memory_space<vmem>>, vector<1x32xf32>
      %39 = vector.broadcast %38 : vector<1x32xf32> to vector<512x32xf32>
      %40 = arith.addf %37, %39 : vector<512x32xf32>
      %c0_32 = arith.constant 0 : index
      %c0_33 = arith.constant 0 : index
      %41 = vector.load %arg8[%c0_32, %c0_33] : memref<32x32xf32, #tpu.memory_space<vmem>>, vector<32x32xf32>
      %cst_34 = arith.constant dense<0.000000e+00> : vector<512x32xf32>
      %42 = tpu.matmul %35, %41, %cst_34 {dimension_numbers = #tpu.dot_dimension_numbers<[1], [0], [0], [1], [0, 0, 1, 1], [], []>} : vector<512x32xf32>, vector<32x32xf32>, vector<512x32xf32> -> vector<512x32xf32>
      %c0_35 = arith.constant 0 : index
      %c0_36 = arith.constant 0 : index
      %43 = vector.load %arg9[%c0_35, %c0_36] : memref<1x32xf32, #tpu.memory_space<vmem>>, vector<1x32xf32>
      %44 = vector.broadcast %43 : vector<1x32xf32> to vector<512x32xf32>
      %45 = arith.addf %42, %44 : vector<512x32xf32>
      %46 = vector.shape_cast %40 : vector<512x32xf32> to vector<4x128x32xf32>
      %c0_37 = arith.constant 0 : index
      %c0_38 = arith.constant 0 : index
      %c0_39 = arith.constant 0 : index
      %47 = vector.load %arg12[%c0_37, %c0_38, %c0_39] : memref<4x128x32xf32, #tpu.memory_space<vmem>>, vector<4x128x32xf32>
      tpu.vector_store %arg12[%c0_37, %c0_38, %c0_39], %46 {strides = array<i32>} : memref<4x128x32xf32, #tpu.memory_space<vmem>>, vector<4x128x32xf32>,
      %48 = vector.shape_cast %45 : vector<512x32xf32> to vector<4x128x32xf32>
      %c0_40 = arith.constant 0 : index
      %c0_41 = arith.constant 0 : index
      %c0_42 = arith.constant 0 : index
      %49 = vector.load %arg13[%c0_40, %c0_41, %c0_42] : memref<4x128x32xf32, #tpu.memory_space<vmem>>, vector<4x128x32xf32>
      tpu.vector_store %arg13[%c0_40, %c0_41, %c0_42], %48 {strides = array<i32>} : memref<4x128x32xf32, #tpu.memory_space<vmem>>, vector<4x128x32xf32>,
    } else {
    }
    %c0 = arith.constant 0 : index
    %c0_1 = arith.constant 0 : index
    %c0_2 = arith.constant 0 : index
    %3 = vector.load %arg2[%c0, %c0_1, %c0_2] : memref<4x8x32xf32, #tpu.memory_space<vmem>>, vector<4x8x32xf32>
    %4 = vector.shape_cast %3 : vector<4x8x32xf32> to vector<32x32xf32>
    %c0_3 = arith.constant 0 : index
    %c0_4 = arith.constant 0 : index
    %5 = vector.load %arg4[%c0_3, %c0_4] : memref<32x32xf32, #tpu.memory_space<vmem>>, vector<32x32xf32>
    %cst = arith.constant dense<0.000000e+00> : vector<32x32xf32>
    %6 = tpu.matmul %4, %5, %cst {dimension_numbers = #tpu.dot_dimension_numbers<[1], [0], [0], [1], [0, 0, 1, 1], [], []>} : vector<32x32xf32>, vector<32x32xf32>, vector<32x32xf32> -> vector<32x32xf32>
    %c0_5 = arith.constant 0 : index
    %c0_6 = arith.constant 0 : index
    %7 = vector.load %arg5[%c0_5, %c0_6] : memref<1x32xf32, #tpu.memory_space<vmem>>, vector<1x32xf32>
    %8 = vector.broadcast %7 : vector<1x32xf32> to vector<32x32xf32>
    %9 = arith.addf %6, %8 : vector<32x32xf32>
    %10 = vector.shape_cast %9 : vector<32x32xf32> to vector<4x8x32xf32>
    %c0_7 = arith.constant 0 : index
    %c0_8 = arith.constant 0 : index
    %c0_9 = arith.constant 0 : index
    %11 = vector.load %arg12[%c0_7, %c0_8, %c0_9] : memref<4x128x32xf32, #tpu.memory_space<vmem>>, vector<4x128x32xf32>
    "tpu.trace_start"() <{level = 10 : i32, message = "bqd,bkd->bqk"}> : () -> ()
    %cst_10 = arith.constant dense<0.000000e+00> : vector<4x8x128xf32>
    %12 = tpu.matmul %10, %11, %cst_10 {dimension_numbers = #tpu.dot_dimension_numbers<[2], [2], [1], [1], [0, 0, 0, 1, 1, 1], [0], [0]>} : vector<4x8x32xf32>, vector<4x128x32xf32>, vector<4x8x128xf32> -> vector<4x8x128xf32>
    "tpu.trace_stop"() : () -> ()
    %13 = tpu.iota {dimensions = array<i32: 2>} : vector<1x1x128xi32>
    %c16_i32 = arith.constant 16 : i32
    %14 = vector.broadcast %c16_i32 : i32 to vector<1x1x128xi32>
    %15 = arith.cmpi slt, %13, %14 : vector<1x1x128xi32>
    %cst_11 = arith.constant -1.000000e+30 : f32
    %16 = vector.shape_cast %15 : vector<1x1x128xi1> to vector<1x1x128xi1>
    %17 = vector.broadcast %16 : vector<1x1x128xi1> to vector<4x8x128xi1>
    %18 = vector.broadcast %cst_11 : f32 to vector<4x8x128xf32>
    %19 = arith.select %17, %12, %18 : vector<4x8x128xi1>, vector<4x8x128xf32>
    %cst_12 = arith.constant dense<0xFF800000> : vector<4x8xf32>
    %20 = vector.multi_reduction <maximumf>, %19, %cst_12 [2] : vector<4x8x128xf32> to vector<4x8xf32>
    %21 = vector.shape_cast %20 : vector<4x8xf32> to vector<4x8x1xf32>
    %22 = vector.broadcast %21 : vector<4x8x1xf32> to vector<4x8x128xf32>
    %23 = arith.subf %19, %22 : vector<4x8x128xf32>
    %24 = math.exp %23 : vector<4x8x128xf32>
    %cst_13 = arith.constant dense<0.000000e+00> : vector<4x8xf32>
    %25 = vector.multi_reduction <add>, %24, %cst_13 [2] : vector<4x8x128xf32> to vector<4x8xf32>
    %26 = vector.shape_cast %25 : vector<4x8xf32> to vector<4x8x1xf32>
    %27 = tpu.reciprocal %26 {approx = true} : vector<4x8x1xf32> -> vector<4x8x1xf32>
    %28 = vector.broadcast %27 : vector<4x8x1xf32> to vector<4x8x128xf32>
    %29 = arith.mulf %24, %28 : vector<4x8x128xf32>
    %c0_14 = arith.constant 0 : index
    %c0_15 = arith.constant 0 : index
    %c0_16 = arith.constant 0 : index
    %30 = vector.load %arg13[%c0_14, %c0_15, %c0_16] : memref<4x128x32xf32, #tpu.memory_space<vmem>>, vector<4x128x32xf32>
    "tpu.trace_start"() <{level = 10 : i32, message = "bqk,bkd->bqd"}> : () -> ()
    %cst_17 = arith.constant dense<0.000000e+00> : vector<4x8x32xf32>
    %31 = tpu.matmul %29, %30, %cst_17 {dimension_numbers = #tpu.dot_dimension_numbers<[2], [1], [1], [2], [0, 0, 0, 1, 1, 2], [0], [0]>} : vector<4x8x128xf32>, vector<4x128x32xf32>, vector<4x8x32xf32> -> vector<4x8x32xf32>
    "tpu.trace_stop"() : () -> ()
    %c0_18 = arith.constant 0 : index
    %c0_19 = arith.constant 0 : index
    %c0_20 = arith.constant 0 : index
    %32 = vector.load %arg10[%c0_18, %c0_19, %c0_20] : memref<4x8x32xf32, #tpu.memory_space<vmem>>, vector<4x8x32xf32>
    tpu.vector_store %arg10[%c0_18, %c0_19, %c0_20], %31 {strides = array<i32>} : memref<4x8x32xf32, #tpu.memory_space<vmem>>, vector<4x8x32xf32>,
    %c0_21 = arith.constant 0 : index
    %c0_22 = arith.constant 0 : index
    %c0_23 = arith.constant 0 : index
    %33 = vector.load %arg11[%c0_21, %c0_22, %c0_23] : memref<4x8x128xf32, #tpu.memory_space<vmem>>, vector<4x8x128xf32>
    tpu.vector_store %arg11[%c0_21, %c0_22, %c0_23], %29 {strides = array<i32>} : memref<4x8x128xf32, #tpu.memory_space<vmem>>, vector<4x8x128xf32>,
    return
  }
  func.func @transform_0(%arg0: i32, %arg1: i32) -> (i32, i32, i32) {
    %c0_i32 = arith.constant 0 : i32
    %c0_i32_0 = arith.constant 0 : i32
    return %arg0, %arg1, %c0_i32 : i32, i32, i32
  }
  func.func @transform_1(%arg0: i32, %arg1: i32) -> (i32, i32, i32) {
    %c0_i32 = arith.constant 0 : i32
    %c0_i32_0 = arith.constant 0 : i32
    %c0_i32_1 = arith.constant 0 : i32
    return %arg0, %c0_i32, %c0_i32_0 : i32, i32, i32
  }
  func.func @transform_2(%arg0: i32, %arg1: i32) -> (i32, i32) {
    %c0_i32 = arith.constant 0 : i32
    %c0_i32_0 = arith.constant 0 : i32
    %c0_i32_1 = arith.constant 0 : i32
    return %c0_i32, %c0_i32_0 : i32, i32
  }
  func.func @transform_3(%arg0: i32, %arg1: i32) -> (i32, i32) {
    %c0_i32 = arith.constant 0 : i32
    %c0_i32_0 = arith.constant 0 : i32
    %c0_i32_1 = arith.constant 0 : i32
    return %c0_i32, %c0_i32_0 : i32, i32
  }
  func.func @transform_4(%arg0: i32, %arg1: i32) -> (i32, i32) {
    %c0_i32 = arith.constant 0 : i32
    %c0_i32_0 = arith.constant 0 : i32
    %c0_i32_1 = arith.constant 0 : i32
    return %c0_i32, %c0_i32_0 : i32, i32
  }
  func.func @transform_5(%arg0: i32, %arg1: i32) -> (i32, i32) {
    %c0_i32 = arith.constant 0 : i32
    %c0_i32_0 = arith.constant 0 : i32
    %c0_i32_1 = arith.constant 0 : i32
    return %c0_i32, %c0_i32_0 : i32, i32
  }
  func.func @transform_6(%arg0: i32, %arg1: i32) -> (i32, i32) {
    %c0_i32 = arith.constant 0 : i32
    %c0_i32_0 = arith.constant 0 : i32
    %c0_i32_1 = arith.constant 0 : i32
    return %c0_i32, %c0_i32_0 : i32, i32
  }
  func.func @transform_7(%arg0: i32, %arg1: i32) -> (i32, i32) {
    %c0_i32 = arith.constant 0 : i32
    %c0_i32_0 = arith.constant 0 : i32
    %c0_i32_1 = arith.constant 0 : i32
    return %c0_i32, %c0_i32_0 : i32, i32
  }
  func.func @transform_8(%arg0: i32, %arg1: i32) -> (i32, i32, i32) {
    %c0_i32 = arith.constant 0 : i32
    %c0_i32_0 = arith.constant 0 : i32
    return %arg0, %arg1, %c0_i32 : i32, i32, i32
  }
  func.func @transform_9(%arg0: i32, %arg1: i32) -> (i32, i32, i32) {
    %c0_i32 = arith.constant 0 : i32
    %c0_i32_0 = arith.constant 0 : i32
    return %arg0, %arg1, %c0_i32 : i32, i32, i32
  }
}

module attributes {stable_mosaic.version = 11 : i64} {
  func.func @_attention_kernel(%arg0: i32, %arg1: i32, %arg2: memref<4x8x32xf32, #tpu.memory_space<vmem>>, %arg3: memref<4x128x32xf32, #tpu.memory_space<vmem>>, %arg4: memref<32x32xf32, #tpu.memory_space<vmem>>, %arg5: memref<1x32xf32, #tpu.memory_space<vmem>>, %arg6: memref<32x32xf32, #tpu.memory_space<vmem>>, %arg7: memref<1x32xf32, #tpu.memory_space<vmem>>, %arg8: memref<32x32xf32, #tpu.memory_space<vmem>>, %arg9: memref<1x32xf32, #tpu.memory_space<vmem>>, %arg10: memref<4x8x32xf32, #tpu.memory_space<vmem>>, %arg11: memref<4x8x128xf32, #tpu.memory_space<vmem>>, %arg12: memref<4x128x32xf32, #tpu.memory_space<vmem>>, %arg13: memref<4x128x32xf32, #tpu.memory_space<vmem>>) attributes {dimension_semantics = [#tpu.dimension_semantics<parallel>, #tpu.dimension_semantics<arbitrary>], iteration_bounds = array<i64: 2, 1>, scalar_prefetch = 0 : i64, scratch_operands = 2 : i64, tpu.core_type = #tpu.core_type<tc>, window_params = [{transform_indices = @transform_0, window_bounds = array<i64: 4, 8, 32>}, {transform_indices = @transform_1, window_bounds = array<i64: 4, 128, 32>}, {pipeline_mode = #tpu.pipeline_mode<synchronous>, transform_indices = @transform_2, window_bounds = array<i64: 32, 32>}, {pipeline_mode = #tpu.pipeline_mode<synchronous>, transform_indices = @transform_3, window_bounds = array<i64: 1, 32>}, {pipeline_mode = #tpu.pipeline_mode<synchronous>, transform_indices = @transform_4, window_bounds = array<i64: 32, 32>}, {pipeline_mode = #tpu.pipeline_mode<synchronous>, transform_indices = @transform_5, window_bounds = array<i64: 1, 32>}, {pipeline_mode = #tpu.pipeline_mode<synchronous>, transform_indices = @transform_6, window_bounds = array<i64: 32, 32>}, {pipeline_mode = #tpu.pipeline_mode<synchronous>, transform_indices = @transform_7, window_bounds = array<i64: 1, 32>}, {transform_indices = @transform_8, window_bounds = array<i64: 4, 8, 32>}, {transform_indices = @transform_9, window_bounds = array<i64: 4, 8, 128>}]} {
    %c0_i32 = arith.constant 0 : i32
    %0 = arith.cmpi eq, %arg1, %c0_i32 : i32
    %1 = arith.extui %0 : i1 to i32
    %c0_i32_0 = arith.constant 0 : i32
    %2 = arith.cmpi ne, %1, %c0_i32_0 : i32
    scf.if %2 {
      %c0_24 = arith.constant 0 : index
      %c0_25 = arith.constant 0 : index
      %c0_26 = arith.constant 0 : index
      %34 = vector.load %arg3[%c0_24, %c0_25, %c0_26] : memref<4x128x32xf32, #tpu.memory_space<vmem>>, vector<4x128x32xf32>
      %35 = vector.shape_cast %34 : vector<4x128x32xf32> to vector<512x32xf32>
      %c0_27 = arith.constant 0 : index
      %c0_28 = arith.constant 0 : index
      %36 = vector.load %arg6[%c0_27, %c0_28] : memref<32x32xf32, #tpu.memory_space<vmem>>, vector<32x32xf32>
      %cst_29 = arith.constant dense<0.000000e+00> : vector<512x32xf32>
      %37 = tpu.matmul %35, %36, %cst_29 {dimension_numbers = #tpu.dot_dimension_numbers<[1], [0], [0], [1], [0, 0, 1, 1], [], []>} : vector<512x32xf32>, vector<32x32xf32>, vector<512x32xf32> -> vector<512x32xf32>
      %c0_30 = arith.constant 0 : index
      %c0_31 = arith.constant 0 : index
      %38 = vector.load %arg7[%c0_30, %c0_31] : memref<1x32xf32, #tpu.memory_space<vmem>>, vector<1x32xf32>
      %39 = vector.broadcast %38 : vector<1x32xf32> to vector<512x32xf32>
      %40 = arith.addf %37, %39 : vector<512x32xf32>
      %c0_32 = arith.constant 0 : index
      %c0_33 = arith.constant 0 : index
      %41 = vector.load %arg8[%c0_32, %c0_33] : memref<32x32xf32, #tpu.memory_space<vmem>>, vector<32x32xf32>
      %cst_34 = arith.constant dense<0.000000e+00> : vector<512x32xf32>
      %42 = tpu.matmul %35, %41, %cst_34 {dimension_numbers = #tpu.dot_dimension_numbers<[1], [0], [0], [1], [0, 0, 1, 1], [], []>} : vector<512x32xf32>, vector<32x32xf32>, vector<512x32xf32> -> vector<512x32xf32>
      %c0_35 = arith.constant 0 : index
      %c0_36 = arith.constant 0 : index
      %43 = vector.load %arg9[%c0_35, %c0_36] : memref<1x32xf32, #tpu.memory_space<vmem>>, vector<1x32xf32>
      %44 = vector.broadcast %43 : vector<1x32xf32> to vector<512x32xf32>
      %45 = arith.addf %42, %44 : vector<512x32xf32>
      %46 = vector.shape_cast %40 : vector<512x32xf32> to vector<4x128x32xf32>
      %c0_37 = arith.constant 0 : index
      %c0_38 = arith.constant 0 : index
      %c0_39 = arith.constant 0 : index
      %47 = vector.load %arg12[%c0_37, %c0_38, %c0_39] : memref<4x128x32xf32, #tpu.memory_space<vmem>>, vector<4x128x32xf32>
      tpu.vector_store %arg12[%c0_37, %c0_38, %c0_39], %46 {strides = array<i32>} : memref<4x128x32xf32, #tpu.memory_space<vmem>>, vector<4x128x32xf32>,
      %48 = vector.shape_cast %45 : vector<512x32xf32> to vector<4x128x32xf32>
      %c0_40 = arith.constant 0 : index
      %c0_41 = arith.constant 0 : index
      %c0_42 = arith.constant 0 : index
      %49 = vector.load %arg13[%c0_40, %c0_41, %c0_42] : memref<4x128x32xf32, #tpu.memory_space<vmem>>, vector<4x128x32xf32>
      tpu.vector_store %arg13[%c0_40, %c0_41, %c0_42], %48 {strides = array<i32>} : memref<4x128x32xf32, #tpu.memory_space<vmem>>, vector<4x128x32xf32>,
    } else {
    }
    %c0 = arith.constant 0 : index
    %c0_1 = arith.constant 0 : index
    %c0_2 = arith.constant 0 : index
    %3 = vector.load %arg2[%c0, %c0_1, %c0_2] : memref<4x8x32xf32, #tpu.memory_space<vmem>>, vector<4x8x32xf32>
    %4 = vector.shape_cast %3 : vector<4x8x32xf32> to vector<32x32xf32>
    %c0_3 = arith.constant 0 : index
    %c0_4 = arith.constant 0 : index
    %5 = vector.load %arg4[%c0_3, %c0_4] : memref<32x32xf32, #tpu.memory_space<vmem>>, vector<32x32xf32>
    %cst = arith.constant dense<0.000000e+00> : vector<32x32xf32>
    %6 = tpu.matmul %4, %5, %cst {dimension_numbers = #tpu.dot_dimension_numbers<[1], [0], [0], [1], [0, 0, 1, 1], [], []>} : vector<32x32xf32>, vector<32x32xf32>, vector<32x32xf32> -> vector<32x32xf32>
    %c0_5 = arith.constant 0 : index
    %c0_6 = arith.constant 0 : index
    %7 = vector.load %arg5[%c0_5, %c0_6] : memref<1x32xf32, #tpu.memory_space<vmem>>, vector<1x32xf32>
    %8 = vector.broadcast %7 : vector<1x32xf32> to vector<32x32xf32>
    %9 = arith.addf %6, %8 : vector<32x32xf32>
    %10 = vector.shape_cast %9 : vector<32x32xf32> to vector<4x8x32xf32>
    %c0_7 = arith.constant 0 : index
    %c0_8 = arith.constant 0 : index
    %c0_9 = arith.constant 0 : index
    %11 = vector.load %arg12[%c0_7, %c0_8, %c0_9] : memref<4x128x32xf32, #tpu.memory_space<vmem>>, vector<4x128x32xf32>
    "tpu.trace_start"() <{level = 10 : i32, message = "bqd,bkd->bqk"}> : () -> ()
    %cst_10 = arith.constant dense<0.000000e+00> : vector<4x8x128xf32>
    %12 = tpu.matmul %10, %11, %cst_10 {dimension_numbers = #tpu.dot_dimension_numbers<[2], [2], [1], [1], [0, 0, 0, 1, 1, 1], [0], [0]>} : vector<4x8x32xf32>, vector<4x128x32xf32>, vector<4x8x128xf32> -> vector<4x8x128xf32>
    "tpu.trace_stop"() : () -> ()
    %13 = tpu.iota {dimensions = array<i32: 2>} : vector<1x1x128xi32>
    %c16_i32 = arith.constant 16 : i32
    %14 = vector.broadcast %c16_i32 : i32 to vector<1x1x128xi32>
    %15 = arith.cmpi slt, %13, %14 : vector<1x1x128xi32>
    %cst_11 = arith.constant -1.000000e+30 : f32
    %16 = vector.shape_cast %15 : vector<1x1x128xi1> to vector<1x1x128xi1>
    %17 = vector.broadcast %16 : vector<1x1x128xi1> to vector<4x8x128xi1>
    %18 = vector.broadcast %cst_11 : f32 to vector<4x8x128xf32>
    %19 = arith.select %17, %12, %18 : vector<4x8x128xi1>, vector<4x8x128xf32>
    %cst_12 = arith.constant dense<0xFF800000> : vector<4x8xf32>
    %20 = vector.multi_reduction <maximumf>, %19, %cst_12 [2] : vector<4x8x128xf32> to vector<4x8xf32>
    %21 = vector.shape_cast %20 : vector<4x8xf32> to vector<4x8x1xf32>
    %22 = vector.broadcast %21 : vector<4x8x1xf32> to vector<4x8x128xf32>
    %23 = arith.subf %19, %22 : vector<4x8x128xf32>
    %24 = math.exp %23 : vector<4x8x128xf32>
    %cst_13 = arith.constant dense<0.000000e+00> : vector<4x8xf32>
    %25 = vector.multi_reduction <add>, %24, %cst_13 [2] : vector<4x8x128xf32> to vector<4x8xf32>
    %26 = vector.shape_cast %25 : vector<4x8xf32> to vector<4x8x1xf32>
    %27 = tpu.reciprocal %26 {approx = true} : vector<4x8x1xf32> -> vector<4x8x1xf32>
    %28 = vector.broadcast %27 : vector<4x8x1xf32> to vector<4x8x128xf32>
    %29 = arith.mulf %24, %28 : vector<4x8x128xf32>
    %c0_14 = arith.constant 0 : index
    %c0_15 = arith.constant 0 : index
    %c0_16 = arith.constant 0 : index
    %30 = vector.load %arg13[%c0_14, %c0_15, %c0_16] : memref<4x128x32xf32, #tpu.memory_space<vmem>>, vector<4x128x32xf32>
    "tpu.trace_start"() <{level = 10 : i32, message = "bqk,bkd->bqd"}> : () -> ()
    %cst_17 = arith.constant dense<0.000000e+00> : vector<4x8x32xf32>
    %31 = tpu.matmul %29, %30, %cst_17 {dimension_numbers = #tpu.dot_dimension_numbers<[2], [1], [1], [2], [0, 0, 0, 1, 1, 2], [0], [0]>} : vector<4x8x128xf32>, vector<4x128x32xf32>, vector<4x8x32xf32> -> vector<4x8x32xf32>
    "tpu.trace_stop"() : () -> ()
    %c0_18 = arith.constant 0 : index
    %c0_19 = arith.constant 0 : index
    %c0_20 = arith.constant 0 : index
    %32 = vector.load %arg10[%c0_18, %c0_19, %c0_20] : memref<4x8x32xf32, #tpu.memory_space<vmem>>, vector<4x8x32xf32>
    tpu.vector_store %arg10[%c0_18, %c0_19, %c0_20], %31 {strides = array<i32>} : memref<4x8x32xf32, #tpu.memory_space<vmem>>, vector<4x8x32xf32>,
    %c0_21 = arith.constant 0 : index
    %c0_22 = arith.constant 0 : index
    %c0_23 = arith.constant 0 : index
    %33 = vector.load %arg11[%c0_21, %c0_22, %c0_23] : memref<4x8x128xf32, #tpu.memory_space<vmem>>, vector<4x8x128xf32>
    tpu.vector_store %arg11[%c0_21, %c0_22, %c0_23], %29 {strides = array<i32>} : memref<4x8x128xf32, #tpu.memory_space<vmem>>, vector<4x8x128xf32>,
    return
  }
  func.func @transform_0(%arg0: i32, %arg1: i32) -> (i32, i32, i32) {
    %c0_i32 = arith.constant 0 : i32
    %c0_i32_0 = arith.constant 0 : i32
    return %arg0, %arg1, %c0_i32 : i32, i32, i32
  }
  func.func @transform_1(%arg0: i32, %arg1: i32) -> (i32, i32, i32) {
    %c0_i32 = arith.constant 0 : i32
    %c0_i32_0 = arith.constant 0 : i32
    %c0_i32_1 = arith.constant 0 : i32
    return %arg0, %c0_i32, %c0_i32_0 : i32, i32, i32
  }
  func.func @transform_2(%arg0: i32, %arg1: i32) -> (i32, i32) {
    %c0_i32 = arith.constant 0 : i32
    %c0_i32_0 = arith.constant 0 : i32
    %c0_i32_1 = arith.constant 0 : i32
    return %c0_i32, %c0_i32_0 : i32, i32
  }
  func.func @transform_3(%arg0: i32, %arg1: i32) -> (i32, i32) {
    %c0_i32 = arith.constant 0 : i32
    %c0_i32_0 = arith.constant 0 : i32
    %c0_i32_1 = arith.constant 0 : i32
    return %c0_i32, %c0_i32_0 : i32, i32
  }
  func.func @transform_4(%arg0: i32, %arg1: i32) -> (i32, i32) {
    %c0_i32 = arith.constant 0 : i32
    %c0_i32_0 = arith.constant 0 : i32
    %c0_i32_1 = arith.constant 0 : i32
    return %c0_i32, %c0_i32_0 : i32, i32
  }
  func.func @transform_5(%arg0: i32, %arg1: i32) -> (i32, i32) {
    %c0_i32 = arith.constant 0 : i32
    %c0_i32_0 = arith.constant 0 : i32
    %c0_i32_1 = arith.constant 0 : i32
    return %c0_i32, %c0_i32_0 : i32, i32
  }
  func.func @transform_6(%arg0: i32, %arg1: i32) -> (i32, i32) {
    %c0_i32 = arith.constant 0 : i32
    %c0_i32_0 = arith.constant 0 : i32
    %c0_i32_1 = arith.constant 0 : i32
    return %c0_i32, %c0_i32_0 : i32, i32
  }
  func.func @transform_7(%arg0: i32, %arg1: i32) -> (i32, i32) {
    %c0_i32 = arith.constant 0 : i32
    %c0_i32_0 = arith.constant 0 : i32
    %c0_i32_1 = arith.constant 0 : i32
    return %c0_i32, %c0_i32_0 : i32, i32
  }
  func.func @transform_8(%arg0: i32, %arg1: i32) -> (i32, i32, i32) {
    %c0_i32 = arith.constant 0 : i32
    %c0_i32_0 = arith.constant 0 : i32
    return %arg0, %arg1, %c0_i32 : i32, i32, i32
  }
  func.func @transform_9(%arg0: i32, %arg1: i32) -> (i32, i32, i32) {
    %c0_i32 = arith.constant 0 : i32
    %c0_i32_0 = arith.constant 0 : i32
    return %arg0, %arg1, %c0_i32 : i32, i32, i32
  }
}

</mosaic_0001>

<llo_original>
// kernel: tpu_custom_call.1
$region0: #{tpu_custom_call.1}
  #allocation0 [shape = 'u32[]', space=smem, size = 0x4, offset = 0x4, fixed_abs, tag = 'smem constant byte address 0x4 - core index']
  #allocation1 [shape = 'u32[144,128]{1,0:T(1,128)}', space=vmem, size = 0x12000, scoped, tag = 'internal scratch']
  #allocation2 [shape = 'f32[4,128,32]{2,1,0:T(8,128)}', space=vmem, size = 0x40000, scoped, tag = 'scratch operand']
  #allocation3 [shape = 'f32[4,128,32]{2,1,0:T(8,128)}', space=vmem, size = 0x40000, scoped, tag = 'scratch operand']
  %s0 = inlined_call_operand.vmem [shape: f32[8,8,32], index: 0, kind: input, shape index: {}]
  %s1 = inlined_call_operand.vmem [shape: f32[8,128,32], index: 1, kind: input, shape index: {}]
  %s2 = inlined_call_operand.vmem [shape: f32[32,32], index: 2, kind: input, shape index: {}]
  %s3 = inlined_call_operand.vmem [shape: f32[1,32], index: 3, kind: input, shape index: {}]
  %s4 = inlined_call_operand.vmem [shape: f32[32,32], index: 4, kind: input, shape index: {}]
  %s5 = inlined_call_operand.vmem [shape: f32[1,32], index: 5, kind: input, shape index: {}]
  %s6 = inlined_call_operand.vmem [shape: f32[32,32], index: 6, kind: input, shape index: {}]
  %s7 = inlined_call_operand.vmem [shape: f32[1,32], index: 7, kind: input, shape index: {}]
  %s8 = inlined_call_operand.hbm [shape: f32[8,8,32], index: 8, kind: output, shape index: {0}]
  %s9 = inlined_call_operand.hbm [shape: f32[8,8,128], index: 9, kind: output, shape index: {1}]
  %10 = xla_tuple %s8, %s9
  %s11 = sld [smem:[#allocation0]]
  $region77: #{tpu_custom_call.1} parent=0
    _
  %s13 = ssub.s32 1, %s11
  %s14 = scalar_select 0, %s13, %s11
  $region1: #{tpu_custom_call.1} parent=0
    #allocation4 [shape = 'u8[32768]{0}', space=vmem, size = 0x8000, scoped, tag = 'output window, operand 0']
    #allocation5 [shape = 's32[2]{0}', space=sflag, size = 0x8, scoped, tag = 'scoped memory for tpu_custom_call.1']
    #allocation6 [shape = 'u8[32768]{0}', space=vmem, size = 0x8000, scoped, tag = 'output window, operand 1']
    #allocation7 [shape = 's32[2]{0}', space=sflag, size = 0x8, scoped, tag = 'scoped memory for tpu_custom_call.1']
    %15 = vsyncpa [#allocation5], 0
    %s16 = scalar_lea.sflag [#allocation5], 1
    %17 = vsyncpa %s16, 0
    %18 = vsyncpa [#allocation7], 0
    %s19 = scalar_lea.sflag [#allocation7], 1
    %20 = vsyncpa %s19, 0
    loop: start=0, step=1, limit=4
    $region2: #{tpu_custom_call.1} parent=1 // loop_pre_header
      _
    $region3: #{tpu_custom_call.1} parent=1 // loop_header
      %s22 = sphi 0, %s26
      %p23 = scmp.ge.s32.totalorder %s22, 4
      %s29 = sphi 0, %s41
      %s30 = sphi 0, %s37
      %s31 = sphi 0, %s29
      %s32 = sphi 0, %s30
      %s33 = sphi 0, %s31
      %s34 = sphi 0, %s32
      %s46 = sphi 0, %s48
      %s49 = sphi 0, %s46
      %s50 = sphi 0, %s49
      %s66 = sphi 0, %s50
      %s72 = sphi 0, %s74
      %s75 = sphi 0, %s72
      %s76 = sphi 0, %s75
      %s92 = sphi 0, %s76
      %s96 = sphi 0, %s96
      %s98 = sphi 0, %s96
      %s99 = sphi 0, %s98
      %s113 = sphi 0, %s99
      %s117 = sphi 0, %s117
      %s119 = sphi 0, %s117
      %s120 = sphi 0, %s119
      %s134 = sphi 0, %s120
      %s138 = sphi 0, %s138
      %s140 = sphi 0, %s138
      %s141 = sphi 0, %s140
      %s155 = sphi 0, %s141
      %s159 = sphi 0, %s159
      %s161 = sphi 0, %s159
      %s162 = sphi 0, %s161
      %s176 = sphi 0, %s162
      %s180 = sphi 0, %s180
      %s182 = sphi 0, %s180
      %s183 = sphi 0, %s182
      %s197 = sphi 0, %s183
      %s201 = sphi 0, %s201
      %s203 = sphi 0, %s201
      %s204 = sphi 0, %s203
      %s218 = sphi 0, %s204
      %s226 = sphi 0, %s228
      %s229 = sphi 0, %s226
      %s230 = sphi 0, %s229
      %s246 = sphi 0, %s230
      %s254 = sphi 0, %s256
      %s257 = sphi 0, %s254
      %s258 = sphi 0, %s257
      %s274 = sphi 0, %s258
    $region4: #{tpu_custom_call.1} parent=1 // loop_header_branch
      %25 = sbr.rel (%p23) target = $region8
    $region5: #{tpu_custom_call.1} parent=1 // loop_body
      %s27 = ssub.s32 %s22, 1
      %s28 = ssub.s32 %s22, 2
      %s35 = sadd.s32 1, %s30
      %p36 = scmp.ge.s32.totalorder %s35, 1
      %s37 = scalar_select %p36, 0, %s35
      %s38 = sadd.s32 1, %s29
      %s39 = scalar_select %p36, %s38, %s29
      %p40 = scmp.ge.s32.totalorder %s39, 2
      %s41 = scalar_select %p40, 0, %s39
      %s42 = ssub.s32 %s29, %s41
      %s43 = ssub.s32 %s30, %s37
      %s44 = sor.u32 %s42, %s43
      %p45 = scmp.eq.s32.totalorder %s44, 0
      %s47 = sadd.s32 %s46, 1
      %s48 = scalar_select %p45, %s46, %s47
      %p51 = pneg %p45
      %p52 = scmp.eq.s32.totalorder %s22, 1
      %p53 = por %p51, %p52
      %p54 = scmp.ne.s32.totalorder %s46, %s49
      %p55 = scmp.eq.s32.totalorder %s22, 0
      %p56 = por %p54, %p55
      %p57 = scmp.ne.s32.totalorder %s46, %s49
      %p58 = scmp.eq.s32.totalorder %s27, 1
      %p59 = por %p57, %p58
      %p60 = scmp.ne.s32.totalorder %s49, %s50
      %p61 = scmp.eq.s32.totalorder %s27, 0
      %p62 = por %p60, %p61
      %p63 = scmp.ne.s32.totalorder %s49, %s50
      %p64 = scmp.eq.s32.totalorder %s28, 1
      %p65 = por %p63, %p64
      %p67 = scmp.ne.s32.totalorder %s50, %s66
      %p68 = scmp.eq.s32.totalorder %s28, 0
      %p69 = por %p67, %p68
      %s70 = ssub.s32 %s29, %s41
      %p71 = scmp.eq.s32.totalorder %s70, 0
      %s73 = sadd.s32 %s72, 1
      %s74 = scalar_select %p71, %s72, %s73
      %p77 = pneg %p71
      %p78 = scmp.eq.s32.totalorder %s22, 1
      %p79 = por %p77, %p78
      %p80 = scmp.ne.s32.totalorder %s72, %s75
      %p81 = scmp.eq.s32.totalorder %s22, 0
      %p82 = por %p80, %p81
      %p83 = scmp.ne.s32.totalorder %s72, %s75
      %p84 = scmp.eq.s32.totalorder %s27, 1
      %p85 = por %p83, %p84
      %p86 = scmp.ne.s32.totalorder %s75, %s76
      %p87 = scmp.eq.s32.totalorder %s27, 0
      %p88 = por %p86, %p87
      %p89 = scmp.ne.s32.totalorder %s75, %s76
      %p90 = scmp.eq.s32.totalorder %s28, 1
      %p91 = por %p89, %p90
      %p93 = scmp.ne.s32.totalorder %s76, %s92
      %p94 = scmp.eq.s32.totalorder %s28, 0
      %p95 = por %p93, %p94
      %s97 = sadd.s32 %s96, 1
      %p100 = scmp.eq.s32.totalorder %s22, 1
      %p101 = scmp.ne.s32.totalorder %s96, %s98
      %p102 = scmp.eq.s32.totalorder %s22, 0
      %p103 = por %p101, %p102
      %p104 = scmp.ne.s32.totalorder %s96, %s98
      %p105 = scmp.eq.s32.totalorder %s27, 1
      %p106 = por %p104, %p105
      %p107 = scmp.ne.s32.totalorder %s98, %s99
      %p108 = scmp.eq.s32.totalorder %s27, 0
      %p109 = por %p107, %p108
      %p110 = scmp.ne.s32.totalorder %s98, %s99
      %p111 = scmp.eq.s32.totalorder %s28, 1
      %p112 = por %p110, %p111
      %p114 = scmp.ne.s32.totalorder %s99, %s113
      %p115 = scmp.eq.s32.totalorder %s28, 0
      %p116 = por %p114, %p115
      %s118 = sadd.s32 %s117, 1
      %p121 = scmp.eq.s32.totalorder %s22, 1
      %p122 = scmp.ne.s32.totalorder %s117, %s119
      %p123 = scmp.eq.s32.totalorder %s22, 0
      %p124 = por %p122, %p123
      %p125 = scmp.ne.s32.totalorder %s117, %s119
      %p126 = scmp.eq.s32.totalorder %s27, 1
      %p127 = por %p125, %p126
      %p128 = scmp.ne.s32.totalorder %s119, %s120
      %p129 = scmp.eq.s32.totalorder %s27, 0
      %p130 = por %p128, %p129
      %p131 = scmp.ne.s32.totalorder %s119, %s120
      %p132 = scmp.eq.s32.totalorder %s28, 1
      %p133 = por %p131, %p132
      %p135 = scmp.ne.s32.totalorder %s120, %s134
      %p136 = scmp.eq.s32.totalorder %s28, 0
      %p137 = por %p135, %p136
      %s139 = sadd.s32 %s138, 1
      %p142 = scmp.eq.s32.totalorder %s22, 1
      %p143 = scmp.ne.s32.totalorder %s138, %s140
      %p144 = scmp.eq.s32.totalorder %s22, 0
      %p145 = por %p143, %p144
      %p146 = scmp.ne.s32.totalorder %s138, %s140
      %p147 = scmp.eq.s32.totalorder %s27, 1
      %p148 = por %p146, %p147
      %p149 = scmp.ne.s32.totalorder %s140, %s141
      %p150 = scmp.eq.s32.totalorder %s27, 0
      %p151 = por %p149, %p150
      %p152 = scmp.ne.s32.totalorder %s140, %s141
      %p153 = scmp.eq.s32.totalorder %s28, 1
      %p154 = por %p152, %p153
      %p156 = scmp.ne.s32.totalorder %s141, %s155
      %p157 = scmp.eq.s32.totalorder %s28, 0
      %p158 = por %p156, %p157
      %s160 = sadd.s32 %s159, 1
      %p163 = scmp.eq.s32.totalorder %s22, 1
      %p164 = scmp.ne.s32.totalorder %s159, %s161
      %p165 = scmp.eq.s32.totalorder %s22, 0
      %p166 = por %p164, %p165
      %p167 = scmp.ne.s32.totalorder %s159, %s161
      %p168 = scmp.eq.s32.totalorder %s27, 1
      %p169 = por %p167, %p168
      %p170 = scmp.ne.s32.totalorder %s161, %s162
      %p171 = scmp.eq.s32.totalorder %s27, 0
      %p172 = por %p170, %p171
      %p173 = scmp.ne.s32.totalorder %s161, %s162
      %p174 = scmp.eq.s32.totalorder %s28, 1
      %p175 = por %p173, %p174
      %p177 = scmp.ne.s32.totalorder %s162, %s176
      %p178 = scmp.eq.s32.totalorder %s28, 0
      %p179 = por %p177, %p178
      %s181 = sadd.s32 %s180, 1
      %p184 = scmp.eq.s32.totalorder %s22, 1
      %p185 = scmp.ne.s32.totalorder %s180, %s182
      %p186 = scmp.eq.s32.totalorder %s22, 0
      %p187 = por %p185, %p186
      %p188 = scmp.ne.s32.totalorder %s180, %s182
      %p189 = scmp.eq.s32.totalorder %s27, 1
      %p190 = por %p188, %p189
      %p191 = scmp.ne.s32.totalorder %s182, %s183
      %p192 = scmp.eq.s32.totalorder %s27, 0
      %p193 = por %p191, %p192
      %p194 = scmp.ne.s32.totalorder %s182, %s183
      %p195 = scmp.eq.s32.totalorder %s28, 1
      %p196 = por %p194, %p195
      %p198 = scmp.ne.s32.totalorder %s183, %s197
      %p199 = scmp.eq.s32.totalorder %s28, 0
      %p200 = por %p198, %p199
      %s202 = sadd.s32 %s201, 1
      %p205 = scmp.eq.s32.totalorder %s22, 1
      %p206 = scmp.ne.s32.totalorder %s201, %s203
      %p207 = scmp.eq.s32.totalorder %s22, 0
      %p208 = por %p206, %p207
      %p209 = scmp.ne.s32.totalorder %s201, %s203
      %p210 = scmp.eq.s32.totalorder %s27, 1
      %p211 = por %p209, %p210
      %p212 = scmp.ne.s32.totalorder %s203, %s204
      %p213 = scmp.eq.s32.totalorder %s27, 0
      %p214 = por %p212, %p213
      %p215 = scmp.ne.s32.totalorder %s203, %s204
      %p216 = scmp.eq.s32.totalorder %s28, 1
      %p217 = por %p215, %p216
      %p219 = scmp.ne.s32.totalorder %s204, %s218
      %p220 = scmp.eq.s32.totalorder %s28, 0
      %p221 = por %p219, %p220
      %s222 = ssub.s32 %s29, %s41
      %s223 = ssub.s32 %s30, %s37
      %s224 = sor.u32 %s222, %s223
      %p225 = scmp.eq.s32.totalorder %s224, 0
      %s227 = sadd.s32 %s226, 1
      %s228 = scalar_select %p225, %s226, %s227
      %p231 = pneg %p225
      %p232 = scmp.eq.s32.totalorder %s22, 1
      %p233 = por %p231, %p232
      %p234 = scmp.ne.s32.totalorder %s226, %s229
      %p235 = scmp.eq.s32.totalorder %s22, 0
      %p236 = por %p234, %p235
      %p237 = scmp.ne.s32.totalorder %s226, %s229
      %p238 = scmp.eq.s32.totalorder %s27, 1
      %p239 = por %p237, %p238
      %p240 = scmp.ne.s32.totalorder %s229, %s230
      %p241 = scmp.eq.s32.totalorder %s27, 0
      %p242 = por %p240, %p241
      %p243 = scmp.ne.s32.totalorder %s229, %s230
      %p244 = scmp.eq.s32.totalorder %s28, 1
      %p245 = por %p243, %p244
      %p247 = scmp.ne.s32.totalorder %s230, %s246
      %p248 = scmp.eq.s32.totalorder %s28, 0
      %p249 = por %p247, %p248
      %s250 = ssub.s32 %s29, %s41
      %s251 = ssub.s32 %s30, %s37
      %s252 = sor.u32 %s250, %s251
      %p253 = scmp.eq.s32.totalorder %s252, 0
      %s255 = sadd.s32 %s254, 1
      %s256 = scalar_select %p253, %s254, %s255
      %p259 = pneg %p253
      %p260 = scmp.eq.s32.totalorder %s22, 1
      %p261 = por %p259, %p260
      %p262 = scmp.ne.s32.totalorder %s254, %s257
      %p263 = scmp.eq.s32.totalorder %s22, 0
      %p264 = por %p262, %p263
      %p265 = scmp.ne.s32.totalorder %s254, %s257
      %p266 = scmp.eq.s32.totalorder %s27, 1
      %p267 = por %p265, %p266
      %p268 = scmp.ne.s32.totalorder %s257, %s258
      %p269 = scmp.eq.s32.totalorder %s27, 0
      %p270 = por %p268, %p269
      %p271 = scmp.ne.s32.totalorder %s257, %s258
      %p272 = scmp.eq.s32.totalorder %s28, 1
      %p273 = por %p271, %p272
      %p275 = scmp.ne.s32.totalorder %s258, %s274
      %p276 = scmp.eq.s32.totalorder %s28, 0
      %p277 = por %p275, %p276
      %p278 = scmp.le.s32.totalorder 1, %s22
      %p279 = scmp.lt.s32.totalorder %s22, 3
      %p280 = pnand %p278, %p279
      %p281 = pneg %p280
      // Predicated region
      $region9: #{tpu_custom_call.1} parent=5 // pred_check
        _
      $region10: #{tpu_custom_call.1} parent=5 // pred_check_branch
        %283 = sbr.rel (%p280) target = $region12
      $region11: #{tpu_custom_call.1} parent=5 // pred_region
        %s284 = ssub.s32 %s22, 1
        // Predicated region
        $region13: #{tpu_custom_call.1} parent=11 // pred_check
          %p285 = pneg %p109
        $region14: #{tpu_custom_call.1} parent=11 // pred_check_branch
          %287 = sbr.rel (%p285) target = $region16
        $region15: #{tpu_custom_call.1} parent=11 // pred_region
          _
        $region16: #{tpu_custom_call.1} parent=11 // pred_fallthru
          _
        // Predicated region
        $region17: #{tpu_custom_call.1} parent=11 // pred_check
          %p288 = pneg %p130
        $region18: #{tpu_custom_call.1} parent=11 // pred_check_branch
          %290 = sbr.rel (%p288) target = $region20
        $region19: #{tpu_custom_call.1} parent=11 // pred_region
          _
        $region20: #{tpu_custom_call.1} parent=11 // pred_fallthru
          _
        // Predicated region
        $region21: #{tpu_custom_call.1} parent=11 // pred_check
          %p291 = pneg %p151
        $region22: #{tpu_custom_call.1} parent=11 // pred_check_branch
          %293 = sbr.rel (%p291) target = $region24
        $region23: #{tpu_custom_call.1} parent=11 // pred_region
          _
        $region24: #{tpu_custom_call.1} parent=11 // pred_fallthru
          _
        // Predicated region
        $region25: #{tpu_custom_call.1} parent=11 // pred_check
          %p294 = pneg %p172
        $region26: #{tpu_custom_call.1} parent=11 // pred_check_branch
          %296 = sbr.rel (%p294) target = $region28
        $region27: #{tpu_custom_call.1} parent=11 // pred_region
          _
        $region28: #{tpu_custom_call.1} parent=11 // pred_fallthru
          _
        // Predicated region
        $region29: #{tpu_custom_call.1} parent=11 // pred_check
          %p297 = pneg %p193
        $region30: #{tpu_custom_call.1} parent=11 // pred_check_branch
          %299 = sbr.rel (%p297) target = $region32
        $region31: #{tpu_custom_call.1} parent=11 // pred_region
          _
        $region32: #{tpu_custom_call.1} parent=11 // pred_fallthru
          _
        // Predicated region
        $region33: #{tpu_custom_call.1} parent=11 // pred_check
          %p300 = pneg %p214
        $region34: #{tpu_custom_call.1} parent=11 // pred_check_branch
          %302 = sbr.rel (%p300) target = $region36
        $region35: #{tpu_custom_call.1} parent=11 // pred_region
          _
        $region36: #{tpu_custom_call.1} parent=11 // pred_fallthru
          _
      $region12: #{tpu_custom_call.1} parent=5 // pred_fallthru
        _
      %p303 = scmp.lt.s32.totalorder %s22, 2
      // Predicated region
      $region37: #{tpu_custom_call.1} parent=5 // pred_check
        %p304 = pneg %p303
      $region38: #{tpu_custom_call.1} parent=5 // pred_check_branch
        %306 = sbr.rel (%p304) target = $region40
      $region39: #{tpu_custom_call.1} parent=5 // pred_region
        // Predicated region
        $region41: #{tpu_custom_call.1} parent=39 // pred_check
          %p307 = pneg %p56
        $region42: #{tpu_custom_call.1} parent=39 // pred_check_branch
          %309 = sbr.rel (%p307) target = $region44
        $region43: #{tpu_custom_call.1} parent=39 // pred_region
          %s310 = smul.u32 4, %s29
          %p311 = scmp.lt.s32.totalorder %s310, 7
          %s312 = scalar_select %p311, %s310, 7
          %p313 = scmp.lt.s32.totalorder %s30, 0
          %s314 = scalar_select %p313, %s30, 0
          %s315 = sadd.s32 %s314, %s312
          %s316 = smul.addr %s315, 8
          %s317 = scalar_lea.vmem %s0, %s316
          %s318 = smul.u32 4, %s29
        $region44: #{tpu_custom_call.1} parent=39 // pred_fallthru
          _
        // Predicated region
        $region45: #{tpu_custom_call.1} parent=39 // pred_check
          %p319 = pneg %p82
        $region46: #{tpu_custom_call.1} parent=39 // pred_check_branch
          %321 = sbr.rel (%p319) target = $region48
        $region47: #{tpu_custom_call.1} parent=39 // pred_region
          %s322 = smul.u32 4, %s29
          %p323 = scmp.lt.s32.totalorder %s322, 7
          %s324 = scalar_select %p323, %s322, 7
          %s325 = smul.addr %s324, 16
          %s326 = smul.addr %s325, 8
          %s327 = scalar_lea.vmem %s1, %s326
          %s328 = smul.u32 4, %s29
        $region48: #{tpu_custom_call.1} parent=39 // pred_fallthru
          _
      $region40: #{tpu_custom_call.1} parent=5 // pred_fallthru
        _
      %p329 = scmp.le.s32.totalorder 1, %s22
      %p330 = scmp.lt.s32.totalorder %s22, 3
      %p331 = pnand %p329, %p330
      %p332 = pneg %p331
      // Predicated region
      $region49: #{tpu_custom_call.1} parent=5 // pred_check
        _
      $region50: #{tpu_custom_call.1} parent=5 // pred_check_branch
        %334 = sbr.rel (%p331) target = $region52
      $region51: #{tpu_custom_call.1} parent=5 // pred_region
        %s335 = ssub.s32 %s22, 1
        %s336 = smul.u32 4, %s31
        %p337 = scmp.lt.s32.totalorder %s336, 7
        %s338 = scalar_select %p337, %s336, 7
        %p339 = scmp.lt.s32.totalorder %s32, 0
        %s340 = scalar_select %p339, %s32, 0
        %s341 = sadd.s32 %s340, %s338
        %s342 = smul.addr %s341, 8
        %s343 = scalar_lea.vmem %s0, %s342
        %p344 = pneg %p62
        %p345 = pneg %p59
        %s346 = smul.u32 4, %s31
        %p347 = scmp.lt.s32.totalorder %s346, 7
        %s348 = scalar_select %p347, %s346, 7
        %s349 = smul.addr %s348, 16
        %s350 = smul.addr %s349, 8
        %s351 = scalar_lea.vmem %s1, %s350
        %p352 = pneg %p88
        %p353 = pneg %p85
        %p354 = pneg %p109
        %p355 = pneg %p106
        %p356 = pneg %p130
        %p357 = pneg %p127
        %p358 = pneg %p151
        %p359 = pneg %p148
        %p360 = pneg %p172
        %p361 = pneg %p169
        %p362 = pneg %p193
        %p363 = pneg %p190
        %p364 = pneg %p214
        %p365 = pneg %p211
        %p366 = pneg %p242
        %p367 = pneg %p239
        %s368 = sand.u32 %s229, 1
        %s369 = scalar_lea.sflag [#allocation5], %s368
        %s370 = sand.u32 %s229, 1
        %s371 = smul.addr %s370, 32
        %s372 = scalar_lea.vmem [#allocation4], %s371
        %p373 = pneg %p270
        %p374 = pneg %p267
        %s375 = sand.u32 %s257, 1
        %s376 = scalar_lea.sflag [#allocation7], %s375
        %s377 = sand.u32 %s257, 1
        %s378 = smul.addr %s377, 32
        %s379 = scalar_lea.vmem [#allocation6], %s378
        %s380 = smul.u32 4, %s31
        %p381 = scmp.lt.s32.totalorder %s380, 7
        %s382 = scalar_select %p381, %s380, 7
        %p383 = scmp.lt.s32.totalorder %s32, 0
        %s384 = scalar_select %p383, %s32, 0
        %s385 = sadd.s32 %s384, %s382
        %s386 = smul.addr %s385, 8
        %s387 = scalar_lea.vmem %s0, %s386
        %s388 = smul.u32 4, %s31
        %s389 = smul.u32 4, %s31
        %p390 = scmp.lt.s32.totalorder %s389, 7
        %s391 = scalar_select %p390, %s389, 7
        %s392 = smul.addr %s391, 16
        %s393 = smul.addr %s392, 8
        %s394 = scalar_lea.vmem %s1, %s393
        %s395 = smul.u32 4, %s31
        %s396 = smul.u32 4, %s31
        %s397 = smul.u32 4, %s31
        %p398 = scmp.eq.s32.totalorder %s32, 0
        // Predicated region
        $region53: #{tpu_custom_call.1} parent=51 // pred_check
          %p399 = pneg %p398
        $region54: #{tpu_custom_call.1} parent=51 // pred_check_branch
          %401 = sbr.rel (%p399) target = $region56
        $region55: #{tpu_custom_call.1} parent=51 // pred_region
          %v402 = vld [vmem:[%s394] sm:$0xff]
          %v403 = vld [vmem:[%s394 + $0x8] sm:$0xff]
          %v404 = vld [vmem:[%s394 + $0x10] sm:$0xff]
          %v405 = vld [vmem:[%s394 + $0x18] sm:$0xff]
          %v406 = vld [vmem:[%s394 + $0x20] sm:$0xff]
          %v407 = vld [vmem:[%s394 + $0x28] sm:$0xff]
          %v408 = vld [vmem:[%s394 + $0x30] sm:$0xff]
          %v409 = vld [vmem:[%s394 + $0x38] sm:$0xff]
          %v410 = vld [vmem:[%s394 + $0x40] sm:$0xff]
          %v411 = vld [vmem:[%s394 + $0x48] sm:$0xff]
          %v412 = vld [vmem:[%s394 + $0x50] sm:$0xff]
          %v413 = vld [vmem:[%s394 + $0x58] sm:$0xff]
          %v414 = vld [vmem:[%s394 + $0x60] sm:$0xff]
          %v415 = vld [vmem:[%s394 + $0x68] sm:$0xff]
          %v416 = vld [vmem:[%s394 + $0x70] sm:$0xff]
          %v417 = vld [vmem:[%s394 + $0x78] sm:$0xff]
          %v418 = vld [vmem:[%s394 + $0x80] sm:$0xff]
          %v419 = vld [vmem:[%s394 + $0x88] sm:$0xff]
          %v420 = vld [vmem:[%s394 + $0x90] sm:$0xff]
          %v421 = vld [vmem:[%s394 + $0x98] sm:$0xff]
          %v422 = vld [vmem:[%s394 + $0xa0] sm:$0xff]
          %v423 = vld [vmem:[%s394 + $0xa8] sm:$0xff]
          %v424 = vld [vmem:[%s394 + $0xb0] sm:$0xff]
          %v425 = vld [vmem:[%s394 + $0xb8] sm:$0xff]
          %v426 = vld [vmem:[%s394 + $0xc0] sm:$0xff]
          %v427 = vld [vmem:[%s394 + $0xc8] sm:$0xff]
          %v428 = vld [vmem:[%s394 + $0xd0] sm:$0xff]
          %v429 = vld [vmem:[%s394 + $0xd8] sm:$0xff]
          %v430 = vld [vmem:[%s394 + $0xe0] sm:$0xff]
          %v431 = vld [vmem:[%s394 + $0xe8] sm:$0xff]
          %v432 = vld [vmem:[%s394 + $0xf0] sm:$0xff]
          %v433 = vld [vmem:[%s394 + $0xf8] sm:$0xff]
          %v434 = vld [vmem:[%s394 + $0x100] sm:$0xff]
          %v435 = vld [vmem:[%s394 + $0x108] sm:$0xff]
          %v436 = vld [vmem:[%s394 + $0x110] sm:$0xff]
          %v437 = vld [vmem:[%s394 + $0x118] sm:$0xff]
          %v438 = vld [vmem:[%s394 + $0x120] sm:$0xff]
          %v439 = vld [vmem:[%s394 + $0x128] sm:$0xff]
          %v440 = vld [vmem:[%s394 + $0x130] sm:$0xff]
          %v441 = vld [vmem:[%s394 + $0x138] sm:$0xff]
          %v442 = vld [vmem:[%s394 + $0x140] sm:$0xff]
          %v443 = vld [vmem:[%s394 + $0x148] sm:$0xff]
          %v444 = vld [vmem:[%s394 + $0x150] sm:$0xff]
          %v445 = vld [vmem:[%s394 + $0x158] sm:$0xff]
          %v446 = vld [vmem:[%s394 + $0x160] sm:$0xff]
          %v447 = vld [vmem:[%s394 + $0x168] sm:$0xff]
          %v448 = vld [vmem:[%s394 + $0x170] sm:$0xff]
          %v449 = vld [vmem:[%s394 + $0x178] sm:$0xff]
          %v450 = vld [vmem:[%s394 + $0x180] sm:$0xff]
          %v451 = vld [vmem:[%s394 + $0x188] sm:$0xff]
          %v452 = vld [vmem:[%s394 + $0x190] sm:$0xff]
          %v453 = vld [vmem:[%s394 + $0x198] sm:$0xff]
          %v454 = vld [vmem:[%s394 + $0x1a0] sm:$0xff]
          %v455 = vld [vmem:[%s394 + $0x1a8] sm:$0xff]
          %v456 = vld [vmem:[%s394 + $0x1b0] sm:$0xff]
          %v457 = vld [vmem:[%s394 + $0x1b8] sm:$0xff]
          %v458 = vld [vmem:[%s394 + $0x1c0] sm:$0xff]
          %v459 = vld [vmem:[%s394 + $0x1c8] sm:$0xff]
          %v460 = vld [vmem:[%s394 + $0x1d0] sm:$0xff]
          %v461 = vld [vmem:[%s394 + $0x1d8] sm:$0xff]
          %v462 = vld [vmem:[%s394 + $0x1e0] sm:$0xff]
          %v463 = vld [vmem:[%s394 + $0x1e8] sm:$0xff]
          %v464 = vld [vmem:[%s394 + $0x1f0] sm:$0xff]
          %v465 = vld [vmem:[%s394 + $0x1f8] sm:$0xff]
          %v466 = vld [vmem:[%s4] sm:$0xff]
          %v467 = vld [vmem:[%s4 + $0x8] sm:$0xff]
          %v468 = vld [vmem:[%s4 + $0x10] sm:$0xff]
          %v469 = vld [vmem:[%s4 + $0x18] sm:$0xff]
          %v470 = vld [vmem:[%s5] sm:$0x1]
          %v472 = vlaneseq
          %v473 = vshrl.u32 %v472, 7
          %v474 = vsub.s32 0, %v473
          %v475 = vrot.slane %v470, %v474
          %vm477 = vcmask 261120
          %v479 = vsel %vm477, %v402, 0
          %v482 = vsel %vm477, %v403, 0
          %v485 = vsel %vm477, %v404, 0
          %v488 = vsel %vm477, %v405, 0
          %v491 = vsel %vm477, %v406, 0
          %v494 = vsel %vm477, %v407, 0
          %v497 = vsel %vm477, %v408, 0
          %v500 = vsel %vm477, %v409, 0
          %v503 = vsel %vm477, %v410, 0
          %v506 = vsel %vm477, %v411, 0
          %v509 = vsel %vm477, %v412, 0
          %v512 = vsel %vm477, %v413, 0
          %v515 = vsel %vm477, %v414, 0
          %v518 = vsel %vm477, %v415, 0
          %v521 = vsel %vm477, %v416, 0
          %v524 = vsel %vm477, %v417, 0
          %v527 = vsel %vm477, %v418, 0
          %v530 = vsel %vm477, %v419, 0
          %v533 = vsel %vm477, %v420, 0
          %v536 = vsel %vm477, %v421, 0
          %v539 = vsel %vm477, %v422, 0
          %v542 = vsel %vm477, %v423, 0
          %v545 = vsel %vm477, %v424, 0
          %v548 = vsel %vm477, %v425, 0
          %v551 = vsel %vm477, %v426, 0
          %v554 = vsel %vm477, %v427, 0
          %v557 = vsel %vm477, %v428, 0
          %v560 = vsel %vm477, %v429, 0
          %v563 = vsel %vm477, %v430, 0
          %v566 = vsel %vm477, %v431, 0
          %v569 = vsel %vm477, %v432, 0
          %v572 = vsel %vm477, %v433, 0
          %v575 = vsel %vm477, %v434, 0
          %v578 = vsel %vm477, %v435, 0
          %v581 = vsel %vm477, %v436, 0
          %v584 = vsel %vm477, %v437, 0
          %v587 = vsel %vm477, %v438, 0
          %v590 = vsel %vm477, %v439, 0
          %v593 = vsel %vm477, %v440, 0
          %v596 = vsel %vm477, %v441, 0
          %v599 = vsel %vm477, %v442, 0
          %v602 = vsel %vm477, %v443, 0
          %v605 = vsel %vm477, %v444, 0
          %v608 = vsel %vm477, %v445, 0
          %v611 = vsel %vm477, %v446, 0
          %v614 = vsel %vm477, %v447, 0
          %v617 = vsel %vm477, %v448, 0
          %v620 = vsel %vm477, %v449, 0
          %v623 = vsel %vm477, %v450, 0
          %v626 = vsel %vm477, %v451, 0
          %v629 = vsel %vm477, %v452, 0
          %v632 = vsel %vm477, %v453, 0
          %v635 = vsel %vm477, %v454, 0
          %v638 = vsel %vm477, %v455, 0
          %v641 = vsel %vm477, %v456, 0
          %v644 = vsel %vm477, %v457, 0
          %v647 = vsel %vm477, %v458, 0
          %v650 = vsel %vm477, %v459, 0
          %v653 = vsel %vm477, %v460, 0
          %v656 = vsel %vm477, %v461, 0
          %v659 = vsel %vm477, %v462, 0
          %v662 = vsel %vm477, %v463, 0
          %v665 = vsel %vm477, %v464, 0
          %v668 = vsel %vm477, %v465, 0
          %670 = vmatprep.subr.mxu0 0.0
          %671 = vmatpush1.msra.mxu0 %v466
          %672 = vmatprep.subr.mxu0 0.0
          %673 = vmatpush1.msra.mxu0 %v467
          %674 = vmatprep.subr.mxu0 0.0
          %675 = vmatpush1.msra.mxu0 %v468
          %676 = vmatprep.subr.mxu0 0.0
          %677 = vmatpush1.msra.mxu0 %v469
          %678 = vmatprep.subr.mxu0 0.0
          %679 = vmatpush1.msra.mxu0 0.0
          %680 = vmatprep.subr.mxu0 0.0
          %681 = vmatpush1.msra.mxu0 0.0
          %682 = vmatprep.subr.mxu0 0.0
          %683 = vmatpush1.msra.mxu0 0.0
          %684 = vmatprep.subr.mxu0 0.0
          %685 = vmatpush1.msra.mxu0 0.0
          %686 = vmatprep.subr.mxu0 0.0
          %687 = vmatpush1.msra.mxu0 0.0
          %688 = vmatprep.subr.mxu0 0.0
          %689 = vmatpush1.msra.mxu0 0.0
          %690 = vmatprep.subr.mxu0 0.0
          %691 = vmatpush1.msra.mxu0 0.0
          %692 = vmatprep.subr.mxu0 0.0
          %693 = vmatpush1.msra.mxu0 0.0
          %694 = vmatprep.subr.mxu0 0.0
          %695 = vmatpush1.msra.mxu0 0.0
          %696 = vmatprep.subr.mxu0 0.0
          %697 = vmatpush1.msra.mxu0 0.0
          %698 = vmatprep.subr.mxu0 0.0
          %699 = vmatpush1.msra.mxu0 0.0
          %700 = vmatprep.subr.mxu0 0.0
          %701 = vmatpush1.msra.mxu0 0.0
          %702 = vmatprep.subr.mxu0 0.0
          %703 = vmatpush1.msra.mxu0 0.0
          %704 = vmatprep.subr.mxu0 0.0
          %705 = vmatpush1.msra.mxu0 0.0
          %706 = vmatprep.subr.mxu0 0.0
          %707 = vmatpush1.msra.mxu0 0.0
          %708 = vmatprep.subr.mxu0 0.0
          %709 = vmatpush1.msra.mxu0 0.0
          %710 = vmatprep.subr.mxu0 0.0
          %711 = vmatpush1.msra.mxu0 0.0
          %712 = vmatprep.subr.mxu0 0.0
          %713 = vmatpush1.msra.mxu0 0.0
          %714 = vmatprep.subr.mxu0 0.0
          %715 = vmatpush1.msra.mxu0 0.0
          %716 = vmatprep.subr.mxu0 0.0
          %717 = vmatpush1.msra.mxu0 0.0
          %718 = vmatprep.subr.mxu0 0.0
          %719 = vmatpush1.msra.mxu0 0.0
          %720 = vmatprep.subr.mxu0 0.0
          %721 = vmatpush1.msra.mxu0 0.0
          %722 = vmatprep.subr.mxu0 0.0
          %723 = vmatpush1.msra.mxu0 0.0
          %724 = vmatprep.subr.mxu0 0.0
          %725 = vmatpush1.msra.mxu0 0.0
          %726 = vmatprep.subr.mxu0 0.0
          %727 = vmatpush1.msra.mxu0 0.0
          %728 = vmatprep.subr.mxu0 0.0
          %729 = vmatpush1.msra.mxu0 0.0
          %730 = vmatprep.subr.mxu0 0.0
          %731 = vmatpush1.msra.mxu0 0.0
          %732 = vmatprep.subr.mxu0 0.0
          %733 = vmatpush1.msra.mxu0 0.0
          %734 = vmatprep.mubr.f32.mxu0 0.0
          %735 = vmatmul.mubr.f32.gmra.mrb[0].mxu0 %v479
          %v736 = vpop.f32.mrb[0].mxu0
          %v737 = vadd.f32 %v475, %v736
          %v738 = vpop.f32.mrb[0].mxu0
          %739 = vmatprep.mubr.f32.mxu0 0.0
          %740 = vmatmul.mubr.f32.gmra.mrb[0].mxu0 %v482
          %v741 = vpop.f32.mrb[0].mxu0
          %v742 = vadd.f32 %v475, %v741
          %v743 = vpop.f32.mrb[0].mxu0
          %744 = vmatprep.mubr.f32.mxu0 0.0
          %745 = vmatmul.mubr.f32.gmra.mrb[0].mxu0 %v485
          %v746 = vpop.f32.mrb[0].mxu0
          %v747 = vadd.f32 %v475, %v746
          %v748 = vpop.f32.mrb[0].mxu0
          %749 = vmatprep.mubr.f32.mxu0 0.0
          %750 = vmatmul.mubr.f32.gmra.mrb[0].mxu0 %v488
          %v751 = vpop.f32.mrb[0].mxu0
          %v752 = vadd.f32 %v475, %v751
          %v753 = vpop.f32.mrb[0].mxu0
          %754 = vmatprep.mubr.f32.mxu0 0.0
          %755 = vmatmul.mubr.f32.gmra.mrb[0].mxu0 %v491
          %v756 = vpop.f32.mrb[0].mxu0
          %v757 = vadd.f32 %v475, %v756
          %v758 = vpop.f32.mrb[0].mxu0
          %759 = vmatprep.mubr.f32.mxu0 0.0
          %760 = vmatmul.mubr.f32.gmra.mrb[0].mxu0 %v494
          %v761 = vpop.f32.mrb[0].mxu0
          %v762 = vadd.f32 %v475, %v761
          %v763 = vpop.f32.mrb[0].mxu0
          %764 = vmatprep.mubr.f32.mxu0 0.0
          %765 = vmatmul.mubr.f32.gmra.mrb[0].mxu0 %v497
          %v766 = vpop.f32.mrb[0].mxu0
          %v767 = vadd.f32 %v475, %v766
          %v768 = vpop.f32.mrb[0].mxu0
          %769 = vmatprep.mubr.f32.mxu0 0.0
          %770 = vmatmul.mubr.f32.gmra.mrb[0].mxu0 %v500
          %v771 = vpop.f32.mrb[0].mxu0
          %v772 = vadd.f32 %v475, %v771
          %v773 = vpop.f32.mrb[0].mxu0
          %774 = vmatprep.mubr.f32.mxu0 0.0
          %775 = vmatmul.mubr.f32.gmra.mrb[0].mxu0 %v503
          %v776 = vpop.f32.mrb[0].mxu0
          %v777 = vadd.f32 %v475, %v776
          %v778 = vpop.f32.mrb[0].mxu0
          %779 = vmatprep.mubr.f32.mxu0 0.0
          %780 = vmatmul.mubr.f32.gmra.mrb[0].mxu0 %v506
          %v781 = vpop.f32.mrb[0].mxu0
          %v782 = vadd.f32 %v475, %v781
          %v783 = vpop.f32.mrb[0].mxu0
          %784 = vmatprep.mubr.f32.mxu0 0.0
          %785 = vmatmul.mubr.f32.gmra.mrb[0].mxu0 %v509
          %v786 = vpop.f32.mrb[0].mxu0
          %v787 = vadd.f32 %v475, %v786
          %v788 = vpop.f32.mrb[0].mxu0
          %789 = vmatprep.mubr.f32.mxu0 0.0
          %790 = vmatmul.mubr.f32.gmra.mrb[0].mxu0 %v512
          %v791 = vpop.f32.mrb[0].mxu0
          %v792 = vadd.f32 %v475, %v791
          %v793 = vpop.f32.mrb[0].mxu0
          %794 = vmatprep.mubr.f32.mxu0 0.0
          %795 = vmatmul.mubr.f32.gmra.mrb[0].mxu0 %v515
          %v796 = vpop.f32.mrb[0].mxu0
          %v797 = vadd.f32 %v475, %v796
          %v798 = vpop.f32.mrb[0].mxu0
          %799 = vmatprep.mubr.f32.mxu0 0.0
          %800 = vmatmul.mubr.f32.gmra.mrb[0].mxu0 %v518
          %v801 = vpop.f32.mrb[0].mxu0
          %v802 = vadd.f32 %v475, %v801
          %v803 = vpop.f32.mrb[0].mxu0
          %804 = vmatprep.mubr.f32.mxu0 0.0
          %805 = vmatmul.mubr.f32.gmra.mrb[0].mxu0 %v521
          %v806 = vpop.f32.mrb[0].mxu0
          %v807 = vadd.f32 %v475, %v806
          %v808 = vpop.f32.mrb[0].mxu0
          %809 = vmatprep.mubr.f32.mxu0 0.0
          %810 = vmatmul.mubr.f32.gmra.mrb[0].mxu0 %v524
          %v811 = vpop.f32.mrb[0].mxu0
          %v812 = vadd.f32 %v475, %v811
          %v813 = vpop.f32.mrb[0].mxu0
          %814 = vmatprep.mubr.f32.mxu0 0.0
          %815 = vmatmul.mubr.f32.gmra.mrb[0].mxu0 %v527
          %v816 = vpop.f32.mrb[0].mxu0
          %v817 = vadd.f32 %v475, %v816
          %v818 = vpop.f32.mrb[0].mxu0
          %819 = vmatprep.mubr.f32.mxu0 0.0
          %820 = vmatmul.mubr.f32.gmra.mrb[0].mxu0 %v530
          %v821 = vpop.f32.mrb[0].mxu0
          %v822 = vadd.f32 %v475, %v821
          %v823 = vpop.f32.mrb[0].mxu0
          %824 = vmatprep.mubr.f32.mxu0 0.0
          %825 = vmatmul.mubr.f32.gmra.mrb[0].mxu0 %v533
          %v826 = vpop.f32.mrb[0].mxu0
          %v827 = vadd.f32 %v475, %v826
          %v828 = vpop.f32.mrb[0].mxu0
          %829 = vmatprep.mubr.f32.mxu0 0.0
          %830 = vmatmul.mubr.f32.gmra.mrb[0].mxu0 %v536
          %v831 = vpop.f32.mrb[0].mxu0
          %v832 = vadd.f32 %v475, %v831
          %v833 = vpop.f32.mrb[0].mxu0
          %834 = vmatprep.mubr.f32.mxu0 0.0
          %835 = vmatmul.mubr.f32.gmra.mrb[0].mxu0 %v539
          %v836 = vpop.f32.mrb[0].mxu0
          %v837 = vadd.f32 %v475, %v836
          %v838 = vpop.f32.mrb[0].mxu0
          %839 = vmatprep.mubr.f32.mxu0 0.0
          %840 = vmatmul.mubr.f32.gmra.mrb[0].mxu0 %v542
          %v841 = vpop.f32.mrb[0].mxu0
          %v842 = vadd.f32 %v475, %v841
          %v843 = vpop.f32.mrb[0].mxu0
          %844 = vmatprep.mubr.f32.mxu0 0.0
          %845 = vmatmul.mubr.f32.gmra.mrb[0].mxu0 %v545
          %v846 = vpop.f32.mrb[0].mxu0
          %v847 = vadd.f32 %v475, %v846
          %v848 = vpop.f32.mrb[0].mxu0
          %849 = vmatprep.mubr.f32.mxu0 0.0
          %850 = vmatmul.mubr.f32.gmra.mrb[0].mxu0 %v548
          %v851 = vpop.f32.mrb[0].mxu0
          %v852 = vadd.f32 %v475, %v851
          %v853 = vpop.f32.mrb[0].mxu0
          %854 = vmatprep.mubr.f32.mxu0 0.0
          %855 = vmatmul.mubr.f32.gmra.mrb[0].mxu0 %v551
          %v856 = vpop.f32.mrb[0].mxu0
          %v857 = vadd.f32 %v475, %v856
          %v858 = vpop.f32.mrb[0].mxu0
          %859 = vmatprep.mubr.f32.mxu0 0.0
          %860 = vmatmul.mubr.f32.gmra.mrb[0].mxu0 %v554
          %v861 = vpop.f32.mrb[0].mxu0
          %v862 = vadd.f32 %v475, %v861
          %v863 = vpop.f32.mrb[0].mxu0
          %864 = vmatprep.mubr.f32.mxu0 0.0
          %865 = vmatmul.mubr.f32.gmra.mrb[0].mxu0 %v557
          %v866 = vpop.f32.mrb[0].mxu0
          %v867 = vadd.f32 %v475, %v866
          %v868 = vpop.f32.mrb[0].mxu0
          %869 = vmatprep.mubr.f32.mxu0 0.0
          %870 = vmatmul.mubr.f32.gmra.mrb[0].mxu0 %v560
          %v871 = vpop.f32.mrb[0].mxu0
          %v872 = vadd.f32 %v475, %v871
          %v873 = vpop.f32.mrb[0].mxu0
          %874 = vmatprep.mubr.f32.mxu0 0.0
          %875 = vmatmul.mubr.f32.gmra.mrb[0].mxu0 %v563
          %v876 = vpop.f32.mrb[0].mxu0
          %v877 = vadd.f32 %v475, %v876
          %v878 = vpop.f32.mrb[0].mxu0
          %879 = vmatprep.mubr.f32.mxu0 0.0
          %880 = vmatmul.mubr.f32.gmra.mrb[0].mxu0 %v566
          %v881 = vpop.f32.mrb[0].mxu0
          %v882 = vadd.f32 %v475, %v881
          %v883 = vpop.f32.mrb[0].mxu0
          %884 = vmatprep.mubr.f32.mxu0 0.0
          %885 = vmatmul.mubr.f32.gmra.mrb[0].mxu0 %v569
          %v886 = vpop.f32.mrb[0].mxu0
          %v887 = vadd.f32 %v475, %v886
          %v888 = vpop.f32.mrb[0].mxu0
          %889 = vmatprep.mubr.f32.mxu0 0.0
          %890 = vmatmul.mubr.f32.gmra.mrb[0].mxu0 %v572
          %v891 = vpop.f32.mrb[0].mxu0
          %v892 = vadd.f32 %v475, %v891
          %v893 = vpop.f32.mrb[0].mxu0
          %894 = vmatprep.mubr.f32.mxu0 0.0
          %895 = vmatmul.mubr.f32.gmra.mrb[0].mxu0 %v575
          %v896 = vpop.f32.mrb[0].mxu0
          %v897 = vadd.f32 %v475, %v896
          %v898 = vpop.f32.mrb[0].mxu0
          %899 = vmatprep.mubr.f32.mxu0 0.0
          %900 = vmatmul.mubr.f32.gmra.mrb[0].mxu0 %v578
          %v901 = vpop.f32.mrb[0].mxu0
          %v902 = vadd.f32 %v475, %v901
          %v903 = vpop.f32.mrb[0].mxu0
          %904 = vmatprep.mubr.f32.mxu0 0.0
          %905 = vmatmul.mubr.f32.gmra.mrb[0].mxu0 %v581
          %v906 = vpop.f32.mrb[0].mxu0
          %v907 = vadd.f32 %v475, %v906
          %v908 = vpop.f32.mrb[0].mxu0
          %909 = vmatprep.mubr.f32.mxu0 0.0
          %910 = vmatmul.mubr.f32.gmra.mrb[0].mxu0 %v584
          %v911 = vpop.f32.mrb[0].mxu0
          %v912 = vadd.f32 %v475, %v911
          %v913 = vpop.f32.mrb[0].mxu0
          %914 = vmatprep.mubr.f32.mxu0 0.0
          %915 = vmatmul.mubr.f32.gmra.mrb[0].mxu0 %v587
          %v916 = vpop.f32.mrb[0].mxu0
          %v917 = vadd.f32 %v475, %v916
          %v918 = vpop.f32.mrb[0].mxu0
          %919 = vmatprep.mubr.f32.mxu0 0.0
          %920 = vmatmul.mubr.f32.gmra.mrb[0].mxu0 %v590
          %v921 = vpop.f32.mrb[0].mxu0
          %v922 = vadd.f32 %v475, %v921
          %v923 = vpop.f32.mrb[0].mxu0
          %924 = vmatprep.mubr.f32.mxu0 0.0
          %925 = vmatmul.mubr.f32.gmra.mrb[0].mxu0 %v593
          %v926 = vpop.f32.mrb[0].mxu0
          %v927 = vadd.f32 %v475, %v926
          %v928 = vpop.f32.mrb[0].mxu0
          %929 = vmatprep.mubr.f32.mxu0 0.0
          %930 = vmatmul.mubr.f32.gmra.mrb[0].mxu0 %v596
          %v931 = vpop.f32.mrb[0].mxu0
          %v932 = vadd.f32 %v475, %v931
          %v933 = vpop.f32.mrb[0].mxu0
          %934 = vmatprep.mubr.f32.mxu0 0.0
          %935 = vmatmul.mubr.f32.gmra.mrb[0].mxu0 %v599
          %v936 = vpop.f32.mrb[0].mxu0
          %v937 = vadd.f32 %v475, %v936
          %v938 = vpop.f32.mrb[0].mxu0
          %939 = vmatprep.mubr.f32.mxu0 0.0
          %940 = vmatmul.mubr.f32.gmra.mrb[0].mxu0 %v602
          %v941 = vpop.f32.mrb[0].mxu0
          %v942 = vadd.f32 %v475, %v941
          %v943 = vpop.f32.mrb[0].mxu0
          %944 = vmatprep.mubr.f32.mxu0 0.0
          %945 = vmatmul.mubr.f32.gmra.mrb[0].mxu0 %v605
          %v946 = vpop.f32.mrb[0].mxu0
          %v947 = vadd.f32 %v475, %v946
          %v948 = vpop.f32.mrb[0].mxu0
          %949 = vmatprep.mubr.f32.mxu0 0.0
          %950 = vmatmul.mubr.f32.gmra.mrb[0].mxu0 %v608
          %v951 = vpop.f32.mrb[0].mxu0
          %v952 = vadd.f32 %v475, %v951
          %v953 = vpop.f32.mrb[0].mxu0
          %954 = vmatprep.mubr.f32.mxu0 0.0
          %955 = vmatmul.mubr.f32.gmra.mrb[0].mxu0 %v611
          %v956 = vpop.f32.mrb[0].mxu0
          %v957 = vadd.f32 %v475, %v956
          %v958 = vpop.f32.mrb[0].mxu0
          %959 = vmatprep.mubr.f32.mxu0 0.0
          %960 = vmatmul.mubr.f32.gmra.mrb[0].mxu0 %v614
          %v961 = vpop.f32.mrb[0].mxu0
          %v962 = vadd.f32 %v475, %v961
          %v963 = vpop.f32.mrb[0].mxu0
          %964 = vmatprep.mubr.f32.mxu0 0.0
          %965 = vmatmul.mubr.f32.gmra.mrb[0].mxu0 %v617
          %v966 = vpop.f32.mrb[0].mxu0
          %v967 = vadd.f32 %v475, %v966
          %v968 = vpop.f32.mrb[0].mxu0
          %969 = vmatprep.mubr.f32.mxu0 0.0
          %970 = vmatmul.mubr.f32.gmra.mrb[0].mxu0 %v620
          %v971 = vpop.f32.mrb[0].mxu0
          %v972 = vadd.f32 %v475, %v971
          %v973 = vpop.f32.mrb[0].mxu0
          %974 = vmatprep.mubr.f32.mxu0 0.0
          %975 = vmatmul.mubr.f32.gmra.mrb[0].mxu0 %v623
          %v976 = vpop.f32.mrb[0].mxu0
          %v977 = vadd.f32 %v475, %v976
          %v978 = vpop.f32.mrb[0].mxu0
          %979 = vmatprep.mubr.f32.mxu0 0.0
          %980 = vmatmul.mubr.f32.gmra.mrb[0].mxu0 %v626
          %v981 = vpop.f32.mrb[0].mxu0
          %v982 = vadd.f32 %v475, %v981
          %v983 = vpop.f32.mrb[0].mxu0
          %984 = vmatprep.mubr.f32.mxu0 0.0
          %985 = vmatmul.mubr.f32.gmra.mrb[0].mxu0 %v629
          %v986 = vpop.f32.mrb[0].mxu0
          %v987 = vadd.f32 %v475, %v986
          %v988 = vpop.f32.mrb[0].mxu0
          %989 = vmatprep.mubr.f32.mxu0 0.0
          %990 = vmatmul.mubr.f32.gmra.mrb[0].mxu0 %v632
          %v991 = vpop.f32.mrb[0].mxu0
          %v992 = vadd.f32 %v475, %v991
          %v993 = vpop.f32.mrb[0].mxu0
          %994 = vmatprep.mubr.f32.mxu0 0.0
          %995 = vmatmul.mubr.f32.gmra.mrb[0].mxu0 %v635
          %v996 = vpop.f32.mrb[0].mxu0
          %v997 = vadd.f32 %v475, %v996
          %v998 = vpop.f32.mrb[0].mxu0
          %999 = vmatprep.mubr.f32.mxu0 0.0
          %1000 = vmatmul.mubr.f32.gmra.mrb[0].mxu0 %v638
          %v1001 = vpop.f32.mrb[0].mxu0
          %v1002 = vadd.f32 %v475, %v1001
          %v1003 = vpop.f32.mrb[0].mxu0
          %1004 = vmatprep.mubr.f32.mxu0 0.0
          %1005 = vmatmul.mubr.f32.gmra.mrb[0].mxu0 %v641
          %v1006 = vpop.f32.mrb[0].mxu0
          %v1007 = vadd.f32 %v475, %v1006
          %v1008 = vpop.f32.mrb[0].mxu0
          %1009 = vmatprep.mubr.f32.mxu0 0.0
          %1010 = vmatmul.mubr.f32.gmra.mrb[0].mxu0 %v644
          %v1011 = vpop.f32.mrb[0].mxu0
          %v1012 = vadd.f32 %v475, %v1011
          %v1013 = vpop.f32.mrb[0].mxu0
          %1014 = vmatprep.mubr.f32.mxu0 0.0
          %1015 = vmatmul.mubr.f32.gmra.mrb[0].mxu0 %v647
          %v1016 = vpop.f32.mrb[0].mxu0
          %v1017 = vadd.f32 %v475, %v1016
          %v1018 = vpop.f32.mrb[0].mxu0
          %1019 = vmatprep.mubr.f32.mxu0 0.0
          %1020 = vmatmul.mubr.f32.gmra.mrb[0].mxu0 %v650
          %v1021 = vpop.f32.mrb[0].mxu0
          %v1022 = vadd.f32 %v475, %v1021
          %v1023 = vpop.f32.mrb[0].mxu0
          %1024 = vmatprep.mubr.f32.mxu0 0.0
          %1025 = vmatmul.mubr.f32.gmra.mrb[0].mxu0 %v653
          %v1026 = vpop.f32.mrb[0].mxu0
          %v1027 = vadd.f32 %v475, %v1026
          %v1028 = vpop.f32.mrb[0].mxu0
          %1029 = vmatprep.mubr.f32.mxu0 0.0
          %1030 = vmatmul.mubr.f32.gmra.mrb[0].mxu0 %v656
          %v1031 = vpop.f32.mrb[0].mxu0
          %v1032 = vadd.f32 %v475, %v1031
          %v1033 = vpop.f32.mrb[0].mxu0
          %1034 = vmatprep.mubr.f32.mxu0 0.0
          %1035 = vmatmul.mubr.f32.gmra.mrb[0].mxu0 %v659
          %v1036 = vpop.f32.mrb[0].mxu0
          %v1037 = vadd.f32 %v475, %v1036
          %v1038 = vpop.f32.mrb[0].mxu0
          %1039 = vmatprep.mubr.f32.mxu0 0.0
          %1040 = vmatmul.mubr.f32.gmra.mrb[0].mxu0 %v662
          %v1041 = vpop.f32.mrb[0].mxu0
          %v1042 = vadd.f32 %v475, %v1041
          %v1043 = vpop.f32.mrb[0].mxu0
          %1044 = vmatprep.mubr.f32.mxu0 0.0
          %1045 = vmatmul.mubr.f32.gmra.mrb[0].mxu0 %v665
          %v1046 = vpop.f32.mrb[0].mxu0
          %v1047 = vadd.f32 %v475, %v1046
          %v1048 = vpop.f32.mrb[0].mxu0
          %1049 = vmatprep.mubr.f32.mxu0 0.0
          %1050 = vmatmul.mubr.f32.gmra.mrb[0].mxu0 %v668
          %v1051 = vpop.f32.mrb[0].mxu0
          %v1052 = vadd.f32 %v475, %v1051
          %v1053 = vpop.f32.mrb[0].mxu0
          %1054 = vdwg.mxu0
          %v1055 = vld [vmem:[%s6] sm:$0xff]
          %v1056 = vld [vmem:[%s6 + $0x8] sm:$0xff]
          %v1057 = vld [vmem:[%s6 + $0x10] sm:$0xff]
          %v1058 = vld [vmem:[%s6 + $0x18] sm:$0xff]
          %v1059 = vld [vmem:[%s7] sm:$0x1]
          %v1061 = vlaneseq
          %v1062 = vshrl.u32 %v1061, 7
          %v1063 = vsub.s32 0, %v1062
          %v1064 = vrot.slane %v1059, %v1063
          %1066 = vmatprep.subr.mxu0 0.0
          %1067 = vmatpush1.msra.mxu0 %v1055
          %1068 = vmatprep.subr.mxu0 0.0
          %1069 = vmatpush1.msra.mxu0 %v1056
          %1070 = vmatprep.subr.mxu0 0.0
          %1071 = vmatpush1.msra.mxu0 %v1057
          %1072 = vmatprep.subr.mxu0 0.0
          %1073 = vmatpush1.msra.mxu0 %v1058
          %1074 = vmatprep.subr.mxu0 0.0
          %1075 = vmatpush1.msra.mxu0 0.0
          %1076 = vmatprep.subr.mxu0 0.0
          %1077 = vmatpush1.msra.mxu0 0.0
          %1078 = vmatprep.subr.mxu0 0.0
          %1079 = vmatpush1.msra.mxu0 0.0
          %1080 = vmatprep.subr.mxu0 0.0
          %1081 = vmatpush1.msra.mxu0 0.0
          %1082 = vmatprep.subr.mxu0 0.0
          %1083 = vmatpush1.msra.mxu0 0.0
          %1084 = vmatprep.subr.mxu0 0.0
          %1085 = vmatpush1.msra.mxu0 0.0
          %1086 = vmatprep.subr.mxu0 0.0
          %1087 = vmatpush1.msra.mxu0 0.0
          %1088 = vmatprep.subr.mxu0 0.0
          %1089 = vmatpush1.msra.mxu0 0.0
          %1090 = vmatprep.subr.mxu0 0.0
          %1091 = vmatpush1.msra.mxu0 0.0
          %1092 = vmatprep.subr.mxu0 0.0
          %1093 = vmatpush1.msra.mxu0 0.0
          %1094 = vmatprep.subr.mxu0 0.0
          %1095 = vmatpush1.msra.mxu0 0.0
          %1096 = vmatprep.subr.mxu0 0.0
          %1097 = vmatpush1.msra.mxu0 0.0
          %1098 = vmatprep.subr.mxu0 0.0
          %1099 = vmatpush1.msra.mxu0 0.0
          %1100 = vmatprep.subr.mxu0 0.0
          %1101 = vmatpush1.msra.mxu0 0.0
          %1102 = vmatprep.subr.mxu0 0.0
          %1103 = vmatpush1.msra.mxu0 0.0
          %1104 = vmatprep.subr.mxu0 0.0
          %1105 = vmatpush1.msra.mxu0 0.0
          %1106 = vmatprep.subr.mxu0 0.0
          %1107 = vmatpush1.msra.mxu0 0.0
          %1108 = vmatprep.subr.mxu0 0.0
          %1109 = vmatpush1.msra.mxu0 0.0
          %1110 = vmatprep.subr.mxu0 0.0
          %1111 = vmatpush1.msra.mxu0 0.0
          %1112 = vmatprep.subr.mxu0 0.0
          %1113 = vmatpush1.msra.mxu0 0.0
          %1114 = vmatprep.subr.mxu0 0.0
          %1115 = vmatpush1.msra.mxu0 0.0
          %1116 = vmatprep.subr.mxu0 0.0
          %1117 = vmatpush1.msra.mxu0 0.0
          %1118 = vmatprep.subr.mxu0 0.0
          %1119 = vmatpush1.msra.mxu0 0.0
          %1120 = vmatprep.subr.mxu0 0.0
          %1121 = vmatpush1.msra.mxu0 0.0
          %1122 = vmatprep.subr.mxu0 0.0
          %1123 = vmatpush1.msra.mxu0 0.0
          %1124 = vmatprep.subr.mxu0 0.0
          %1125 = vmatpush1.msra.mxu0 0.0
          %1126 = vmatprep.subr.mxu0 0.0
          %1127 = vmatpush1.msra.mxu0 0.0
          %1128 = vmatprep.subr.mxu0 0.0
          %1129 = vmatpush1.msra.mxu0 0.0
          %1130 = vmatprep.mubr.f32.mxu0 0.0
          %1131 = vmatmul.mubr.f32.gmra.mrb[0].mxu0 %v479
          %v1132 = vpop.f32.mrb[0].mxu0
          %v1133 = vadd.f32 %v1064, %v1132
          %v1134 = vpop.f32.mrb[0].mxu0
          %1135 = vmatprep.mubr.f32.mxu0 0.0
          %1136 = vmatmul.mubr.f32.gmra.mrb[0].mxu0 %v482
          %v1137 = vpop.f32.mrb[0].mxu0
          %v1138 = vadd.f32 %v1064, %v1137
          %v1139 = vpop.f32.mrb[0].mxu0
          %1140 = vmatprep.mubr.f32.mxu0 0.0
          %1141 = vmatmul.mubr.f32.gmra.mrb[0].mxu0 %v485
          %v1142 = vpop.f32.mrb[0].mxu0
          %v1143 = vadd.f32 %v1064, %v1142
          %v1144 = vpop.f32.mrb[0].mxu0
          %1145 = vmatprep.mubr.f32.mxu0 0.0
          %1146 = vmatmul.mubr.f32.gmra.mrb[0].mxu0 %v488
          %v1147 = vpop.f32.mrb[0].mxu0
          %v1148 = vadd.f32 %v1064, %v1147
          %v1149 = vpop.f32.mrb[0].mxu0
          %1150 = vmatprep.mubr.f32.mxu0 0.0
          %1151 = vmatmul.mubr.f32.gmra.mrb[0].mxu0 %v491
          %v1152 = vpop.f32.mrb[0].mxu0
          %v1153 = vadd.f32 %v1064, %v1152
          %v1154 = vpop.f32.mrb[0].mxu0
          %1155 = vmatprep.mubr.f32.mxu0 0.0
          %1156 = vmatmul.mubr.f32.gmra.mrb[0].mxu0 %v494
          %v1157 = vpop.f32.mrb[0].mxu0
          %v1158 = vadd.f32 %v1064, %v1157
          %v1159 = vpop.f32.mrb[0].mxu0
          %1160 = vmatprep.mubr.f32.mxu0 0.0
          %1161 = vmatmul.mubr.f32.gmra.mrb[0].mxu0 %v497
          %v1162 = vpop.f32.mrb[0].mxu0
          %v1163 = vadd.f32 %v1064, %v1162
          %v1164 = vpop.f32.mrb[0].mxu0
          %1165 = vmatprep.mubr.f32.mxu0 0.0
          %1166 = vmatmul.mubr.f32.gmra.mrb[0].mxu0 %v500
          %v1167 = vpop.f32.mrb[0].mxu0
          %v1168 = vadd.f32 %v1064, %v1167
          %v1169 = vpop.f32.mrb[0].mxu0
          %1170 = vmatprep.mubr.f32.mxu0 0.0
          %1171 = vmatmul.mubr.f32.gmra.mrb[0].mxu0 %v503
          %v1172 = vpop.f32.mrb[0].mxu0
          %v1173 = vadd.f32 %v1064, %v1172
          %v1174 = vpop.f32.mrb[0].mxu0
          %1175 = vmatprep.mubr.f32.mxu0 0.0
          %1176 = vmatmul.mubr.f32.gmra.mrb[0].mxu0 %v506
          %v1177 = vpop.f32.mrb[0].mxu0
          %v1178 = vadd.f32 %v1064, %v1177
          %v1179 = vpop.f32.mrb[0].mxu0
          %1180 = vmatprep.mubr.f32.mxu0 0.0
          %1181 = vmatmul.mubr.f32.gmra.mrb[0].mxu0 %v509
          %v1182 = vpop.f32.mrb[0].mxu0
          %v1183 = vadd.f32 %v1064, %v1182
          %v1184 = vpop.f32.mrb[0].mxu0
          %1185 = vmatprep.mubr.f32.mxu0 0.0
          %1186 = vmatmul.mubr.f32.gmra.mrb[0].mxu0 %v512
          %v1187 = vpop.f32.mrb[0].mxu0
          %v1188 = vadd.f32 %v1064, %v1187
          %v1189 = vpop.f32.mrb[0].mxu0
          %1190 = vmatprep.mubr.f32.mxu0 0.0
          %1191 = vmatmul.mubr.f32.gmra.mrb[0].mxu0 %v515
          %v1192 = vpop.f32.mrb[0].mxu0
          %v1193 = vadd.f32 %v1064, %v1192
          %v1194 = vpop.f32.mrb[0].mxu0
          %1195 = vmatprep.mubr.f32.mxu0 0.0
          %1196 = vmatmul.mubr.f32.gmra.mrb[0].mxu0 %v518
          %v1197 = vpop.f32.mrb[0].mxu0
          %v1198 = vadd.f32 %v1064, %v1197
          %v1199 = vpop.f32.mrb[0].mxu0
          %1200 = vmatprep.mubr.f32.mxu0 0.0
          %1201 = vmatmul.mubr.f32.gmra.mrb[0].mxu0 %v521
          %v1202 = vpop.f32.mrb[0].mxu0
          %v1203 = vadd.f32 %v1064, %v1202
          %v1204 = vpop.f32.mrb[0].mxu0
          %1205 = vmatprep.mubr.f32.mxu0 0.0
          %1206 = vmatmul.mubr.f32.gmra.mrb[0].mxu0 %v524
          %v1207 = vpop.f32.mrb[0].mxu0
          %v1208 = vadd.f32 %v1064, %v1207
          %v1209 = vpop.f32.mrb[0].mxu0
          %1210 = vmatprep.mubr.f32.mxu0 0.0
          %1211 = vmatmul.mubr.f32.gmra.mrb[0].mxu0 %v527
          %v1212 = vpop.f32.mrb[0].mxu0
          %v1213 = vadd.f32 %v1064, %v1212
          %v1214 = vpop.f32.mrb[0].mxu0
          %1215 = vmatprep.mubr.f32.mxu0 0.0
          %1216 = vmatmul.mubr.f32.gmra.mrb[0].mxu0 %v530
          %v1217 = vpop.f32.mrb[0].mxu0
          %v1218 = vadd.f32 %v1064, %v1217
          %v1219 = vpop.f32.mrb[0].mxu0
          %1220 = vmatprep.mubr.f32.mxu0 0.0
          %1221 = vmatmul.mubr.f32.gmra.mrb[0].mxu0 %v533
          %v1222 = vpop.f32.mrb[0].mxu0
          %v1223 = vadd.f32 %v1064, %v1222
          %v1224 = vpop.f32.mrb[0].mxu0
          %1225 = vmatprep.mubr.f32.mxu0 0.0
          %1226 = vmatmul.mubr.f32.gmra.mrb[0].mxu0 %v536
          %v1227 = vpop.f32.mrb[0].mxu0
          %v1228 = vadd.f32 %v1064, %v1227
          %v1229 = vpop.f32.mrb[0].mxu0
          %1230 = vmatprep.mubr.f32.mxu0 0.0
          %1231 = vmatmul.mubr.f32.gmra.mrb[0].mxu0 %v539
          %v1232 = vpop.f32.mrb[0].mxu0
          %v1233 = vadd.f32 %v1064, %v1232
          %v1234 = vpop.f32.mrb[0].mxu0
          %1235 = vmatprep.mubr.f32.mxu0 0.0
          %1236 = vmatmul.mubr.f32.gmra.mrb[0].mxu0 %v542
          %v1237 = vpop.f32.mrb[0].mxu0
          %v1238 = vadd.f32 %v1064, %v1237
          %v1239 = vpop.f32.mrb[0].mxu0
          %1240 = vmatprep.mubr.f32.mxu0 0.0
          %1241 = vmatmul.mubr.f32.gmra.mrb[0].mxu0 %v545
          %v1242 = vpop.f32.mrb[0].mxu0
          %v1243 = vadd.f32 %v1064, %v1242
          %v1244 = vpop.f32.mrb[0].mxu0
          %1245 = vmatprep.mubr.f32.mxu0 0.0
          %1246 = vmatmul.mubr.f32.gmra.mrb[0].mxu0 %v548
          %v1247 = vpop.f32.mrb[0].mxu0
          %v1248 = vadd.f32 %v1064, %v1247
          %v1249 = vpop.f32.mrb[0].mxu0
          %1250 = vmatprep.mubr.f32.mxu0 0.0
          %1251 = vmatmul.mubr.f32.gmra.mrb[0].mxu0 %v551
          %v1252 = vpop.f32.mrb[0].mxu0
          %v1253 = vadd.f32 %v1064, %v1252
          %v1254 = vpop.f32.mrb[0].mxu0
          %1255 = vmatprep.mubr.f32.mxu0 0.0
          %1256 = vmatmul.mubr.f32.gmra.mrb[0].mxu0 %v554
          %v1257 = vpop.f32.mrb[0].mxu0
          %v1258 = vadd.f32 %v1064, %v1257
          %v1259 = vpop.f32.mrb[0].mxu0
          %1260 = vmatprep.mubr.f32.mxu0 0.0
          %1261 = vmatmul.mubr.f32.gmra.mrb[0].mxu0 %v557
          %v1262 = vpop.f32.mrb[0].mxu0
          %v1263 = vadd.f32 %v1064, %v1262
          %v1264 = vpop.f32.mrb[0].mxu0
          %1265 = vmatprep.mubr.f32.mxu0 0.0
          %1266 = vmatmul.mubr.f32.gmra.mrb[0].mxu0 %v560
          %v1267 = vpop.f32.mrb[0].mxu0
          %v1268 = vadd.f32 %v1064, %v1267
          %v1269 = vpop.f32.mrb[0].mxu0
          %1270 = vmatprep.mubr.f32.mxu0 0.0
          %1271 = vmatmul.mubr.f32.gmra.mrb[0].mxu0 %v563
          %v1272 = vpop.f32.mrb[0].mxu0
          %v1273 = vadd.f32 %v1064, %v1272
          %v1274 = vpop.f32.mrb[0].mxu0
          %1275 = vmatprep.mubr.f32.mxu0 0.0
          %1276 = vmatmul.mubr.f32.gmra.mrb[0].mxu0 %v566
          %v1277 = vpop.f32.mrb[0].mxu0
          %v1278 = vadd.f32 %v1064, %v1277
          %v1279 = vpop.f32.mrb[0].mxu0
          %1280 = vmatprep.mubr.f32.mxu0 0.0
          %1281 = vmatmul.mubr.f32.gmra.mrb[0].mxu0 %v569
          %v1282 = vpop.f32.mrb[0].mxu0
          %v1283 = vadd.f32 %v1064, %v1282
          %v1284 = vpop.f32.mrb[0].mxu0
          %1285 = vmatprep.mubr.f32.mxu0 0.0
          %1286 = vmatmul.mubr.f32.gmra.mrb[0].mxu0 %v572
          %v1287 = vpop.f32.mrb[0].mxu0
          %v1288 = vadd.f32 %v1064, %v1287
          %v1289 = vpop.f32.mrb[0].mxu0
          %1290 = vmatprep.mubr.f32.mxu0 0.0
          %1291 = vmatmul.mubr.f32.gmra.mrb[0].mxu0 %v575
          %v1292 = vpop.f32.mrb[0].mxu0
          %v1293 = vadd.f32 %v1064, %v1292
          %v1294 = vpop.f32.mrb[0].mxu0
          %1295 = vmatprep.mubr.f32.mxu0 0.0
          %1296 = vmatmul.mubr.f32.gmra.mrb[0].mxu0 %v578
          %v1297 = vpop.f32.mrb[0].mxu0
          %v1298 = vadd.f32 %v1064, %v1297
          %v1299 = vpop.f32.mrb[0].mxu0
          %1300 = vmatprep.mubr.f32.mxu0 0.0
          %1301 = vmatmul.mubr.f32.gmra.mrb[0].mxu0 %v581
          %v1302 = vpop.f32.mrb[0].mxu0
          %v1303 = vadd.f32 %v1064, %v1302
          %v1304 = vpop.f32.mrb[0].mxu0
          %1305 = vmatprep.mubr.f32.mxu0 0.0
          %1306 = vmatmul.mubr.f32.gmra.mrb[0].mxu0 %v584
          %v1307 = vpop.f32.mrb[0].mxu0
          %v1308 = vadd.f32 %v1064, %v1307
          %v1309 = vpop.f32.mrb[0].mxu0
          %1310 = vmatprep.mubr.f32.mxu0 0.0
          %1311 = vmatmul.mubr.f32.gmra.mrb[0].mxu0 %v587
          %v1312 = vpop.f32.mrb[0].mxu0
          %v1313 = vadd.f32 %v1064, %v1312
          %v1314 = vpop.f32.mrb[0].mxu0
          %1315 = vmatprep.mubr.f32.mxu0 0.0
          %1316 = vmatmul.mubr.f32.gmra.mrb[0].mxu0 %v590
          %v1317 = vpop.f32.mrb[0].mxu0
          %v1318 = vadd.f32 %v1064, %v1317
          %v1319 = vpop.f32.mrb[0].mxu0
          %1320 = vmatprep.mubr.f32.mxu0 0.0
          %1321 = vmatmul.mubr.f32.gmra.mrb[0].mxu0 %v593
          %v1322 = vpop.f32.mrb[0].mxu0
          %v1323 = vadd.f32 %v1064, %v1322
          %v1324 = vpop.f32.mrb[0].mxu0
          %1325 = vmatprep.mubr.f32.mxu0 0.0
          %1326 = vmatmul.mubr.f32.gmra.mrb[0].mxu0 %v596
          %v1327 = vpop.f32.mrb[0].mxu0
          %v1328 = vadd.f32 %v1064, %v1327
          %v1329 = vpop.f32.mrb[0].mxu0
          %1330 = vmatprep.mubr.f32.mxu0 0.0
          %1331 = vmatmul.mubr.f32.gmra.mrb[0].mxu0 %v599
          %v1332 = vpop.f32.mrb[0].mxu0
          %v1333 = vadd.f32 %v1064, %v1332
          %v1334 = vpop.f32.mrb[0].mxu0
          %1335 = vmatprep.mubr.f32.mxu0 0.0
          %1336 = vmatmul.mubr.f32.gmra.mrb[0].mxu0 %v602
          %v1337 = vpop.f32.mrb[0].mxu0
          %v1338 = vadd.f32 %v1064, %v1337
          %v1339 = vpop.f32.mrb[0].mxu0
          %1340 = vmatprep.mubr.f32.mxu0 0.0
          %1341 = vmatmul.mubr.f32.gmra.mrb[0].mxu0 %v605
          %v1342 = vpop.f32.mrb[0].mxu0
          %v1343 = vadd.f32 %v1064, %v1342
          %v1344 = vpop.f32.mrb[0].mxu0
          %1345 = vmatprep.mubr.f32.mxu0 0.0
          %1346 = vmatmul.mubr.f32.gmra.mrb[0].mxu0 %v608
          %v1347 = vpop.f32.mrb[0].mxu0
          %v1348 = vadd.f32 %v1064, %v1347
          %v1349 = vpop.f32.mrb[0].mxu0
          %1350 = vmatprep.mubr.f32.mxu0 0.0
          %1351 = vmatmul.mubr.f32.gmra.mrb[0].mxu0 %v611
          %v1352 = vpop.f32.mrb[0].mxu0
          %v1353 = vadd.f32 %v1064, %v1352
          %v1354 = vpop.f32.mrb[0].mxu0
          %1355 = vmatprep.mubr.f32.mxu0 0.0
          %1356 = vmatmul.mubr.f32.gmra.mrb[0].mxu0 %v614
          %v1357 = vpop.f32.mrb[0].mxu0
          %v1358 = vadd.f32 %v1064, %v1357
          %v1359 = vpop.f32.mrb[0].mxu0
          %1360 = vmatprep.mubr.f32.mxu0 0.0
          %1361 = vmatmul.mubr.f32.gmra.mrb[0].mxu0 %v617
          %v1362 = vpop.f32.mrb[0].mxu0
          %v1363 = vadd.f32 %v1064, %v1362
          %v1364 = vpop.f32.mrb[0].mxu0
          %1365 = vmatprep.mubr.f32.mxu0 0.0
          %1366 = vmatmul.mubr.f32.gmra.mrb[0].mxu0 %v620
          %v1367 = vpop.f32.mrb[0].mxu0
          %v1368 = vadd.f32 %v1064, %v1367
          %v1369 = vpop.f32.mrb[0].mxu0
          %1370 = vmatprep.mubr.f32.mxu0 0.0
          %1371 = vmatmul.mubr.f32.gmra.mrb[0].mxu0 %v623
          %v1372 = vpop.f32.mrb[0].mxu0
          %v1373 = vadd.f32 %v1064, %v1372
          %v1374 = vpop.f32.mrb[0].mxu0
          %1375 = vmatprep.mubr.f32.mxu0 0.0
          %1376 = vmatmul.mubr.f32.gmra.mrb[0].mxu0 %v626
          %v1377 = vpop.f32.mrb[0].mxu0
          %v1378 = vadd.f32 %v1064, %v1377
          %v1379 = vpop.f32.mrb[0].mxu0
          %1380 = vmatprep.mubr.f32.mxu0 0.0
          %1381 = vmatmul.mubr.f32.gmra.mrb[0].mxu0 %v629
          %v1382 = vpop.f32.mrb[0].mxu0
          %v1383 = vadd.f32 %v1064, %v1382
          %v1384 = vpop.f32.mrb[0].mxu0
          %1385 = vmatprep.mubr.f32.mxu0 0.0
          %1386 = vmatmul.mubr.f32.gmra.mrb[0].mxu0 %v632
          %v1387 = vpop.f32.mrb[0].mxu0
          %v1388 = vadd.f32 %v1064, %v1387
          %v1389 = vpop.f32.mrb[0].mxu0
          %1390 = vmatprep.mubr.f32.mxu0 0.0
          %1391 = vmatmul.mubr.f32.gmra.mrb[0].mxu0 %v635
          %v1392 = vpop.f32.mrb[0].mxu0
          %v1393 = vadd.f32 %v1064, %v1392
          %v1394 = vpop.f32.mrb[0].mxu0
          %1395 = vmatprep.mubr.f32.mxu0 0.0
          %1396 = vmatmul.mubr.f32.gmra.mrb[0].mxu0 %v638
          %v1397 = vpop.f32.mrb[0].mxu0
          %v1398 = vadd.f32 %v1064, %v1397
          %v1399 = vpop.f32.mrb[0].mxu0
          %1400 = vmatprep.mubr.f32.mxu0 0.0
          %1401 = vmatmul.mubr.f32.gmra.mrb[0].mxu0 %v641
          %v1402 = vpop.f32.mrb[0].mxu0
          %v1403 = vadd.f32 %v1064, %v1402
          %v1404 = vpop.f32.mrb[0].mxu0
          %1405 = vmatprep.mubr.f32.mxu0 0.0
          %1406 = vmatmul.mubr.f32.gmra.mrb[0].mxu0 %v644
          %v1407 = vpop.f32.mrb[0].mxu0
          %v1408 = vadd.f32 %v1064, %v1407
          %v1409 = vpop.f32.mrb[0].mxu0
          %1410 = vmatprep.mubr.f32.mxu0 0.0
          %1411 = vmatmul.mubr.f32.gmra.mrb[0].mxu0 %v647
          %v1412 = vpop.f32.mrb[0].mxu0
          %v1413 = vadd.f32 %v1064, %v1412
          %v1414 = vpop.f32.mrb[0].mxu0
          %1415 = vmatprep.mubr.f32.mxu0 0.0
          %1416 = vmatmul.mubr.f32.gmra.mrb[0].mxu0 %v650
          %v1417 = vpop.f32.mrb[0].mxu0
          %v1418 = vadd.f32 %v1064, %v1417
          %v1419 = vpop.f32.mrb[0].mxu0
          %1420 = vmatprep.mubr.f32.mxu0 0.0
          %1421 = vmatmul.mubr.f32.gmra.mrb[0].mxu0 %v653
          %v1422 = vpop.f32.mrb[0].mxu0
          %v1423 = vadd.f32 %v1064, %v1422
          %v1424 = vpop.f32.mrb[0].mxu0
          %1425 = vmatprep.mubr.f32.mxu0 0.0
          %1426 = vmatmul.mubr.f32.gmra.mrb[0].mxu0 %v656
          %v1427 = vpop.f32.mrb[0].mxu0
          %v1428 = vadd.f32 %v1064, %v1427
          %v1429 = vpop.f32.mrb[0].mxu0
          %1430 = vmatprep.mubr.f32.mxu0 0.0
          %1431 = vmatmul.mubr.f32.gmra.mrb[0].mxu0 %v659
          %v1432 = vpop.f32.mrb[0].mxu0
          %v1433 = vadd.f32 %v1064, %v1432
          %v1434 = vpop.f32.mrb[0].mxu0
          %1435 = vmatprep.mubr.f32.mxu0 0.0
          %1436 = vmatmul.mubr.f32.gmra.mrb[0].mxu0 %v662
          %v1437 = vpop.f32.mrb[0].mxu0
          %v1438 = vadd.f32 %v1064, %v1437
          %v1439 = vpop.f32.mrb[0].mxu0
          %1440 = vmatprep.mubr.f32.mxu0 0.0
          %1441 = vmatmul.mubr.f32.gmra.mrb[0].mxu0 %v665
          %v1442 = vpop.f32.mrb[0].mxu0
          %v1443 = vadd.f32 %v1064, %v1442
          %v1444 = vpop.f32.mrb[0].mxu0
          %1445 = vmatprep.mubr.f32.mxu0 0.0
          %1446 = vmatmul.mubr.f32.gmra.mrb[0].mxu0 %v668
          %v1447 = vpop.f32.mrb[0].mxu0
          %v1448 = vadd.f32 %v1064, %v1447
          %v1449 = vpop.f32.mrb[0].mxu0
          %1450 = vdwg.mxu0
          %1451 = vst.msk [vmem:[#allocation2] sm:$0xff] %vm477, %v737
          %1452 = vst.msk [vmem:[#allocation2 + $0x8] sm:$0xff] %vm477, %v742
          %1453 = vst.msk [vmem:[#allocation2 + $0x10] sm:$0xff] %vm477, %v747
          %1454 = vst.msk [vmem:[#allocation2 + $0x18] sm:$0xff] %vm477, %v752
          %1455 = vst.msk [vmem:[#allocation2 + $0x20] sm:$0xff] %vm477, %v757
          %1456 = vst.msk [vmem:[#allocation2 + $0x28] sm:$0xff] %vm477, %v762
          %1457 = vst.msk [vmem:[#allocation2 + $0x30] sm:$0xff] %vm477, %v767
          %1458 = vst.msk [vmem:[#allocation2 + $0x38] sm:$0xff] %vm477, %v772
          %1459 = vst.msk [vmem:[#allocation2 + $0x40] sm:$0xff] %vm477, %v777
          %1460 = vst.msk [vmem:[#allocation2 + $0x48] sm:$0xff] %vm477, %v782
          %1461 = vst.msk [vmem:[#allocation2 + $0x50] sm:$0xff] %vm477, %v787
          %1462 = vst.msk [vmem:[#allocation2 + $0x58] sm:$0xff] %vm477, %v792
          %1463 = vst.msk [vmem:[#allocation2 + $0x60] sm:$0xff] %vm477, %v797
          %1464 = vst.msk [vmem:[#allocation2 + $0x68] sm:$0xff] %vm477, %v802
          %1465 = vst.msk [vmem:[#allocation2 + $0x70] sm:$0xff] %vm477, %v807
          %1466 = vst.msk [vmem:[#allocation2 + $0x78] sm:$0xff] %vm477, %v812
          %1467 = vst.msk [vmem:[#allocation2 + $0x80] sm:$0xff] %vm477, %v817
          %1468 = vst.msk [vmem:[#allocation2 + $0x88] sm:$0xff] %vm477, %v822
          %1469 = vst.msk [vmem:[#allocation2 + $0x90] sm:$0xff] %vm477, %v827
          %1470 = vst.msk [vmem:[#allocation2 + $0x98] sm:$0xff] %vm477, %v832
          %1471 = vst.msk [vmem:[#allocation2 + $0xa0] sm:$0xff] %vm477, %v837
          %1472 = vst.msk [vmem:[#allocation2 + $0xa8] sm:$0xff] %vm477, %v842
          %1473 = vst.msk [vmem:[#allocation2 + $0xb0] sm:$0xff] %vm477, %v847
          %1474 = vst.msk [vmem:[#allocation2 + $0xb8] sm:$0xff] %vm477, %v852
          %1475 = vst.msk [vmem:[#allocation2 + $0xc0] sm:$0xff] %vm477, %v857
          %1476 = vst.msk [vmem:[#allocation2 + $0xc8] sm:$0xff] %vm477, %v862
          %1477 = vst.msk [vmem:[#allocation2 + $0xd0] sm:$0xff] %vm477, %v867
          %1478 = vst.msk [vmem:[#allocation2 + $0xd8] sm:$0xff] %vm477, %v872
          %1479 = vst.msk [vmem:[#allocation2 + $0xe0] sm:$0xff] %vm477, %v877
          %1480 = vst.msk [vmem:[#allocation2 + $0xe8] sm:$0xff] %vm477, %v882
          %1481 = vst.msk [vmem:[#allocation2 + $0xf0] sm:$0xff] %vm477, %v887
          %1482 = vst.msk [vmem:[#allocation2 + $0xf8] sm:$0xff] %vm477, %v892
          %1483 = vst.msk [vmem:[#allocation2 + $0x100] sm:$0xff] %vm477, %v897
          %1484 = vst.msk [vmem:[#allocation2 + $0x108] sm:$0xff] %vm477, %v902
          %1485 = vst.msk [vmem:[#allocation2 + $0x110] sm:$0xff] %vm477, %v907
          %1486 = vst.msk [vmem:[#allocation2 + $0x118] sm:$0xff] %vm477, %v912
          %1487 = vst.msk [vmem:[#allocation2 + $0x120] sm:$0xff] %vm477, %v917
          %1488 = vst.msk [vmem:[#allocation2 + $0x128] sm:$0xff] %vm477, %v922
          %1489 = vst.msk [vmem:[#allocation2 + $0x130] sm:$0xff] %vm477, %v927
          %1490 = vst.msk [vmem:[#allocation2 + $0x138] sm:$0xff] %vm477, %v932
          %1491 = vst.msk [vmem:[#allocation2 + $0x140] sm:$0xff] %vm477, %v937
          %1492 = vst.msk [vmem:[#allocation2 + $0x148] sm:$0xff] %vm477, %v942
          %1493 = vst.msk [vmem:[#allocation2 + $0x150] sm:$0xff] %vm477, %v947
          %1494 = vst.msk [vmem:[#allocation2 + $0x158] sm:$0xff] %vm477, %v952
          %1495 = vst.msk [vmem:[#allocation2 + $0x160] sm:$0xff] %vm477, %v957
          %1496 = vst.msk [vmem:[#allocation2 + $0x168] sm:$0xff] %vm477, %v962
          %1497 = vst.msk [vmem:[#allocation2 + $0x170] sm:$0xff] %vm477, %v967
          %1498 = vst.msk [vmem:[#allocation2 + $0x178] sm:$0xff] %vm477, %v972
          %1499 = vst.msk [vmem:[#allocation2 + $0x180] sm:$0xff] %vm477, %v977
          %1500 = vst.msk [vmem:[#allocation2 + $0x188] sm:$0xff] %vm477, %v982
          %1501 = vst.msk [vmem:[#allocation2 + $0x190] sm:$0xff] %vm477, %v987
          %1502 = vst.msk [vmem:[#allocation2 + $0x198] sm:$0xff] %vm477, %v992
          %1503 = vst.msk [vmem:[#allocation2 + $0x1a0] sm:$0xff] %vm477, %v997
          %1504 = vst.msk [vmem:[#allocation2 + $0x1a8] sm:$0xff] %vm477, %v1002
          %1505 = vst.msk [vmem:[#allocation2 + $0x1b0] sm:$0xff] %vm477, %v1007
          %1506 = vst.msk [vmem:[#allocation2 + $0x1b8] sm:$0xff] %vm477, %v1012
          %1507 = vst.msk [vmem:[#allocation2 + $0x1c0] sm:$0xff] %vm477, %v1017
          %1508 = vst.msk [vmem:[#allocation2 + $0x1c8] sm:$0xff] %vm477, %v1022
          %1509 = vst.msk [vmem:[#allocation2 + $0x1d0] sm:$0xff] %vm477, %v1027
          %1510 = vst.msk [vmem:[#allocation2 + $0x1d8] sm:$0xff] %vm477, %v1032
          %1511 = vst.msk [vmem:[#allocation2 + $0x1e0] sm:$0xff] %vm477, %v1037
          %1512 = vst.msk [vmem:[#allocation2 + $0x1e8] sm:$0xff] %vm477, %v1042
          %1513 = vst.msk [vmem:[#allocation2 + $0x1f0] sm:$0xff] %vm477, %v1047
          %1514 = vst.msk [vmem:[#allocation2 + $0x1f8] sm:$0xff] %vm477, %v1052
          %1515 = vst.msk [vmem:[#allocation3] sm:$0xff] %vm477, %v1133
          %1516 = vst.msk [vmem:[#allocation3 + $0x8] sm:$0xff] %vm477, %v1138
          %1517 = vst.msk [vmem:[#allocation3 + $0x10] sm:$0xff] %vm477, %v1143
          %1518 = vst.msk [vmem:[#allocation3 + $0x18] sm:$0xff] %vm477, %v1148
          %1519 = vst.msk [vmem:[#allocation3 + $0x20] sm:$0xff] %vm477, %v1153
          %1520 = vst.msk [vmem:[#allocation3 + $0x28] sm:$0xff] %vm477, %v1158
          %1521 = vst.msk [vmem:[#allocation3 + $0x30] sm:$0xff] %vm477, %v1163
          %1522 = vst.msk [vmem:[#allocation3 + $0x38] sm:$0xff] %vm477, %v1168
          %1523 = vst.msk [vmem:[#allocation3 + $0x40] sm:$0xff] %vm477, %v1173
          %1524 = vst.msk [vmem:[#allocation3 + $0x48] sm:$0xff] %vm477, %v1178
          %1525 = vst.msk [vmem:[#allocation3 + $0x50] sm:$0xff] %vm477, %v1183
          %1526 = vst.msk [vmem:[#allocation3 + $0x58] sm:$0xff] %vm477, %v1188
          %1527 = vst.msk [vmem:[#allocation3 + $0x60] sm:$0xff] %vm477, %v1193
          %1528 = vst.msk [vmem:[#allocation3 + $0x68] sm:$0xff] %vm477, %v1198
          %1529 = vst.msk [vmem:[#allocation3 + $0x70] sm:$0xff] %vm477, %v1203
          %1530 = vst.msk [vmem:[#allocation3 + $0x78] sm:$0xff] %vm477, %v1208
          %1531 = vst.msk [vmem:[#allocation3 + $0x80] sm:$0xff] %vm477, %v1213
          %1532 = vst.msk [vmem:[#allocation3 + $0x88] sm:$0xff] %vm477, %v1218
          %1533 = vst.msk [vmem:[#allocation3 + $0x90] sm:$0xff] %vm477, %v1223
          %1534 = vst.msk [vmem:[#allocation3 + $0x98] sm:$0xff] %vm477, %v1228
          %1535 = vst.msk [vmem:[#allocation3 + $0xa0] sm:$0xff] %vm477, %v1233
          %1536 = vst.msk [vmem:[#allocation3 + $0xa8] sm:$0xff] %vm477, %v1238
          %1537 = vst.msk [vmem:[#allocation3 + $0xb0] sm:$0xff] %vm477, %v1243
          %1538 = vst.msk [vmem:[#allocation3 + $0xb8] sm:$0xff] %vm477, %v1248
          %1539 = vst.msk [vmem:[#allocation3 + $0xc0] sm:$0xff] %vm477, %v1253
          %1540 = vst.msk [vmem:[#allocation3 + $0xc8] sm:$0xff] %vm477, %v1258
          %1541 = vst.msk [vmem:[#allocation3 + $0xd0] sm:$0xff] %vm477, %v1263
          %1542 = vst.msk [vmem:[#allocation3 + $0xd8] sm:$0xff] %vm477, %v1268
          %1543 = vst.msk [vmem:[#allocation3 + $0xe0] sm:$0xff] %vm477, %v1273
          %1544 = vst.msk [vmem:[#allocation3 + $0xe8] sm:$0xff] %vm477, %v1278
          %1545 = vst.msk [vmem:[#allocation3 + $0xf0] sm:$0xff] %vm477, %v1283
          %1546 = vst.msk [vmem:[#allocation3 + $0xf8] sm:$0xff] %vm477, %v1288
          %1547 = vst.msk [vmem:[#allocation3 + $0x100] sm:$0xff] %vm477, %v1293
          %1548 = vst.msk [vmem:[#allocation3 + $0x108] sm:$0xff] %vm477, %v1298
          %1549 = vst.msk [vmem:[#allocation3 + $0x110] sm:$0xff] %vm477, %v1303
          %1550 = vst.msk [vmem:[#allocation3 + $0x118] sm:$0xff] %vm477, %v1308
          %1551 = vst.msk [vmem:[#allocation3 + $0x120] sm:$0xff] %vm477, %v1313
          %1552 = vst.msk [vmem:[#allocation3 + $0x128] sm:$0xff] %vm477, %v1318
          %1553 = vst.msk [vmem:[#allocation3 + $0x130] sm:$0xff] %vm477, %v1323
          %1554 = vst.msk [vmem:[#allocation3 + $0x138] sm:$0xff] %vm477, %v1328
          %1555 = vst.msk [vmem:[#allocation3 + $0x140] sm:$0xff] %vm477, %v1333
          %1556 = vst.msk [vmem:[#allocation3 + $0x148] sm:$0xff] %vm477, %v1338
          %1557 = vst.msk [vmem:[#allocation3 + $0x150] sm:$0xff] %vm477, %v1343
          %1558 = vst.msk [vmem:[#allocation3 + $0x158] sm:$0xff] %vm477, %v1348
          %1559 = vst.msk [vmem:[#allocation3 + $0x160] sm:$0xff] %vm477, %v1353
          %1560 = vst.msk [vmem:[#allocation3 + $0x168] sm:$0xff] %vm477, %v1358
          %1561 = vst.msk [vmem:[#allocation3 + $0x170] sm:$0xff] %vm477, %v1363
          %1562 = vst.msk [vmem:[#allocation3 + $0x178] sm:$0xff] %vm477, %v1368
          %1563 = vst.msk [vmem:[#allocation3 + $0x180] sm:$0xff] %vm477, %v1373
          %1564 = vst.msk [vmem:[#allocation3 + $0x188] sm:$0xff] %vm477, %v1378
          %1565 = vst.msk [vmem:[#allocation3 + $0x190] sm:$0xff] %vm477, %v1383
          %1566 = vst.msk [vmem:[#allocation3 + $0x198] sm:$0xff] %vm477, %v1388
          %1567 = vst.msk [vmem:[#allocation3 + $0x1a0] sm:$0xff] %vm477, %v1393
          %1568 = vst.msk [vmem:[#allocation3 + $0x1a8] sm:$0xff] %vm477, %v1398
          %1569 = vst.msk [vmem:[#allocation3 + $0x1b0] sm:$0xff] %vm477, %v1403
          %1570 = vst.msk [vmem:[#allocation3 + $0x1b8] sm:$0xff] %vm477, %v1408
          %1571 = vst.msk [vmem:[#allocation3 + $0x1c0] sm:$0xff] %vm477, %v1413
          %1572 = vst.msk [vmem:[#allocation3 + $0x1c8] sm:$0xff] %vm477, %v1418
          %1573 = vst.msk [vmem:[#allocation3 + $0x1d0] sm:$0xff] %vm477, %v1423
          %1574 = vst.msk [vmem:[#allocation3 + $0x1d8] sm:$0xff] %vm477, %v1428
          %1575 = vst.msk [vmem:[#allocation3 + $0x1e0] sm:$0xff] %vm477, %v1433
          %1576 = vst.msk [vmem:[#allocation3 + $0x1e8] sm:$0xff] %vm477, %v1438
          %1577 = vst.msk [vmem:[#allocation3 + $0x1f0] sm:$0xff] %vm477, %v1443
          %1578 = vst.msk [vmem:[#allocation3 + $0x1f8] sm:$0xff] %vm477, %v1448
        $region56: #{tpu_custom_call.1} parent=51 // pred_fallthru
          _
        %v1579 = vld [vmem:[%s387] sm:$0xff]
        %v1580 = vld [vmem:[%s387 + $0x8] sm:$0xff]
        %v1581 = vld [vmem:[%s387 + $0x10] sm:$0xff]
        %v1582 = vld [vmem:[%s387 + $0x18] sm:$0xff]
        %v1583 = vld [vmem:[%s2] sm:$0xff]
        %v1584 = vld [vmem:[%s2 + $0x8] sm:$0xff]
        %v1585 = vld [vmem:[%s2 + $0x10] sm:$0xff]
        %v1586 = vld [vmem:[%s2 + $0x18] sm:$0xff]
        %v1587 = vld [vmem:[%s3] sm:$0x1]
        %v1589 = vlaneseq
        %v1590 = vshrl.u32 %v1589, 7
        %v1591 = vsub.s32 0, %v1590
        %v1592 = vrot.slane %v1587, %v1591
        %vm1594 = vcmask 261120
        %v1596 = vsel %vm1594, %v1579, 0
        %v1599 = vsel %vm1594, %v1580, 0
        %v1602 = vsel %vm1594, %v1581, 0
        %v1605 = vsel %vm1594, %v1582, 0
        %1607 = vmatprep.subr.mxu0 0.0
        %1608 = vmatpush1.msra.mxu0 %v1583
        %1609 = vmatprep.subr.mxu0 0.0
        %1610 = vmatpush1.msra.mxu0 %v1584
        %1611 = vmatprep.subr.mxu0 0.0
        %1612 = vmatpush1.msra.mxu0 %v1585
        %1613 = vmatprep.subr.mxu0 0.0
        %1614 = vmatpush1.msra.mxu0 %v1586
        %1615 = vmatprep.subr.mxu0 0.0
        %1616 = vmatpush1.msra.mxu0 0.0
        %1617 = vmatprep.subr.mxu0 0.0
        %1618 = vmatpush1.msra.mxu0 0.0
        %1619 = vmatprep.subr.mxu0 0.0
        %1620 = vmatpush1.msra.mxu0 0.0
        %1621 = vmatprep.subr.mxu0 0.0
        %1622 = vmatpush1.msra.mxu0 0.0
        %1623 = vmatprep.subr.mxu0 0.0
        %1624 = vmatpush1.msra.mxu0 0.0
        %1625 = vmatprep.subr.mxu0 0.0
        %1626 = vmatpush1.msra.mxu0 0.0
        %1627 = vmatprep.subr.mxu0 0.0
        %1628 = vmatpush1.msra.mxu0 0.0
        %1629 = vmatprep.subr.mxu0 0.0
        %1630 = vmatpush1.msra.mxu0 0.0
        %1631 = vmatprep.subr.mxu0 0.0
        %1632 = vmatpush1.msra.mxu0 0.0
        %1633 = vmatprep.subr.mxu0 0.0
        %1634 = vmatpush1.msra.mxu0 0.0
        %1635 = vmatprep.subr.mxu0 0.0
        %1636 = vmatpush1.msra.mxu0 0.0
        %1637 = vmatprep.subr.mxu0 0.0
        %1638 = vmatpush1.msra.mxu0 0.0
        %1639 = vmatprep.subr.mxu0 0.0
        %1640 = vmatpush1.msra.mxu0 0.0
        %1641 = vmatprep.subr.mxu0 0.0
        %1642 = vmatpush1.msra.mxu0 0.0
        %1643 = vmatprep.subr.mxu0 0.0
        %1644 = vmatpush1.msra.mxu0 0.0
        %1645 = vmatprep.subr.mxu0 0.0
        %1646 = vmatpush1.msra.mxu0 0.0
        %1647 = vmatprep.subr.mxu0 0.0
        %1648 = vmatpush1.msra.mxu0 0.0
        %1649 = vmatprep.subr.mxu0 0.0
        %1650 = vmatpush1.msra.mxu0 0.0
        %1651 = vmatprep.subr.mxu0 0.0
        %1652 = vmatpush1.msra.mxu0 0.0
        %1653 = vmatprep.subr.mxu0 0.0
        %1654 = vmatpush1.msra.mxu0 0.0
        %1655 = vmatprep.subr.mxu0 0.0
        %1656 = vmatpush1.msra.mxu0 0.0
        %1657 = vmatprep.subr.mxu0 0.0
        %1658 = vmatpush1.msra.mxu0 0.0
        %1659 = vmatprep.subr.mxu0 0.0
        %1660 = vmatpush1.msra.mxu0 0.0
        %1661 = vmatprep.subr.mxu0 0.0
        %1662 = vmatpush1.msra.mxu0 0.0
        %1663 = vmatprep.subr.mxu0 0.0
        %1664 = vmatpush1.msra.mxu0 0.0
        %1665 = vmatprep.subr.mxu0 0.0
        %1666 = vmatpush1.msra.mxu0 0.0
        %1667 = vmatprep.subr.mxu0 0.0
        %1668 = vmatpush1.msra.mxu0 0.0
        %1669 = vmatprep.subr.mxu0 0.0
        %1670 = vmatpush1.msra.mxu0 0.0
        %1671 = vmatprep.mubr.f32.mxu0 0.0
        %1672 = vmatmul.mubr.f32.gmra.mrb[0].mxu0 %v1596
        %v1673 = vpop.f32.mrb[0].mxu0
        %v1674 = vadd.f32 %v1592, %v1673
        %v1675 = vpop.f32.mrb[0].mxu0
        %1676 = vmatprep.mubr.f32.mxu0 0.0
        %1677 = vmatmul.mubr.f32.gmra.mrb[0].mxu0 %v1599
        %v1678 = vpop.f32.mrb[0].mxu0
        %v1679 = vadd.f32 %v1592, %v1678
        %v1680 = vpop.f32.mrb[0].mxu0
        %1681 = vmatprep.mubr.f32.mxu0 0.0
        %1682 = vmatmul.mubr.f32.gmra.mrb[0].mxu0 %v1602
        %v1683 = vpop.f32.mrb[0].mxu0
        %v1684 = vadd.f32 %v1592, %v1683
        %v1685 = vpop.f32.mrb[0].mxu0
        %1686 = vmatprep.mubr.f32.mxu0 0.0
        %1687 = vmatmul.mubr.f32.gmra.mrb[0].mxu0 %v1605
        %v1688 = vpop.f32.mrb[0].mxu0
        %v1689 = vadd.f32 %v1592, %v1688
        %v1690 = vpop.f32.mrb[0].mxu0
        %1691 = vdwg.mxu0
        %v1692 = vld [vmem:[#allocation2] sm:$0xff]
        %v1693 = vld [vmem:[#allocation2 + $0x8] sm:$0xff]
        %v1694 = vld [vmem:[#allocation2 + $0x10] sm:$0xff]
        %v1695 = vld [vmem:[#allocation2 + $0x18] sm:$0xff]
        %v1696 = vld [vmem:[#allocation2 + $0x20] sm:$0xff]
        %v1697 = vld [vmem:[#allocation2 + $0x28] sm:$0xff]
        %v1698 = vld [vmem:[#allocation2 + $0x30] sm:$0xff]
        %v1699 = vld [vmem:[#allocation2 + $0x38] sm:$0xff]
        %v1700 = vld [vmem:[#allocation2 + $0x40] sm:$0xff]
        %v1701 = vld [vmem:[#allocation2 + $0x48] sm:$0xff]
        %v1702 = vld [vmem:[#allocation2 + $0x50] sm:$0xff]
        %v1703 = vld [vmem:[#allocation2 + $0x58] sm:$0xff]
        %v1704 = vld [vmem:[#allocation2 + $0x60] sm:$0xff]
        %v1705 = vld [vmem:[#allocation2 + $0x68] sm:$0xff]
        %v1706 = vld [vmem:[#allocation2 + $0x70] sm:$0xff]
        %v1707 = vld [vmem:[#allocation2 + $0x78] sm:$0xff]
        %v1708 = vld [vmem:[#allocation2 + $0x80] sm:$0xff]
        %v1709 = vld [vmem:[#allocation2 + $0x88] sm:$0xff]
        %v1710 = vld [vmem:[#allocation2 + $0x90] sm:$0xff]
        %v1711 = vld [vmem:[#allocation2 + $0x98] sm:$0xff]
        %v1712 = vld [vmem:[#allocation2 + $0xa0] sm:$0xff]
        %v1713 = vld [vmem:[#allocation2 + $0xa8] sm:$0xff]
        %v1714 = vld [vmem:[#allocation2 + $0xb0] sm:$0xff]
        %v1715 = vld [vmem:[#allocation2 + $0xb8] sm:$0xff]
        %v1716 = vld [vmem:[#allocation2 + $0xc0] sm:$0xff]
        %v1717 = vld [vmem:[#allocation2 + $0xc8] sm:$0xff]
        %v1718 = vld [vmem:[#allocation2 + $0xd0] sm:$0xff]
        %v1719 = vld [vmem:[#allocation2 + $0xd8] sm:$0xff]
        %v1720 = vld [vmem:[#allocation2 + $0xe0] sm:$0xff]
        %v1721 = vld [vmem:[#allocation2 + $0xe8] sm:$0xff]
        %v1722 = vld [vmem:[#allocation2 + $0xf0] sm:$0xff]
        %v1723 = vld [vmem:[#allocation2 + $0xf8] sm:$0xff]
        %v1724 = vld [vmem:[#allocation2 + $0x100] sm:$0xff]
        %v1725 = vld [vmem:[#allocation2 + $0x108] sm:$0xff]
        %v1726 = vld [vmem:[#allocation2 + $0x110] sm:$0xff]
        %v1727 = vld [vmem:[#allocation2 + $0x118] sm:$0xff]
        %v1728 = vld [vmem:[#allocation2 + $0x120] sm:$0xff]
        %v1729 = vld [vmem:[#allocation2 + $0x128] sm:$0xff]
        %v1730 = vld [vmem:[#allocation2 + $0x130] sm:$0xff]
        %v1731 = vld [vmem:[#allocation2 + $0x138] sm:$0xff]
        %v1732 = vld [vmem:[#allocation2 + $0x140] sm:$0xff]
        %v1733 = vld [vmem:[#allocation2 + $0x148] sm:$0xff]
        %v1734 = vld [vmem:[#allocation2 + $0x150] sm:$0xff]
        %v1735 = vld [vmem:[#allocation2 + $0x158] sm:$0xff]
        %v1736 = vld [vmem:[#allocation2 + $0x160] sm:$0xff]
        %v1737 = vld [vmem:[#allocation2 + $0x168] sm:$0xff]
        %v1738 = vld [vmem:[#allocation2 + $0x170] sm:$0xff]
        %v1739 = vld [vmem:[#allocation2 + $0x178] sm:$0xff]
        %v1740 = vld [vmem:[#allocation2 + $0x180] sm:$0xff]
        %v1741 = vld [vmem:[#allocation2 + $0x188] sm:$0xff]
        %v1742 = vld [vmem:[#allocation2 + $0x190] sm:$0xff]
        %v1743 = vld [vmem:[#allocation2 + $0x198] sm:$0xff]
        %v1744 = vld [vmem:[#allocation2 + $0x1a0] sm:$0xff]
        %v1745 = vld [vmem:[#allocation2 + $0x1a8] sm:$0xff]
        %v1746 = vld [vmem:[#allocation2 + $0x1b0] sm:$0xff]
        %v1747 = vld [vmem:[#allocation2 + $0x1b8] sm:$0xff]
        %v1748 = vld [vmem:[#allocation2 + $0x1c0] sm:$0xff]
        %v1749 = vld [vmem:[#allocation2 + $0x1c8] sm:$0xff]
        %v1750 = vld [vmem:[#allocation2 + $0x1d0] sm:$0xff]
        %v1751 = vld [vmem:[#allocation2 + $0x1d8] sm:$0xff]
        %v1752 = vld [vmem:[#allocation2 + $0x1e0] sm:$0xff]
        %v1753 = vld [vmem:[#allocation2 + $0x1e8] sm:$0xff]
        %v1754 = vld [vmem:[#allocation2 + $0x1f0] sm:$0xff]
        %v1755 = vld [vmem:[#allocation2 + $0x1f8] sm:$0xff]
        %v1757 = vsel %vm1594, %v1674, 0
        %v1760 = vsel %vm1594, %v1692, 0
        %v1763 = vsel %vm1594, %v1693, 0
        %v1766 = vsel %vm1594, %v1694, 0
        %v1769 = vsel %vm1594, %v1695, 0
        %v1772 = vsel %vm1594, %v1696, 0
        %v1775 = vsel %vm1594, %v1697, 0
        %v1778 = vsel %vm1594, %v1698, 0
        %v1781 = vsel %vm1594, %v1699, 0
        %v1784 = vsel %vm1594, %v1700, 0
        %v1787 = vsel %vm1594, %v1701, 0
        %v1790 = vsel %vm1594, %v1702, 0
        %v1793 = vsel %vm1594, %v1703, 0
        %v1796 = vsel %vm1594, %v1704, 0
        %v1799 = vsel %vm1594, %v1705, 0
        %v1802 = vsel %vm1594, %v1706, 0
        %v1805 = vsel %vm1594, %v1707, 0
        %1807 = vmatprep.subr.mxu0 0.0
        %1808 = vmatpush1.xpose.msra.mxu0 %v1760
        %1809 = vmatprep.subr.mxu0 0.0
        %1810 = vmatpush1.xpose.msra.mxu0 %v1763
        %1811 = vmatprep.subr.mxu0 0.0
        %1812 = vmatpush1.xpose.msra.mxu0 %v1766
        %1813 = vmatprep.subr.mxu0 0.0
        %1814 = vmatpush1.xpose.msra.mxu0 %v1769
        %1815 = vmatprep.subr.mxu0 0.0
        %1816 = vmatpush1.xpose.msra.mxu0 %v1772
        %1817 = vmatprep.subr.mxu0 0.0
        %1818 = vmatpush1.xpose.msra.mxu0 %v1775
        %1819 = vmatprep.subr.mxu0 0.0
        %1820 = vmatpush1.xpose.msra.mxu0 %v1778
        %1821 = vmatprep.subr.mxu0 0.0
        %1822 = vmatpush1.xpose.msra.mxu0 %v1781
        %1823 = vmatprep.subr.mxu0 0.0
        %1824 = vmatpush1.xpose.msra.mxu0 %v1784
        %1825 = vmatprep.subr.mxu0 0.0
        %1826 = vmatpush1.xpose.msra.mxu0 %v1787
        %1827 = vmatprep.subr.mxu0 0.0
        %1828 = vmatpush1.xpose.msra.mxu0 %v1790
        %1829 = vmatprep.subr.mxu0 0.0
        %1830 = vmatpush1.xpose.msra.mxu0 %v1793
        %1831 = vmatprep.subr.mxu0 0.0
        %1832 = vmatpush1.xpose.msra.mxu0 %v1796
        %1833 = vmatprep.subr.mxu0 0.0
        %1834 = vmatpush1.xpose.msra.mxu0 %v1799
        %1835 = vmatprep.subr.mxu0 0.0
        %1836 = vmatpush1.xpose.msra.mxu0 %v1802
        %1837 = vmatprep.subr.mxu0 0.0
        %1838 = vmatpush1.xpose.msra.mxu0 %v1805
        %1839 = vmatprep.subr.mxu0 0.0
        %1840 = vmatpush1.xpose.msra.mxu0 0.0
        %1841 = vmatprep.subr.mxu0 0.0
        %1842 = vmatpush1.xpose.msra.mxu0 0.0
        %1843 = vmatprep.subr.mxu0 0.0
        %1844 = vmatpush1.xpose.msra.mxu0 0.0
        %1845 = vmatprep.subr.mxu0 0.0
        %1846 = vmatpush1.xpose.msra.mxu0 0.0
        %1847 = vmatprep.subr.mxu0 0.0
        %1848 = vmatpush1.xpose.msra.mxu0 0.0
        %1849 = vmatprep.subr.mxu0 0.0
        %1850 = vmatpush1.xpose.msra.mxu0 0.0
        %1851 = vmatprep.subr.mxu0 0.0
        %1852 = vmatpush1.xpose.msra.mxu0 0.0
        %1853 = vmatprep.subr.mxu0 0.0
        %1854 = vmatpush1.xpose.msra.mxu0 0.0
        %1855 = vmatprep.subr.mxu0 0.0
        %1856 = vmatpush1.xpose.msra.mxu0 0.0
        %1857 = vmatprep.subr.mxu0 0.0
        %1858 = vmatpush1.xpose.msra.mxu0 0.0
        %1859 = vmatprep.subr.mxu0 0.0
        %1860 = vmatpush1.xpose.msra.mxu0 0.0
        %1861 = vmatprep.subr.mxu0 0.0
        %1862 = vmatpush1.xpose.msra.mxu0 0.0
        %1863 = vmatprep.subr.mxu0 0.0
        %1864 = vmatpush1.xpose.msra.mxu0 0.0
        %1865 = vmatprep.subr.mxu0 0.0
        %1866 = vmatpush1.xpose.msra.mxu0 0.0
        %1867 = vmatprep.subr.mxu0 0.0
        %1868 = vmatpush1.xpose.msra.mxu0 0.0
        %1869 = vmatprep.subr.mxu0 0.0
        %1870 = vmatpush1.xpose.msra.mxu0 0.0
        %1871 = vmatprep.mubr.f32.mxu0 0.0
        %1872 = vmatmul.mubr.f32.gmra.mrb[0].mxu0 %v1757
        %v1873 = vpop.f32.mrb[0].mxu0
        %v1874 = vadd.f32 0.0, %v1873
        %v1875 = vpop.f32.mrb[0].mxu0
        %1876 = vdwg.mxu0
        %v1878 = vsel %vm1594, %v1679, 0
        %v1881 = vsel %vm1594, %v1708, 0
        %v1884 = vsel %vm1594, %v1709, 0
        %v1887 = vsel %vm1594, %v1710, 0
        %v1890 = vsel %vm1594, %v1711, 0
        %v1893 = vsel %vm1594, %v1712, 0
        %v1896 = vsel %vm1594, %v1713, 0
        %v1899 = vsel %vm1594, %v1714, 0
        %v1902 = vsel %vm1594, %v1715, 0
        %v1905 = vsel %vm1594, %v1716, 0
        %v1908 = vsel %vm1594, %v1717, 0
        %v1911 = vsel %vm1594, %v1718, 0
        %v1914 = vsel %vm1594, %v1719, 0
        %v1917 = vsel %vm1594, %v1720, 0
        %v1920 = vsel %vm1594, %v1721, 0
        %v1923 = vsel %vm1594, %v1722, 0
        %v1926 = vsel %vm1594, %v1723, 0
        %1928 = vmatprep.subr.mxu0 0.0
        %1929 = vmatpush1.xpose.msra.mxu0 %v1881
        %1930 = vmatprep.subr.mxu0 0.0
        %1931 = vmatpush1.xpose.msra.mxu0 %v1884
        %1932 = vmatprep.subr.mxu0 0.0
        %1933 = vmatpush1.xpose.msra.mxu0 %v1887
        %1934 = vmatprep.subr.mxu0 0.0
        %1935 = vmatpush1.xpose.msra.mxu0 %v1890
        %1936 = vmatprep.subr.mxu0 0.0
        %1937 = vmatpush1.xpose.msra.mxu0 %v1893
        %1938 = vmatprep.subr.mxu0 0.0
        %1939 = vmatpush1.xpose.msra.mxu0 %v1896
        %1940 = vmatprep.subr.mxu0 0.0
        %1941 = vmatpush1.xpose.msra.mxu0 %v1899
        %1942 = vmatprep.subr.mxu0 0.0
        %1943 = vmatpush1.xpose.msra.mxu0 %v1902
        %1944 = vmatprep.subr.mxu0 0.0
        %1945 = vmatpush1.xpose.msra.mxu0 %v1905
        %1946 = vmatprep.subr.mxu0 0.0
        %1947 = vmatpush1.xpose.msra.mxu0 %v1908
        %1948 = vmatprep.subr.mxu0 0.0
        %1949 = vmatpush1.xpose.msra.mxu0 %v1911
        %1950 = vmatprep.subr.mxu0 0.0
        %1951 = vmatpush1.xpose.msra.mxu0 %v1914
        %1952 = vmatprep.subr.mxu0 0.0
        %1953 = vmatpush1.xpose.msra.mxu0 %v1917
        %1954 = vmatprep.subr.mxu0 0.0
        %1955 = vmatpush1.xpose.msra.mxu0 %v1920
        %1956 = vmatprep.subr.mxu0 0.0
        %1957 = vmatpush1.xpose.msra.mxu0 %v1923
        %1958 = vmatprep.subr.mxu0 0.0
        %1959 = vmatpush1.xpose.msra.mxu0 %v1926
        %1960 = vmatprep.subr.mxu0 0.0
        %1961 = vmatpush1.xpose.msra.mxu0 0.0
        %1962 = vmatprep.subr.mxu0 0.0
        %1963 = vmatpush1.xpose.msra.mxu0 0.0
        %1964 = vmatprep.subr.mxu0 0.0
        %1965 = vmatpush1.xpose.msra.mxu0 0.0
        %1966 = vmatprep.subr.mxu0 0.0
        %1967 = vmatpush1.xpose.msra.mxu0 0.0
        %1968 = vmatprep.subr.mxu0 0.0
        %1969 = vmatpush1.xpose.msra.mxu0 0.0
        %1970 = vmatprep.subr.mxu0 0.0
        %1971 = vmatpush1.xpose.msra.mxu0 0.0
        %1972 = vmatprep.subr.mxu0 0.0
        %1973 = vmatpush1.xpose.msra.mxu0 0.0
        %1974 = vmatprep.subr.mxu0 0.0
        %1975 = vmatpush1.xpose.msra.mxu0 0.0
        %1976 = vmatprep.subr.mxu0 0.0
        %1977 = vmatpush1.xpose.msra.mxu0 0.0
        %1978 = vmatprep.subr.mxu0 0.0
        %1979 = vmatpush1.xpose.msra.mxu0 0.0
        %1980 = vmatprep.subr.mxu0 0.0
        %1981 = vmatpush1.xpose.msra.mxu0 0.0
        %1982 = vmatprep.subr.mxu0 0.0
        %1983 = vmatpush1.xpose.msra.mxu0 0.0
        %1984 = vmatprep.subr.mxu0 0.0
        %1985 = vmatpush1.xpose.msra.mxu0 0.0
        %1986 = vmatprep.subr.mxu0 0.0
        %1987 = vmatpush1.xpose.msra.mxu0 0.0
        %1988 = vmatprep.subr.mxu0 0.0
        %1989 = vmatpush1.xpose.msra.mxu0 0.0
        %1990 = vmatprep.subr.mxu0 0.0
        %1991 = vmatpush1.xpose.msra.mxu0 0.0
        %1992 = vmatprep.mubr.f32.mxu0 0.0
        %1993 = vmatmul.mubr.f32.gmra.mrb[0].mxu0 %v1878
        %v1994 = vpop.f32.mrb[0].mxu0
        %v1995 = vadd.f32 0.0, %v1994
        %v1996 = vpop.f32.mrb[0].mxu0
        %1997 = vdwg.mxu0
        %v1999 = vsel %vm1594, %v1684, 0
        %v2002 = vsel %vm1594, %v1724, 0
        %v2005 = vsel %vm1594, %v1725, 0
        %v2008 = vsel %vm1594, %v1726, 0
        %v2011 = vsel %vm1594, %v1727, 0
        %v2014 = vsel %vm1594, %v1728, 0
        %v2017 = vsel %vm1594, %v1729, 0
        %v2020 = vsel %vm1594, %v1730, 0
        %v2023 = vsel %vm1594, %v1731, 0
        %v2026 = vsel %vm1594, %v1732, 0
        %v2029 = vsel %vm1594, %v1733, 0
        %v2032 = vsel %vm1594, %v1734, 0
        %v2035 = vsel %vm1594, %v1735, 0
        %v2038 = vsel %vm1594, %v1736, 0
        %v2041 = vsel %vm1594, %v1737, 0
        %v2044 = vsel %vm1594, %v1738, 0
        %v2047 = vsel %vm1594, %v1739, 0
        %2049 = vmatprep.subr.mxu0 0.0
        %2050 = vmatpush1.xpose.msra.mxu0 %v2002
        %2051 = vmatprep.subr.mxu0 0.0
        %2052 = vmatpush1.xpose.msra.mxu0 %v2005
        %2053 = vmatprep.subr.mxu0 0.0
        %2054 = vmatpush1.xpose.msra.mxu0 %v2008
        %2055 = vmatprep.subr.mxu0 0.0
        %2056 = vmatpush1.xpose.msra.mxu0 %v2011
        %2057 = vmatprep.subr.mxu0 0.0
        %2058 = vmatpush1.xpose.msra.mxu0 %v2014
        %2059 = vmatprep.subr.mxu0 0.0
        %2060 = vmatpush1.xpose.msra.mxu0 %v2017
        %2061 = vmatprep.subr.mxu0 0.0
        %2062 = vmatpush1.xpose.msra.mxu0 %v2020
        %2063 = vmatprep.subr.mxu0 0.0
        %2064 = vmatpush1.xpose.msra.mxu0 %v2023
        %2065 = vmatprep.subr.mxu0 0.0
        %2066 = vmatpush1.xpose.msra.mxu0 %v2026
        %2067 = vmatprep.subr.mxu0 0.0
        %2068 = vmatpush1.xpose.msra.mxu0 %v2029
        %2069 = vmatprep.subr.mxu0 0.0
        %2070 = vmatpush1.xpose.msra.mxu0 %v2032
        %2071 = vmatprep.subr.mxu0 0.0
        %2072 = vmatpush1.xpose.msra.mxu0 %v2035
        %2073 = vmatprep.subr.mxu0 0.0
        %2074 = vmatpush1.xpose.msra.mxu0 %v2038
        %2075 = vmatprep.subr.mxu0 0.0
        %2076 = vmatpush1.xpose.msra.mxu0 %v2041
        %2077 = vmatprep.subr.mxu0 0.0
        %2078 = vmatpush1.xpose.msra.mxu0 %v2044
        %2079 = vmatprep.subr.mxu0 0.0
        %2080 = vmatpush1.xpose.msra.mxu0 %v2047
        %2081 = vmatprep.subr.mxu0 0.0
        %2082 = vmatpush1.xpose.msra.mxu0 0.0
        %2083 = vmatprep.subr.mxu0 0.0
        %2084 = vmatpush1.xpose.msra.mxu0 0.0
        %2085 = vmatprep.subr.mxu0 0.0
        %2086 = vmatpush1.xpose.msra.mxu0 0.0
        %2087 = vmatprep.subr.mxu0 0.0
        %2088 = vmatpush1.xpose.msra.mxu0 0.0
        %2089 = vmatprep.subr.mxu0 0.0
        %2090 = vmatpush1.xpose.msra.mxu0 0.0
        %2091 = vmatprep.subr.mxu0 0.0
        %2092 = vmatpush1.xpose.msra.mxu0 0.0
        %2093 = vmatprep.subr.mxu0 0.0
        %2094 = vmatpush1.xpose.msra.mxu0 0.0
        %2095 = vmatprep.subr.mxu0 0.0
        %2096 = vmatpush1.xpose.msra.mxu0 0.0
        %2097 = vmatprep.subr.mxu0 0.0
        %2098 = vmatpush1.xpose.msra.mxu0 0.0
        %2099 = vmatprep.subr.mxu0 0.0
        %2100 = vmatpush1.xpose.msra.mxu0 0.0
        %2101 = vmatprep.subr.mxu0 0.0
        %2102 = vmatpush1.xpose.msra.mxu0 0.0
        %2103 = vmatprep.subr.mxu0 0.0
        %2104 = vmatpush1.xpose.msra.mxu0 0.0
        %2105 = vmatprep.subr.mxu0 0.0
        %2106 = vmatpush1.xpose.msra.mxu0 0.0
        %2107 = vmatprep.subr.mxu0 0.0
        %2108 = vmatpush1.xpose.msra.mxu0 0.0
        %2109 = vmatprep.subr.mxu0 0.0
        %2110 = vmatpush1.xpose.msra.mxu0 0.0
        %2111 = vmatprep.subr.mxu0 0.0
        %2112 = vmatpush1.xpose.msra.mxu0 0.0
        %2113 = vmatprep.mubr.f32.mxu0 0.0
        %2114 = vmatmul.mubr.f32.gmra.mrb[0].mxu0 %v1999
        %v2115 = vpop.f32.mrb[0].mxu0
        %v2116 = vadd.f32 0.0, %v2115
        %v2117 = vpop.f32.mrb[0].mxu0
        %2118 = vdwg.mxu0
        %v2120 = vsel %vm1594, %v1689, 0
        %v2123 = vsel %vm1594, %v1740, 0
        %v2126 = vsel %vm1594, %v1741, 0
        %v2129 = vsel %vm1594, %v1742, 0
        %v2132 = vsel %vm1594, %v1743, 0
        %v2135 = vsel %vm1594, %v1744, 0
        %v2138 = vsel %vm1594, %v1745, 0
        %v2141 = vsel %vm1594, %v1746, 0
        %v2144 = vsel %vm1594, %v1747, 0
        %v2147 = vsel %vm1594, %v1748, 0
        %v2150 = vsel %vm1594, %v1749, 0
        %v2153 = vsel %vm1594, %v1750, 0
        %v2156 = vsel %vm1594, %v1751, 0
        %v2159 = vsel %vm1594, %v1752, 0
        %v2162 = vsel %vm1594, %v1753, 0
        %v2165 = vsel %vm1594, %v1754, 0
        %v2168 = vsel %vm1594, %v1755, 0
        %2170 = vmatprep.subr.mxu0 0.0
        %2171 = vmatpush1.xpose.msra.mxu0 %v2123
        %2172 = vmatprep.subr.mxu0 0.0
        %2173 = vmatpush1.xpose.msra.mxu0 %v2126
        %2174 = vmatprep.subr.mxu0 0.0
        %2175 = vmatpush1.xpose.msra.mxu0 %v2129
        %2176 = vmatprep.subr.mxu0 0.0
        %2177 = vmatpush1.xpose.msra.mxu0 %v2132
        %2178 = vmatprep.subr.mxu0 0.0
        %2179 = vmatpush1.xpose.msra.mxu0 %v2135
        %2180 = vmatprep.subr.mxu0 0.0
        %2181 = vmatpush1.xpose.msra.mxu0 %v2138
        %2182 = vmatprep.subr.mxu0 0.0
        %2183 = vmatpush1.xpose.msra.mxu0 %v2141
        %2184 = vmatprep.subr.mxu0 0.0
        %2185 = vmatpush1.xpose.msra.mxu0 %v2144
        %2186 = vmatprep.subr.mxu0 0.0
        %2187 = vmatpush1.xpose.msra.mxu0 %v2147
        %2188 = vmatprep.subr.mxu0 0.0
        %2189 = vmatpush1.xpose.msra.mxu0 %v2150
        %2190 = vmatprep.subr.mxu0 0.0
        %2191 = vmatpush1.xpose.msra.mxu0 %v2153
        %2192 = vmatprep.subr.mxu0 0.0
        %2193 = vmatpush1.xpose.msra.mxu0 %v2156
        %2194 = vmatprep.subr.mxu0 0.0
        %2195 = vmatpush1.xpose.msra.mxu0 %v2159
        %2196 = vmatprep.subr.mxu0 0.0
        %2197 = vmatpush1.xpose.msra.mxu0 %v2162
        %2198 = vmatprep.subr.mxu0 0.0
        %2199 = vmatpush1.xpose.msra.mxu0 %v2165
        %2200 = vmatprep.subr.mxu0 0.0
        %2201 = vmatpush1.xpose.msra.mxu0 %v2168
        %2202 = vmatprep.subr.mxu0 0.0
        %2203 = vmatpush1.xpose.msra.mxu0 0.0
        %2204 = vmatprep.subr.mxu0 0.0
        %2205 = vmatpush1.xpose.msra.mxu0 0.0
        %2206 = vmatprep.subr.mxu0 0.0
        %2207 = vmatpush1.xpose.msra.mxu0 0.0
        %2208 = vmatprep.subr.mxu0 0.0
        %2209 = vmatpush1.xpose.msra.mxu0 0.0
        %2210 = vmatprep.subr.mxu0 0.0
        %2211 = vmatpush1.xpose.msra.mxu0 0.0
        %2212 = vmatprep.subr.mxu0 0.0
        %2213 = vmatpush1.xpose.msra.mxu0 0.0
        %2214 = vmatprep.subr.mxu0 0.0
        %2215 = vmatpush1.xpose.msra.mxu0 0.0
        %2216 = vmatprep.subr.mxu0 0.0
        %2217 = vmatpush1.xpose.msra.mxu0 0.0
        %2218 = vmatprep.subr.mxu0 0.0
        %2219 = vmatpush1.xpose.msra.mxu0 0.0
        %2220 = vmatprep.subr.mxu0 0.0
        %2221 = vmatpush1.xpose.msra.mxu0 0.0
        %2222 = vmatprep.subr.mxu0 0.0
        %2223 = vmatpush1.xpose.msra.mxu0 0.0
        %2224 = vmatprep.subr.mxu0 0.0
        %2225 = vmatpush1.xpose.msra.mxu0 0.0
        %2226 = vmatprep.subr.mxu0 0.0
        %2227 = vmatpush1.xpose.msra.mxu0 0.0
        %2228 = vmatprep.subr.mxu0 0.0
        %2229 = vmatpush1.xpose.msra.mxu0 0.0
        %2230 = vmatprep.subr.mxu0 0.0
        %2231 = vmatpush1.xpose.msra.mxu0 0.0
        %2232 = vmatprep.subr.mxu0 0.0
        %2233 = vmatpush1.xpose.msra.mxu0 0.0
        %2234 = vmatprep.mubr.f32.mxu0 0.0
        %2235 = vmatmul.mubr.f32.gmra.mrb[0].mxu0 %v2120
        %v2236 = vpop.f32.mrb[0].mxu0
        %v2237 = vadd.f32 0.0, %v2236
        %v2238 = vpop.f32.mrb[0].mxu0
        %2239 = vdwg.mxu0
        %v2240 = vlaneseq
        %v2241 = vand.u32 %v2240, 127
        %vm2242 = vcmp.lt.s32.totalorder %v2241, 16
        %v2243 = vsel %vm2242, 1, 0
        %vm2244 = vcmp.eq.s32.totalorder %v2243, 1
        %v2245 = vsel %vm2244, %v1874, -1e+30
        %v2246 = vsel %vm2244, %v1995, -1e+30
        %v2247 = vsel %vm2244, %v2116, -1e+30
        %v2248 = vsel %vm2244, %v2237, -1e+30
        %2249 = vmax.xlane.f32.xlu0 %v2245
        %v2250 = vpop.xlane.xlu0 %2249
        %2251 = vmax.xlane.f32.xlu0 %v2246
        %v2252 = vpop.xlane.xlu0 %2251
        %2253 = vmax.xlane.f32.xlu0 %v2247
        %v2254 = vpop.xlane.xlu0 %2253
        %2255 = vmax.xlane.f32.xlu0 %v2248
        %v2256 = vpop.xlane.xlu0 %2255
        %v2257 = vsub.f32 %v2245, %v2250
        %v2258 = vsub.f32 %v2246, %v2252
        %v2259 = vsub.f32 %v2247, %v2254
        %v2260 = vsub.f32 %v2248, %v2256
        %v2261 = vmul.f32 %v2257, 1.442695
        %v2262 = vpow.pop %v2261
        %v2263 = vmul.f32 %v2258, 1.442695
        %v2264 = vpow.pop %v2263
        %v2265 = vmul.f32 %v2259, 1.442695
        %v2266 = vpow.pop %v2265
        %v2267 = vmul.f32 %v2260, 1.442695
        %v2268 = vpow.pop %v2267
        %2269 = vadd.xlane.f32.xlu0 %v2262
        %v2270 = vpop.xlane.xlu0 %2269
        %2271 = vadd.xlane.f32.xlu0 %v2264
        %v2272 = vpop.xlane.xlu0 %2271
        %2273 = vadd.xlane.f32.xlu0 %v2266
        %v2274 = vpop.xlane.xlu0 %2273
        %2275 = vadd.xlane.f32.xlu0 %v2268
        %v2276 = vpop.xlane.xlu0 %2275
        %v2277 = vrcp.pop %v2270
        %v2278 = vrcp.pop %v2272
        %v2279 = vrcp.pop %v2274
        %v2280 = vrcp.pop %v2276
        %v2281 = vmul.f32 %v2262, %v2277
        %v2282 = vmul.f32 %v2264, %v2278
        %v2283 = vmul.f32 %v2266, %v2279
        %v2284 = vmul.f32 %v2268, %v2280
        %v2285 = vld [vmem:[#allocation3] sm:$0xff]
        %v2286 = vld [vmem:[#allocation3 + $0x8] sm:$0xff]
        %v2287 = vld [vmem:[#allocation3 + $0x10] sm:$0xff]
        %v2288 = vld [vmem:[#allocation3 + $0x18] sm:$0xff]
        %v2289 = vld [vmem:[#allocation3 + $0x20] sm:$0xff]
        %v2290 = vld [vmem:[#allocation3 + $0x28] sm:$0xff]
        %v2291 = vld [vmem:[#allocation3 + $0x30] sm:$0xff]
        %v2292 = vld [vmem:[#allocation3 + $0x38] sm:$0xff]
        %v2293 = vld [vmem:[#allocation3 + $0x40] sm:$0xff]
        %v2294 = vld [vmem:[#allocation3 + $0x48] sm:$0xff]
        %v2295 = vld [vmem:[#allocation3 + $0x50] sm:$0xff]
        %v2296 = vld [vmem:[#allocation3 + $0x58] sm:$0xff]
        %v2297 = vld [vmem:[#allocation3 + $0x60] sm:$0xff]
        %v2298 = vld [vmem:[#allocation3 + $0x68] sm:$0xff]
        %v2299 = vld [vmem:[#allocation3 + $0x70] sm:$0xff]
        %v2300 = vld [vmem:[#allocation3 + $0x78] sm:$0xff]
        %v2301 = vld [vmem:[#allocation3 + $0x80] sm:$0xff]
        %v2302 = vld [vmem:[#allocation3 + $0x88] sm:$0xff]
        %v2303 = vld [vmem:[#allocation3 + $0x90] sm:$0xff]
        %v2304 = vld [vmem:[#allocation3 + $0x98] sm:$0xff]
        %v2305 = vld [vmem:[#allocation3 + $0xa0] sm:$0xff]
        %v2306 = vld [vmem:[#allocation3 + $0xa8] sm:$0xff]
        %v2307 = vld [vmem:[#allocation3 + $0xb0] sm:$0xff]
        %v2308 = vld [vmem:[#allocation3 + $0xb8] sm:$0xff]
        %v2309 = vld [vmem:[#allocation3 + $0xc0] sm:$0xff]
        %v2310 = vld [vmem:[#allocation3 + $0xc8] sm:$0xff]
        %v2311 = vld [vmem:[#allocation3 + $0xd0] sm:$0xff]
        %v2312 = vld [vmem:[#allocation3 + $0xd8] sm:$0xff]
        %v2313 = vld [vmem:[#allocation3 + $0xe0] sm:$0xff]
        %v2314 = vld [vmem:[#allocation3 + $0xe8] sm:$0xff]
        %v2315 = vld [vmem:[#allocation3 + $0xf0] sm:$0xff]
        %v2316 = vld [vmem:[#allocation3 + $0xf8] sm:$0xff]
        %v2317 = vld [vmem:[#allocation3 + $0x100] sm:$0xff]
        %v2318 = vld [vmem:[#allocation3 + $0x108] sm:$0xff]
        %v2319 = vld [vmem:[#allocation3 + $0x110] sm:$0xff]
        %v2320 = vld [vmem:[#allocation3 + $0x118] sm:$0xff]
        %v2321 = vld [vmem:[#allocation3 + $0x120] sm:$0xff]
        %v2322 = vld [vmem:[#allocation3 + $0x128] sm:$0xff]
        %v2323 = vld [vmem:[#allocation3 + $0x130] sm:$0xff]
        %v2324 = vld [vmem:[#allocation3 + $0x138] sm:$0xff]
        %v2325 = vld [vmem:[#allocation3 + $0x140] sm:$0xff]
        %v2326 = vld [vmem:[#allocation3 + $0x148] sm:$0xff]
        %v2327 = vld [vmem:[#allocation3 + $0x150] sm:$0xff]
        %v2328 = vld [vmem:[#allocation3 + $0x158] sm:$0xff]
        %v2329 = vld [vmem:[#allocation3 + $0x160] sm:$0xff]
        %v2330 = vld [vmem:[#allocation3 + $0x168] sm:$0xff]
        %v2331 = vld [vmem:[#allocation3 + $0x170] sm:$0xff]
        %v2332 = vld [vmem:[#allocation3 + $0x178] sm:$0xff]
        %v2333 = vld [vmem:[#allocation3 + $0x180] sm:$0xff]
        %v2334 = vld [vmem:[#allocation3 + $0x188] sm:$0xff]
        %v2335 = vld [vmem:[#allocation3 + $0x190] sm:$0xff]
        %v2336 = vld [vmem:[#allocation3 + $0x198] sm:$0xff]
        %v2337 = vld [vmem:[#allocation3 + $0x1a0] sm:$0xff]
        %v2338 = vld [vmem:[#allocation3 + $0x1a8] sm:$0xff]
        %v2339 = vld [vmem:[#allocation3 + $0x1b0] sm:$0xff]
        %v2340 = vld [vmem:[#allocation3 + $0x1b8] sm:$0xff]
        %v2341 = vld [vmem:[#allocation3 + $0x1c0] sm:$0xff]
        %v2342 = vld [vmem:[#allocation3 + $0x1c8] sm:$0xff]
        %v2343 = vld [vmem:[#allocation3 + $0x1d0] sm:$0xff]
        %v2344 = vld [vmem:[#allocation3 + $0x1d8] sm:$0xff]
        %v2345 = vld [vmem:[#allocation3 + $0x1e0] sm:$0xff]
        %v2346 = vld [vmem:[#allocation3 + $0x1e8] sm:$0xff]
        %v2347 = vld [vmem:[#allocation3 + $0x1f0] sm:$0xff]
        %v2348 = vld [vmem:[#allocation3 + $0x1f8] sm:$0xff]
        %2349 = vmatprep.subr.mxu0 0.0
        %2350 = vmatpush1.msra.mxu0 %v2285
        %2351 = vmatprep.subr.mxu0 0.0
        %2352 = vmatpush1.msra.mxu0 %v2286
        %2353 = vmatprep.subr.mxu0 0.0
        %2354 = vmatpush1.msra.mxu0 %v2287
        %2355 = vmatprep.subr.mxu0 0.0
        %2356 = vmatpush1.msra.mxu0 %v2288
        %2357 = vmatprep.subr.mxu0 0.0
        %2358 = vmatpush1.msra.mxu0 %v2289
        %2359 = vmatprep.subr.mxu0 0.0
        %2360 = vmatpush1.msra.mxu0 %v2290
        %2361 = vmatprep.subr.mxu0 0.0
        %2362 = vmatpush1.msra.mxu0 %v2291
        %2363 = vmatprep.subr.mxu0 0.0
        %2364 = vmatpush1.msra.mxu0 %v2292
        %2365 = vmatprep.subr.mxu0 0.0
        %2366 = vmatpush1.msra.mxu0 %v2293
        %2367 = vmatprep.subr.mxu0 0.0
        %2368 = vmatpush1.msra.mxu0 %v2294
        %2369 = vmatprep.subr.mxu0 0.0
        %2370 = vmatpush1.msra.mxu0 %v2295
        %2371 = vmatprep.subr.mxu0 0.0
        %2372 = vmatpush1.msra.mxu0 %v2296
        %2373 = vmatprep.subr.mxu0 0.0
        %2374 = vmatpush1.msra.mxu0 %v2297
        %2375 = vmatprep.subr.mxu0 0.0
        %2376 = vmatpush1.msra.mxu0 %v2298
        %2377 = vmatprep.subr.mxu0 0.0
        %2378 = vmatpush1.msra.mxu0 %v2299
        %2379 = vmatprep.subr.mxu0 0.0
        %2380 = vmatpush1.msra.mxu0 %v2300
        %2381 = vmatprep.subr.mxu0 0.0
        %2382 = vmatpush1.msra.mxu0 0.0
        %2383 = vmatprep.subr.mxu0 0.0
        %2384 = vmatpush1.msra.mxu0 0.0
        %2385 = vmatprep.subr.mxu0 0.0
        %2386 = vmatpush1.msra.mxu0 0.0
        %2387 = vmatprep.subr.mxu0 0.0
        %2388 = vmatpush1.msra.mxu0 0.0
        %2389 = vmatprep.subr.mxu0 0.0
        %2390 = vmatpush1.msra.mxu0 0.0
        %2391 = vmatprep.subr.mxu0 0.0
        %2392 = vmatpush1.msra.mxu0 0.0
        %2393 = vmatprep.subr.mxu0 0.0
        %2394 = vmatpush1.msra.mxu0 0.0
        %2395 = vmatprep.subr.mxu0 0.0
        %2396 = vmatpush1.msra.mxu0 0.0
        %2397 = vmatprep.subr.mxu0 0.0
        %2398 = vmatpush1.msra.mxu0 0.0
        %2399 = vmatprep.subr.mxu0 0.0
        %2400 = vmatpush1.msra.mxu0 0.0
        %2401 = vmatprep.subr.mxu0 0.0
        %2402 = vmatpush1.msra.mxu0 0.0
        %2403 = vmatprep.subr.mxu0 0.0
        %2404 = vmatpush1.msra.mxu0 0.0
        %2405 = vmatprep.subr.mxu0 0.0
        %2406 = vmatpush1.msra.mxu0 0.0
        %2407 = vmatprep.subr.mxu0 0.0
        %2408 = vmatpush1.msra.mxu0 0.0
        %2409 = vmatprep.subr.mxu0 0.0
        %2410 = vmatpush1.msra.mxu0 0.0
        %2411 = vmatprep.subr.mxu0 0.0
        %2412 = vmatpush1.msra.mxu0 0.0
        %2413 = vmatprep.mubr.f32.mxu0 0.0
        %2414 = vmatmul.mubr.f32.gmra.mrb[0].mxu0 %v2281
        %v2415 = vpop.f32.mrb[0].mxu0
        %v2416 = vadd.f32 0.0, %v2415
        %v2417 = vpop.f32.mrb[0].mxu0
        %2418 = vdwg.mxu0
        %2419 = vmatprep.subr.mxu0 0.0
        %2420 = vmatpush1.msra.mxu0 %v2301
        %2421 = vmatprep.subr.mxu0 0.0
        %2422 = vmatpush1.msra.mxu0 %v2302
        %2423 = vmatprep.subr.mxu0 0.0
        %2424 = vmatpush1.msra.mxu0 %v2303
        %2425 = vmatprep.subr.mxu0 0.0
        %2426 = vmatpush1.msra.mxu0 %v2304
        %2427 = vmatprep.subr.mxu0 0.0
        %2428 = vmatpush1.msra.mxu0 %v2305
        %2429 = vmatprep.subr.mxu0 0.0
        %2430 = vmatpush1.msra.mxu0 %v2306
        %2431 = vmatprep.subr.mxu0 0.0
        %2432 = vmatpush1.msra.mxu0 %v2307
        %2433 = vmatprep.subr.mxu0 0.0
        %2434 = vmatpush1.msra.mxu0 %v2308
        %2435 = vmatprep.subr.mxu0 0.0
        %2436 = vmatpush1.msra.mxu0 %v2309
        %2437 = vmatprep.subr.mxu0 0.0
        %2438 = vmatpush1.msra.mxu0 %v2310
        %2439 = vmatprep.subr.mxu0 0.0
        %2440 = vmatpush1.msra.mxu0 %v2311
        %2441 = vmatprep.subr.mxu0 0.0
        %2442 = vmatpush1.msra.mxu0 %v2312
        %2443 = vmatprep.subr.mxu0 0.0
        %2444 = vmatpush1.msra.mxu0 %v2313
        %2445 = vmatprep.subr.mxu0 0.0
        %2446 = vmatpush1.msra.mxu0 %v2314
        %2447 = vmatprep.subr.mxu0 0.0
        %2448 = vmatpush1.msra.mxu0 %v2315
        %2449 = vmatprep.subr.mxu0 0.0
        %2450 = vmatpush1.msra.mxu0 %v2316
        %2451 = vmatprep.subr.mxu0 0.0
        %2452 = vmatpush1.msra.mxu0 0.0
        %2453 = vmatprep.subr.mxu0 0.0
        %2454 = vmatpush1.msra.mxu0 0.0
        %2455 = vmatprep.subr.mxu0 0.0
        %2456 = vmatpush1.msra.mxu0 0.0
        %2457 = vmatprep.subr.mxu0 0.0
        %2458 = vmatpush1.msra.mxu0 0.0
        %2459 = vmatprep.subr.mxu0 0.0
        %2460 = vmatpush1.msra.mxu0 0.0
        %2461 = vmatprep.subr.mxu0 0.0
        %2462 = vmatpush1.msra.mxu0 0.0
        %2463 = vmatprep.subr.mxu0 0.0
        %2464 = vmatpush1.msra.mxu0 0.0
        %2465 = vmatprep.subr.mxu0 0.0
        %2466 = vmatpush1.msra.mxu0 0.0
        %2467 = vmatprep.subr.mxu0 0.0
        %2468 = vmatpush1.msra.mxu0 0.0
        %2469 = vmatprep.subr.mxu0 0.0
        %2470 = vmatpush1.msra.mxu0 0.0
        %2471 = vmatprep.subr.mxu0 0.0
        %2472 = vmatpush1.msra.mxu0 0.0
        %2473 = vmatprep.subr.mxu0 0.0
        %2474 = vmatpush1.msra.mxu0 0.0
        %2475 = vmatprep.subr.mxu0 0.0
        %2476 = vmatpush1.msra.mxu0 0.0
        %2477 = vmatprep.subr.mxu0 0.0
        %2478 = vmatpush1.msra.mxu0 0.0
        %2479 = vmatprep.subr.mxu0 0.0
        %2480 = vmatpush1.msra.mxu0 0.0
        %2481 = vmatprep.subr.mxu0 0.0
        %2482 = vmatpush1.msra.mxu0 0.0
        %2483 = vmatprep.mubr.f32.mxu0 0.0
        %2484 = vmatmul.mubr.f32.gmra.mrb[0].mxu0 %v2282
        %v2485 = vpop.f32.mrb[0].mxu0
        %v2486 = vadd.f32 0.0, %v2485
        %v2487 = vpop.f32.mrb[0].mxu0
        %2488 = vdwg.mxu0
        %2489 = vmatprep.subr.mxu0 0.0
        %2490 = vmatpush1.msra.mxu0 %v2317
        %2491 = vmatprep.subr.mxu0 0.0
        %2492 = vmatpush1.msra.mxu0 %v2318
        %2493 = vmatprep.subr.mxu0 0.0
        %2494 = vmatpush1.msra.mxu0 %v2319
        %2495 = vmatprep.subr.mxu0 0.0
        %2496 = vmatpush1.msra.mxu0 %v2320
        %2497 = vmatprep.subr.mxu0 0.0
        %2498 = vmatpush1.msra.mxu0 %v2321
        %2499 = vmatprep.subr.mxu0 0.0
        %2500 = vmatpush1.msra.mxu0 %v2322
        %2501 = vmatprep.subr.mxu0 0.0
        %2502 = vmatpush1.msra.mxu0 %v2323
        %2503 = vmatprep.subr.mxu0 0.0
        %2504 = vmatpush1.msra.mxu0 %v2324
        %2505 = vmatprep.subr.mxu0 0.0
        %2506 = vmatpush1.msra.mxu0 %v2325
        %2507 = vmatprep.subr.mxu0 0.0
        %2508 = vmatpush1.msra.mxu0 %v2326
        %2509 = vmatprep.subr.mxu0 0.0
        %2510 = vmatpush1.msra.mxu0 %v2327
        %2511 = vmatprep.subr.mxu0 0.0
        %2512 = vmatpush1.msra.mxu0 %v2328
        %2513 = vmatprep.subr.mxu0 0.0
        %2514 = vmatpush1.msra.mxu0 %v2329
        %2515 = vmatprep.subr.mxu0 0.0
        %2516 = vmatpush1.msra.mxu0 %v2330
        %2517 = vmatprep.subr.mxu0 0.0
        %2518 = vmatpush1.msra.mxu0 %v2331
        %2519 = vmatprep.subr.mxu0 0.0
        %2520 = vmatpush1.msra.mxu0 %v2332
        %2521 = vmatprep.subr.mxu0 0.0
        %2522 = vmatpush1.msra.mxu0 0.0
        %2523 = vmatprep.subr.mxu0 0.0
        %2524 = vmatpush1.msra.mxu0 0.0
        %2525 = vmatprep.subr.mxu0 0.0
        %2526 = vmatpush1.msra.mxu0 0.0
        %2527 = vmatprep.subr.mxu0 0.0
        %2528 = vmatpush1.msra.mxu0 0.0
        %2529 = vmatprep.subr.mxu0 0.0
        %2530 = vmatpush1.msra.mxu0 0.0
        %2531 = vmatprep.subr.mxu0 0.0
        %2532 = vmatpush1.msra.mxu0 0.0
        %2533 = vmatprep.subr.mxu0 0.0
        %2534 = vmatpush1.msra.mxu0 0.0
        %2535 = vmatprep.subr.mxu0 0.0
        %2536 = vmatpush1.msra.mxu0 0.0
        %2537 = vmatprep.subr.mxu0 0.0
        %2538 = vmatpush1.msra.mxu0 0.0
        %2539 = vmatprep.subr.mxu0 0.0
        %2540 = vmatpush1.msra.mxu0 0.0
        %2541 = vmatprep.subr.mxu0 0.0
        %2542 = vmatpush1.msra.mxu0 0.0
        %2543 = vmatprep.subr.mxu0 0.0
        %2544 = vmatpush1.msra.mxu0 0.0
        %2545 = vmatprep.subr.mxu0 0.0
        %2546 = vmatpush1.msra.mxu0 0.0
        %2547 = vmatprep.subr.mxu0 0.0
        %2548 = vmatpush1.msra.mxu0 0.0
        %2549 = vmatprep.subr.mxu0 0.0
        %2550 = vmatpush1.msra.mxu0 0.0
        %2551 = vmatprep.subr.mxu0 0.0
        %2552 = vmatpush1.msra.mxu0 0.0
        %2553 = vmatprep.mubr.f32.mxu0 0.0
        %2554 = vmatmul.mubr.f32.gmra.mrb[0].mxu0 %v2283
        %v2555 = vpop.f32.mrb[0].mxu0
        %v2556 = vadd.f32 0.0, %v2555
        %v2557 = vpop.f32.mrb[0].mxu0
        %2558 = vdwg.mxu0
        %2559 = vmatprep.subr.mxu0 0.0
        %2560 = vmatpush1.msra.mxu0 %v2333
        %2561 = vmatprep.subr.mxu0 0.0
        %2562 = vmatpush1.msra.mxu0 %v2334
        %2563 = vmatprep.subr.mxu0 0.0
        %2564 = vmatpush1.msra.mxu0 %v2335
        %2565 = vmatprep.subr.mxu0 0.0
        %2566 = vmatpush1.msra.mxu0 %v2336
        %2567 = vmatprep.subr.mxu0 0.0
        %2568 = vmatpush1.msra.mxu0 %v2337
        %2569 = vmatprep.subr.mxu0 0.0
        %2570 = vmatpush1.msra.mxu0 %v2338
        %2571 = vmatprep.subr.mxu0 0.0
        %2572 = vmatpush1.msra.mxu0 %v2339
        %2573 = vmatprep.subr.mxu0 0.0
        %2574 = vmatpush1.msra.mxu0 %v2340
        %2575 = vmatprep.subr.mxu0 0.0
        %2576 = vmatpush1.msra.mxu0 %v2341
        %2577 = vmatprep.subr.mxu0 0.0
        %2578 = vmatpush1.msra.mxu0 %v2342
        %2579 = vmatprep.subr.mxu0 0.0
        %2580 = vmatpush1.msra.mxu0 %v2343
        %2581 = vmatprep.subr.mxu0 0.0
        %2582 = vmatpush1.msra.mxu0 %v2344
        %2583 = vmatprep.subr.mxu0 0.0
        %2584 = vmatpush1.msra.mxu0 %v2345
        %2585 = vmatprep.subr.mxu0 0.0
        %2586 = vmatpush1.msra.mxu0 %v2346
        %2587 = vmatprep.subr.mxu0 0.0
        %2588 = vmatpush1.msra.mxu0 %v2347
        %2589 = vmatprep.subr.mxu0 0.0
        %2590 = vmatpush1.msra.mxu0 %v2348
        %2591 = vmatprep.subr.mxu0 0.0
        %2592 = vmatpush1.msra.mxu0 0.0
        %2593 = vmatprep.subr.mxu0 0.0
        %2594 = vmatpush1.msra.mxu0 0.0
        %2595 = vmatprep.subr.mxu0 0.0
        %2596 = vmatpush1.msra.mxu0 0.0
        %2597 = vmatprep.subr.mxu0 0.0
        %2598 = vmatpush1.msra.mxu0 0.0
        %2599 = vmatprep.subr.mxu0 0.0
        %2600 = vmatpush1.msra.mxu0 0.0
        %2601 = vmatprep.subr.mxu0 0.0
        %2602 = vmatpush1.msra.mxu0 0.0
        %2603 = vmatprep.subr.mxu0 0.0
        %2604 = vmatpush1.msra.mxu0 0.0
        %2605 = vmatprep.subr.mxu0 0.0
        %2606 = vmatpush1.msra.mxu0 0.0
        %2607 = vmatprep.subr.mxu0 0.0
        %2608 = vmatpush1.msra.mxu0 0.0
        %2609 = vmatprep.subr.mxu0 0.0
        %2610 = vmatpush1.msra.mxu0 0.0
        %2611 = vmatprep.subr.mxu0 0.0
        %2612 = vmatpush1.msra.mxu0 0.0
        %2613 = vmatprep.subr.mxu0 0.0
        %2614 = vmatpush1.msra.mxu0 0.0
        %2615 = vmatprep.subr.mxu0 0.0
        %2616 = vmatpush1.msra.mxu0 0.0
        %2617 = vmatprep.subr.mxu0 0.0
        %2618 = vmatpush1.msra.mxu0 0.0
        %2619 = vmatprep.subr.mxu0 0.0
        %2620 = vmatpush1.msra.mxu0 0.0
        %2621 = vmatprep.subr.mxu0 0.0
        %2622 = vmatpush1.msra.mxu0 0.0
        %2623 = vmatprep.mubr.f32.mxu0 0.0
        %2624 = vmatmul.mubr.f32.gmra.mrb[0].mxu0 %v2284
        %v2625 = vpop.f32.mrb[0].mxu0
        %v2626 = vadd.f32 0.0, %v2625
        %v2627 = vpop.f32.mrb[0].mxu0
        %2628 = vdwg.mxu0
        %2629 = vst.msk [vmem:[%s372] sm:$0xff] %vm1594, %v2416
        %2630 = vst.msk [vmem:[%s372 + $0x8] sm:$0xff] %vm1594, %v2486
        %2631 = vst.msk [vmem:[%s372 + $0x10] sm:$0xff] %vm1594, %v2556
        %2632 = vst.msk [vmem:[%s372 + $0x18] sm:$0xff] %vm1594, %v2626
        %2633 = vst [vmem:[%s379] sm:$0xff] %v2281
        %2634 = vst [vmem:[%s379 + $0x8] sm:$0xff] %v2282
        %2635 = vst [vmem:[%s379 + $0x10] sm:$0xff] %v2283
        %2636 = vst [vmem:[%s379 + $0x18] sm:$0xff] %v2284
        %s2637 = sand.u32 %s229, 1
        %s2638 = scalar_lea.sflag [#allocation5], %s2637
        %s2639 = sand.u32 %s229, 1
        %s2640 = smul.addr %s2639, 32
        %s2641 = scalar_lea.vmem [#allocation4], %s2640
        %s2642 = sand.u32 %s257, 1
        %s2643 = scalar_lea.sflag [#allocation7], %s2642
        %s2644 = sand.u32 %s257, 1
        %s2645 = smul.addr %s2644, 32
        %s2646 = scalar_lea.vmem [#allocation6], %s2645
        // Predicated region
        $region57: #{tpu_custom_call.1} parent=51 // pred_check
          %p2647 = pneg %p239
        $region58: #{tpu_custom_call.1} parent=51 // pred_check_branch
          %2649 = sbr.rel (%p2647) target = $region60
        $region59: #{tpu_custom_call.1} parent=51 // pred_region
          %s2650 = smul.u32 4, %s31
          %s2652 = ssub.s32 512, 512
          %2653 = vsyncadd %s2638, %s2652
          %s2654 = sadd.s32 %s32, %s2650
          %s2655 = smul.addr %s2654, 128
          %s2656 = scalar_lea.hbm %s8, %s2655
          %s2657 = sshll.u32 %s2641, 4
          %s2658 = int_to_ptr.vmem [resolvable:$true] %s2657
          %2663 = dma.vmem_to_hbm [thread:$0]  %s2658, 512, %s2656, %s2638, 128, 128, 8
        $region60: #{tpu_custom_call.1} parent=51 // pred_fallthru
          _
        // Predicated region
        $region61: #{tpu_custom_call.1} parent=51 // pred_check
          %p2664 = pneg %p267
        $region62: #{tpu_custom_call.1} parent=51 // pred_check_branch
          %2666 = sbr.rel (%p2664) target = $region64
        $region63: #{tpu_custom_call.1} parent=51 // pred_region
          %s2667 = smul.u32 4, %s31
          %s2669 = ssub.s32 512, 512
          %2670 = vsyncadd %s2643, %s2669
          %s2671 = sadd.s32 %s32, %s2667
          %s2672 = smul.addr %s2671, 128
          %s2673 = scalar_lea.hbm %s9, %s2672
          %s2674 = sshll.u32 %s2646, 4
          %s2675 = int_to_ptr.vmem [resolvable:$true] %s2674
          %2680 = dma.vmem_to_hbm [thread:$0]  %s2675, 512, %s2673, %s2643, 128, 128, 8
        $region64: #{tpu_custom_call.1} parent=51 // pred_fallthru
          _
      $region52: #{tpu_custom_call.1} parent=5 // pred_fallthru
        _
      %p2681 = scmp.le.s32.totalorder 2, %s22
      // Predicated region
      $region65: #{tpu_custom_call.1} parent=5 // pred_check
        %p2682 = pneg %p2681
      $region66: #{tpu_custom_call.1} parent=5 // pred_check_branch
        %2684 = sbr.rel (%p2682) target = $region68
      $region67: #{tpu_custom_call.1} parent=5 // pred_region
        %s2685 = ssub.s32 %s22, 2
        // Predicated region
        $region69: #{tpu_custom_call.1} parent=67 // pred_check
          %p2686 = pneg %p245
        $region70: #{tpu_custom_call.1} parent=67 // pred_check_branch
          %2688 = sbr.rel (%p2686) target = $region72
        $region71: #{tpu_custom_call.1} parent=67 // pred_region
          %s2689 = sand.u32 %s230, 1
          %s2690 = scalar_lea.sflag [#allocation5], %s2689
          %s2691 = sand.u32 %s230, 1
          %s2692 = smul.addr %s2691, 32
          %s2693 = scalar_lea.vmem [#allocation4], %s2692
          %2694 = dma.done %s2690, 512
        $region72: #{tpu_custom_call.1} parent=67 // pred_fallthru
          _
        // Predicated region
        $region73: #{tpu_custom_call.1} parent=67 // pred_check
          %p2695 = pneg %p273
        $region74: #{tpu_custom_call.1} parent=67 // pred_check_branch
          %2697 = sbr.rel (%p2695) target = $region76
        $region75: #{tpu_custom_call.1} parent=67 // pred_region
          %s2698 = sand.u32 %s258, 1
          %s2699 = scalar_lea.sflag [#allocation7], %s2698
          %s2700 = sand.u32 %s258, 1
          %s2701 = smul.addr %s2700, 32
          %s2702 = scalar_lea.vmem [#allocation6], %s2701
          %2703 = dma.done %s2699, 512
        $region76: #{tpu_custom_call.1} parent=67 // pred_fallthru
          _
      $region68: #{tpu_custom_call.1} parent=5 // pred_fallthru
        _
    $region6: #{tpu_custom_call.1} parent=1 // loop_footer
      %s26 = sadd.s32 1, %s22
    $region7: #{tpu_custom_call.1} parent=1 // loop_footer_branch
      %21 = sbr.rel target = $region3
    $region8: #{tpu_custom_call.1} parent=1 // loop_exit
      _
    %2704 = vsyncpa [#allocation5], 1
    %s2705 = scalar_lea.sflag [#allocation5], 1
    %2706 = vsyncpa %s2705, 1
    %2707 = vsyncpa [#allocation7], 1
    %s2708 = scalar_lea.sflag [#allocation7], 1
    %2709 = vsyncpa %s2708, 1

// kernel: tpu_custom_call.1
$region0: #{tpu_custom_call.1}
  #allocation0 [shape = 'u32[]', space=smem, size = 0x4, offset = 0x4, fixed_abs, tag = 'smem constant byte address 0x4 - core index']
  #allocation1 [shape = 'u32[144,128]{1,0:T(1,128)}', space=vmem, size = 0x12000, scoped, tag = 'internal scratch']
  #allocation2 [shape = 'f32[4,128,32]{2,1,0:T(8,128)}', space=vmem, size = 0x40000, scoped, tag = 'scratch operand']
  #allocation3 [shape = 'f32[4,128,32]{2,1,0:T(8,128)}', space=vmem, size = 0x40000, scoped, tag = 'scratch operand']
  %s0 = inlined_call_operand.vmem [shape: f32[8,8,32], index: 0, kind: input, shape index: {}]
  %s1 = inlined_call_operand.vmem [shape: f32[8,128,32], index: 1, kind: input, shape index: {}]
  %s2 = inlined_call_operand.vmem [shape: f32[32,32], index: 2, kind: input, shape index: {}]
  %s3 = inlined_call_operand.vmem [shape: f32[1,32], index: 3, kind: input, shape index: {}]
  %s4 = inlined_call_operand.vmem [shape: f32[32,32], index: 4, kind: input, shape index: {}]
  %s5 = inlined_call_operand.vmem [shape: f32[1,32], index: 5, kind: input, shape index: {}]
  %s6 = inlined_call_operand.vmem [shape: f32[32,32], index: 6, kind: input, shape index: {}]
  %s7 = inlined_call_operand.vmem [shape: f32[1,32], index: 7, kind: input, shape index: {}]
  %s8 = inlined_call_operand.hbm [shape: f32[8,8,32], index: 8, kind: output, shape index: {0}]
  %s9 = inlined_call_operand.hbm [shape: f32[8,8,128], index: 9, kind: output, shape index: {1}]
  %10 = xla_tuple %s8, %s9
  %s11 = sld [smem:[#allocation0]]
  $region77: #{tpu_custom_call.1} parent=0
    _
  %s13 = ssub.s32 1, %s11
  %s14 = scalar_select 0, %s13, %s11
  $region1: #{tpu_custom_call.1} parent=0
    #allocation4 [shape = 'u8[32768]{0}', space=vmem, size = 0x8000, scoped, tag = 'output window, operand 0']
    #allocation5 [shape = 's32[2]{0}', space=sflag, size = 0x8, scoped, tag = 'scoped memory for tpu_custom_call.1']
    #allocation6 [shape = 'u8[32768]{0}', space=vmem, size = 0x8000, scoped, tag = 'output window, operand 1']
    #allocation7 [shape = 's32[2]{0}', space=sflag, size = 0x8, scoped, tag = 'scoped memory for tpu_custom_call.1']
    %15 = vsyncpa [#allocation5], 0
    %s16 = scalar_lea.sflag [#allocation5], 1
    %17 = vsyncpa %s16, 0
    %18 = vsyncpa [#allocation7], 0
    %s19 = scalar_lea.sflag [#allocation7], 1
    %20 = vsyncpa %s19, 0
    loop: start=0, step=1, limit=4
    $region2: #{tpu_custom_call.1} parent=1 // loop_pre_header
      _
    $region3: #{tpu_custom_call.1} parent=1 // loop_header
      %s22 = sphi 0, %s26
      %p23 = scmp.ge.s32.totalorder %s22, 4
      %s29 = sphi 0, %s41
      %s30 = sphi 0, %s37
      %s31 = sphi 0, %s29
      %s32 = sphi 0, %s30
      %s33 = sphi 0, %s31
      %s34 = sphi 0, %s32
      %s46 = sphi 0, %s48
      %s49 = sphi 0, %s46
      %s50 = sphi 0, %s49
      %s66 = sphi 0, %s50
      %s72 = sphi 0, %s74
      %s75 = sphi 0, %s72
      %s76 = sphi 0, %s75
      %s92 = sphi 0, %s76
      %s96 = sphi 0, %s96
      %s98 = sphi 0, %s96
      %s99 = sphi 0, %s98
      %s113 = sphi 0, %s99
      %s117 = sphi 0, %s117
      %s119 = sphi 0, %s117
      %s120 = sphi 0, %s119
      %s134 = sphi 0, %s120
      %s138 = sphi 0, %s138
      %s140 = sphi 0, %s138
      %s141 = sphi 0, %s140
      %s155 = sphi 0, %s141
      %s159 = sphi 0, %s159
      %s161 = sphi 0, %s159
      %s162 = sphi 0, %s161
      %s176 = sphi 0, %s162
      %s180 = sphi 0, %s180
      %s182 = sphi 0, %s180
      %s183 = sphi 0, %s182
      %s197 = sphi 0, %s183
      %s201 = sphi 0, %s201
      %s203 = sphi 0, %s201
      %s204 = sphi 0, %s203
      %s218 = sphi 0, %s204
      %s226 = sphi 0, %s228
      %s229 = sphi 0, %s226
      %s230 = sphi 0, %s229
      %s246 = sphi 0, %s230
      %s254 = sphi 0, %s256
      %s257 = sphi 0, %s254
      %s258 = sphi 0, %s257
      %s274 = sphi 0, %s258
    $region4: #{tpu_custom_call.1} parent=1 // loop_header_branch
      %25 = sbr.rel (%p23) target = $region8
    $region5: #{tpu_custom_call.1} parent=1 // loop_body
      %s27 = ssub.s32 %s22, 1
      %s28 = ssub.s32 %s22, 2
      %s35 = sadd.s32 1, %s30
      %p36 = scmp.ge.s32.totalorder %s35, 1
      %s37 = scalar_select %p36, 0, %s35
      %s38 = sadd.s32 1, %s29
      %s39 = scalar_select %p36, %s38, %s29
      %p40 = scmp.ge.s32.totalorder %s39, 2
      %s41 = scalar_select %p40, 0, %s39
      %s42 = ssub.s32 %s29, %s41
      %s43 = ssub.s32 %s30, %s37
      %s44 = sor.u32 %s42, %s43
      %p45 = scmp.eq.s32.totalorder %s44, 0
      %s47 = sadd.s32 %s46, 1
      %s48 = scalar_select %p45, %s46, %s47
      %p51 = pneg %p45
      %p52 = scmp.eq.s32.totalorder %s22, 1
      %p53 = por %p51, %p52
      %p54 = scmp.ne.s32.totalorder %s46, %s49
      %p55 = scmp.eq.s32.totalorder %s22, 0
      %p56 = por %p54, %p55
      %p57 = scmp.ne.s32.totalorder %s46, %s49
      %p58 = scmp.eq.s32.totalorder %s27, 1
      %p59 = por %p57, %p58
      %p60 = scmp.ne.s32.totalorder %s49, %s50
      %p61 = scmp.eq.s32.totalorder %s27, 0
      %p62 = por %p60, %p61
      %p63 = scmp.ne.s32.totalorder %s49, %s50
      %p64 = scmp.eq.s32.totalorder %s28, 1
      %p65 = por %p63, %p64
      %p67 = scmp.ne.s32.totalorder %s50, %s66
      %p68 = scmp.eq.s32.totalorder %s28, 0
      %p69 = por %p67, %p68
      %s70 = ssub.s32 %s29, %s41
      %p71 = scmp.eq.s32.totalorder %s70, 0
      %s73 = sadd.s32 %s72, 1
      %s74 = scalar_select %p71, %s72, %s73
      %p77 = pneg %p71
      %p78 = scmp.eq.s32.totalorder %s22, 1
      %p79 = por %p77, %p78
      %p80 = scmp.ne.s32.totalorder %s72, %s75
      %p81 = scmp.eq.s32.totalorder %s22, 0
      %p82 = por %p80, %p81
      %p83 = scmp.ne.s32.totalorder %s72, %s75
      %p84 = scmp.eq.s32.totalorder %s27, 1
      %p85 = por %p83, %p84
      %p86 = scmp.ne.s32.totalorder %s75, %s76
      %p87 = scmp.eq.s32.totalorder %s27, 0
      %p88 = por %p86, %p87
      %p89 = scmp.ne.s32.totalorder %s75, %s76
      %p90 = scmp.eq.s32.totalorder %s28, 1
      %p91 = por %p89, %p90
      %p93 = scmp.ne.s32.totalorder %s76, %s92
      %p94 = scmp.eq.s32.totalorder %s28, 0
      %p95 = por %p93, %p94
      %s97 = sadd.s32 %s96, 1
      %p100 = scmp.eq.s32.totalorder %s22, 1
      %p101 = scmp.ne.s32.totalorder %s96, %s98
      %p102 = scmp.eq.s32.totalorder %s22, 0
      %p103 = por %p101, %p102
      %p104 = scmp.ne.s32.totalorder %s96, %s98
      %p105 = scmp.eq.s32.totalorder %s27, 1
      %p106 = por %p104, %p105
      %p107 = scmp.ne.s32.totalorder %s98, %s99
      %p108 = scmp.eq.s32.totalorder %s27, 0
      %p109 = por %p107, %p108
      %p110 = scmp.ne.s32.totalorder %s98, %s99
      %p111 = scmp.eq.s32.totalorder %s28, 1
      %p112 = por %p110, %p111
      %p114 = scmp.ne.s32.totalorder %s99, %s113
      %p115 = scmp.eq.s32.totalorder %s28, 0
      %p116 = por %p114, %p115
      %s118 = sadd.s32 %s117, 1
      %p121 = scmp.eq.s32.totalorder %s22, 1
      %p122 = scmp.ne.s32.totalorder %s117, %s119
      %p123 = scmp.eq.s32.totalorder %s22, 0
      %p124 = por %p122, %p123
      %p125 = scmp.ne.s32.totalorder %s117, %s119
      %p126 = scmp.eq.s32.totalorder %s27, 1
      %p127 = por %p125, %p126
      %p128 = scmp.ne.s32.totalorder %s119, %s120
      %p129 = scmp.eq.s32.totalorder %s27, 0
      %p130 = por %p128, %p129
      %p131 = scmp.ne.s32.totalorder %s119, %s120
      %p132 = scmp.eq.s32.totalorder %s28, 1
      %p133 = por %p131, %p132
      %p135 = scmp.ne.s32.totalorder %s120, %s134
      %p136 = scmp.eq.s32.totalorder %s28, 0
      %p137 = por %p135, %p136
      %s139 = sadd.s32 %s138, 1
      %p142 = scmp.eq.s32.totalorder %s22, 1
      %p143 = scmp.ne.s32.totalorder %s138, %s140
      %p144 = scmp.eq.s32.totalorder %s22, 0
      %p145 = por %p143, %p144
      %p146 = scmp.ne.s32.totalorder %s138, %s140
      %p147 = scmp.eq.s32.totalorder %s27, 1
      %p148 = por %p146, %p147
      %p149 = scmp.ne.s32.totalorder %s140, %s141
      %p150 = scmp.eq.s32.totalorder %s27, 0
      %p151 = por %p149, %p150
      %p152 = scmp.ne.s32.totalorder %s140, %s141
      %p153 = scmp.eq.s32.totalorder %s28, 1
      %p154 = por %p152, %p153
      %p156 = scmp.ne.s32.totalorder %s141, %s155
      %p157 = scmp.eq.s32.totalorder %s28, 0
      %p158 = por %p156, %p157
      %s160 = sadd.s32 %s159, 1
      %p163 = scmp.eq.s32.totalorder %s22, 1
      %p164 = scmp.ne.s32.totalorder %s159, %s161
      %p165 = scmp.eq.s32.totalorder %s22, 0
      %p166 = por %p164, %p165
      %p167 = scmp.ne.s32.totalorder %s159, %s161
      %p168 = scmp.eq.s32.totalorder %s27, 1
      %p169 = por %p167, %p168
      %p170 = scmp.ne.s32.totalorder %s161, %s162
      %p171 = scmp.eq.s32.totalorder %s27, 0
      %p172 = por %p170, %p171
      %p173 = scmp.ne.s32.totalorder %s161, %s162
      %p174 = scmp.eq.s32.totalorder %s28, 1
      %p175 = por %p173, %p174
      %p177 = scmp.ne.s32.totalorder %s162, %s176
      %p178 = scmp.eq.s32.totalorder %s28, 0
      %p179 = por %p177, %p178
      %s181 = sadd.s32 %s180, 1
      %p184 = scmp.eq.s32.totalorder %s22, 1
      %p185 = scmp.ne.s32.totalorder %s180, %s182
      %p186 = scmp.eq.s32.totalorder %s22, 0
      %p187 = por %p185, %p186
      %p188 = scmp.ne.s32.totalorder %s180, %s182
      %p189 = scmp.eq.s32.totalorder %s27, 1
      %p190 = por %p188, %p189
      %p191 = scmp.ne.s32.totalorder %s182, %s183
      %p192 = scmp.eq.s32.totalorder %s27, 0
      %p193 = por %p191, %p192
      %p194 = scmp.ne.s32.totalorder %s182, %s183
      %p195 = scmp.eq.s32.totalorder %s28, 1
      %p196 = por %p194, %p195
      %p198 = scmp.ne.s32.totalorder %s183, %s197
      %p199 = scmp.eq.s32.totalorder %s28, 0
      %p200 = por %p198, %p199
      %s202 = sadd.s32 %s201, 1
      %p205 = scmp.eq.s32.totalorder %s22, 1
      %p206 = scmp.ne.s32.totalorder %s201, %s203
      %p207 = scmp.eq.s32.totalorder %s22, 0
      %p208 = por %p206, %p207
      %p209 = scmp.ne.s32.totalorder %s201, %s203
      %p210 = scmp.eq.s32.totalorder %s27, 1
      %p211 = por %p209, %p210
      %p212 = scmp.ne.s32.totalorder %s203, %s204
      %p213 = scmp.eq.s32.totalorder %s27, 0
      %p214 = por %p212, %p213
      %p215 = scmp.ne.s32.totalorder %s203, %s204
      %p216 = scmp.eq.s32.totalorder %s28, 1
      %p217 = por %p215, %p216
      %p219 = scmp.ne.s32.totalorder %s204, %s218
      %p220 = scmp.eq.s32.totalorder %s28, 0
      %p221 = por %p219, %p220
      %s222 = ssub.s32 %s29, %s41
      %s223 = ssub.s32 %s30, %s37
      %s224 = sor.u32 %s222, %s223
      %p225 = scmp.eq.s32.totalorder %s224, 0
      %s227 = sadd.s32 %s226, 1
      %s228 = scalar_select %p225, %s226, %s227
      %p231 = pneg %p225
      %p232 = scmp.eq.s32.totalorder %s22, 1
      %p233 = por %p231, %p232
      %p234 = scmp.ne.s32.totalorder %s226, %s229
      %p235 = scmp.eq.s32.totalorder %s22, 0
      %p236 = por %p234, %p235
      %p237 = scmp.ne.s32.totalorder %s226, %s229
      %p238 = scmp.eq.s32.totalorder %s27, 1
      %p239 = por %p237, %p238
      %p240 = scmp.ne.s32.totalorder %s229, %s230
      %p241 = scmp.eq.s32.totalorder %s27, 0
      %p242 = por %p240, %p241
      %p243 = scmp.ne.s32.totalorder %s229, %s230
      %p244 = scmp.eq.s32.totalorder %s28, 1
      %p245 = por %p243, %p244
      %p247 = scmp.ne.s32.totalorder %s230, %s246
      %p248 = scmp.eq.s32.totalorder %s28, 0
      %p249 = por %p247, %p248
      %s250 = ssub.s32 %s29, %s41
      %s251 = ssub.s32 %s30, %s37
      %s252 = sor.u32 %s250, %s251
      %p253 = scmp.eq.s32.totalorder %s252, 0
      %s255 = sadd.s32 %s254, 1
      %s256 = scalar_select %p253, %s254, %s255
      %p259 = pneg %p253
      %p260 = scmp.eq.s32.totalorder %s22, 1
      %p261 = por %p259, %p260
      %p262 = scmp.ne.s32.totalorder %s254, %s257
      %p263 = scmp.eq.s32.totalorder %s22, 0
      %p264 = por %p262, %p263
      %p265 = scmp.ne.s32.totalorder %s254, %s257
      %p266 = scmp.eq.s32.totalorder %s27, 1
      %p267 = por %p265, %p266
      %p268 = scmp.ne.s32.totalorder %s257, %s258
      %p269 = scmp.eq.s32.totalorder %s27, 0
      %p270 = por %p268, %p269
      %p271 = scmp.ne.s32.totalorder %s257, %s258
      %p272 = scmp.eq.s32.totalorder %s28, 1
      %p273 = por %p271, %p272
      %p275 = scmp.ne.s32.totalorder %s258, %s274
      %p276 = scmp.eq.s32.totalorder %s28, 0
      %p277 = por %p275, %p276
      %p278 = scmp.le.s32.totalorder 1, %s22
      %p279 = scmp.lt.s32.totalorder %s22, 3
      %p280 = pnand %p278, %p279
      %p281 = pneg %p280
      // Predicated region
      $region9: #{tpu_custom_call.1} parent=5 // pred_check
        _
      $region10: #{tpu_custom_call.1} parent=5 // pred_check_branch
        %283 = sbr.rel (%p280) target = $region12
      $region11: #{tpu_custom_call.1} parent=5 // pred_region
        %s284 = ssub.s32 %s22, 1
        // Predicated region
        $region13: #{tpu_custom_call.1} parent=11 // pred_check
          %p285 = pneg %p109
        $region14: #{tpu_custom_call.1} parent=11 // pred_check_branch
          %287 = sbr.rel (%p285) target = $region16
        $region15: #{tpu_custom_call.1} parent=11 // pred_region
          _
        $region16: #{tpu_custom_call.1} parent=11 // pred_fallthru
          _
        // Predicated region
        $region17: #{tpu_custom_call.1} parent=11 // pred_check
          %p288 = pneg %p130
        $region18: #{tpu_custom_call.1} parent=11 // pred_check_branch
          %290 = sbr.rel (%p288) target = $region20
        $region19: #{tpu_custom_call.1} parent=11 // pred_region
          _
        $region20: #{tpu_custom_call.1} parent=11 // pred_fallthru
          _
        // Predicated region
        $region21: #{tpu_custom_call.1} parent=11 // pred_check
          %p291 = pneg %p151
        $region22: #{tpu_custom_call.1} parent=11 // pred_check_branch
          %293 = sbr.rel (%p291) target = $region24
        $region23: #{tpu_custom_call.1} parent=11 // pred_region
          _
        $region24: #{tpu_custom_call.1} parent=11 // pred_fallthru
          _
        // Predicated region
        $region25: #{tpu_custom_call.1} parent=11 // pred_check
          %p294 = pneg %p172
        $region26: #{tpu_custom_call.1} parent=11 // pred_check_branch
          %296 = sbr.rel (%p294) target = $region28
        $region27: #{tpu_custom_call.1} parent=11 // pred_region
          _
        $region28: #{tpu_custom_call.1} parent=11 // pred_fallthru
          _
        // Predicated region
        $region29: #{tpu_custom_call.1} parent=11 // pred_check
          %p297 = pneg %p193
        $region30: #{tpu_custom_call.1} parent=11 // pred_check_branch
          %299 = sbr.rel (%p297) target = $region32
        $region31: #{tpu_custom_call.1} parent=11 // pred_region
          _
        $region32: #{tpu_custom_call.1} parent=11 // pred_fallthru
          _
        // Predicated region
        $region33: #{tpu_custom_call.1} parent=11 // pred_check
          %p300 = pneg %p214
        $region34: #{tpu_custom_call.1} parent=11 // pred_check_branch
          %302 = sbr.rel (%p300) target = $region36
        $region35: #{tpu_custom_call.1} parent=11 // pred_region
          _
        $region36: #{tpu_custom_call.1} parent=11 // pred_fallthru
          _
      $region12: #{tpu_custom_call.1} parent=5 // pred_fallthru
        _
      %p303 = scmp.lt.s32.totalorder %s22, 2
      // Predicated region
      $region37: #{tpu_custom_call.1} parent=5 // pred_check
        %p304 = pneg %p303
      $region38: #{tpu_custom_call.1} parent=5 // pred_check_branch
        %306 = sbr.rel (%p304) target = $region40
      $region39: #{tpu_custom_call.1} parent=5 // pred_region
        // Predicated region
        $region41: #{tpu_custom_call.1} parent=39 // pred_check
          %p307 = pneg %p56
        $region42: #{tpu_custom_call.1} parent=39 // pred_check_branch
          %309 = sbr.rel (%p307) target = $region44
        $region43: #{tpu_custom_call.1} parent=39 // pred_region
          %s310 = smul.u32 4, %s29
          %p311 = scmp.lt.s32.totalorder %s310, 7
          %s312 = scalar_select %p311, %s310, 7
          %p313 = scmp.lt.s32.totalorder %s30, 0
          %s314 = scalar_select %p313, %s30, 0
          %s315 = sadd.s32 %s314, %s312
          %s316 = smul.addr %s315, 8
          %s317 = scalar_lea.vmem %s0, %s316
          %s318 = smul.u32 4, %s29
        $region44: #{tpu_custom_call.1} parent=39 // pred_fallthru
          _
        // Predicated region
        $region45: #{tpu_custom_call.1} parent=39 // pred_check
          %p319 = pneg %p82
        $region46: #{tpu_custom_call.1} parent=39 // pred_check_branch
          %321 = sbr.rel (%p319) target = $region48
        $region47: #{tpu_custom_call.1} parent=39 // pred_region
          %s322 = smul.u32 4, %s29
          %p323 = scmp.lt.s32.totalorder %s322, 7
          %s324 = scalar_select %p323, %s322, 7
          %s325 = smul.addr %s324, 16
          %s326 = smul.addr %s325, 8
          %s327 = scalar_lea.vmem %s1, %s326
          %s328 = smul.u32 4, %s29
        $region48: #{tpu_custom_call.1} parent=39 // pred_fallthru
          _
      $region40: #{tpu_custom_call.1} parent=5 // pred_fallthru
        _
      %p329 = scmp.le.s32.totalorder 1, %s22
      %p330 = scmp.lt.s32.totalorder %s22, 3
      %p331 = pnand %p329, %p330
      %p332 = pneg %p331
      // Predicated region
      $region49: #{tpu_custom_call.1} parent=5 // pred_check
        _
      $region50: #{tpu_custom_call.1} parent=5 // pred_check_branch
        %334 = sbr.rel (%p331) target = $region52
      $region51: #{tpu_custom_call.1} parent=5 // pred_region
        %s335 = ssub.s32 %s22, 1
        %s336 = smul.u32 4, %s31
        %p337 = scmp.lt.s32.totalorder %s336, 7
        %s338 = scalar_select %p337, %s336, 7
        %p339 = scmp.lt.s32.totalorder %s32, 0
        %s340 = scalar_select %p339, %s32, 0
        %s341 = sadd.s32 %s340, %s338
        %s342 = smul.addr %s341, 8
        %s343 = scalar_lea.vmem %s0, %s342
        %p344 = pneg %p62
        %p345 = pneg %p59
        %s346 = smul.u32 4, %s31
        %p347 = scmp.lt.s32.totalorder %s346, 7
        %s348 = scalar_select %p347, %s346, 7
        %s349 = smul.addr %s348, 16
        %s350 = smul.addr %s349, 8
        %s351 = scalar_lea.vmem %s1, %s350
        %p352 = pneg %p88
        %p353 = pneg %p85
        %p354 = pneg %p109
        %p355 = pneg %p106
        %p356 = pneg %p130
        %p357 = pneg %p127
        %p358 = pneg %p151
        %p359 = pneg %p148
        %p360 = pneg %p172
        %p361 = pneg %p169
        %p362 = pneg %p193
        %p363 = pneg %p190
        %p364 = pneg %p214
        %p365 = pneg %p211
        %p366 = pneg %p242
        %p367 = pneg %p239
        %s368 = sand.u32 %s229, 1
        %s369 = scalar_lea.sflag [#allocation5], %s368
        %s370 = sand.u32 %s229, 1
        %s371 = smul.addr %s370, 32
        %s372 = scalar_lea.vmem [#allocation4], %s371
        %p373 = pneg %p270
        %p374 = pneg %p267
        %s375 = sand.u32 %s257, 1
        %s376 = scalar_lea.sflag [#allocation7], %s375
        %s377 = sand.u32 %s257, 1
        %s378 = smul.addr %s377, 32
        %s379 = scalar_lea.vmem [#allocation6], %s378
        %s380 = smul.u32 4, %s31
        %p381 = scmp.lt.s32.totalorder %s380, 7
        %s382 = scalar_select %p381, %s380, 7
        %p383 = scmp.lt.s32.totalorder %s32, 0
        %s384 = scalar_select %p383, %s32, 0
        %s385 = sadd.s32 %s384, %s382
        %s386 = smul.addr %s385, 8
        %s387 = scalar_lea.vmem %s0, %s386
        %s388 = smul.u32 4, %s31
        %s389 = smul.u32 4, %s31
        %p390 = scmp.lt.s32.totalorder %s389, 7
        %s391 = scalar_select %p390, %s389, 7
        %s392 = smul.addr %s391, 16
        %s393 = smul.addr %s392, 8
        %s394 = scalar_lea.vmem %s1, %s393
        %s395 = smul.u32 4, %s31
        %s396 = smul.u32 4, %s31
        %s397 = smul.u32 4, %s31
        %p398 = scmp.eq.s32.totalorder %s32, 0
        // Predicated region
        $region53: #{tpu_custom_call.1} parent=51 // pred_check
          %p399 = pneg %p398
        $region54: #{tpu_custom_call.1} parent=51 // pred_check_branch
          %401 = sbr.rel (%p399) target = $region56
        $region55: #{tpu_custom_call.1} parent=51 // pred_region
          %v402 = vld [vmem:[%s394] sm:$0xff]
          %v403 = vld [vmem:[%s394 + $0x8] sm:$0xff]
          %v404 = vld [vmem:[%s394 + $0x10] sm:$0xff]
          %v405 = vld [vmem:[%s394 + $0x18] sm:$0xff]
          %v406 = vld [vmem:[%s394 + $0x20] sm:$0xff]
          %v407 = vld [vmem:[%s394 + $0x28] sm:$0xff]
          %v408 = vld [vmem:[%s394 + $0x30] sm:$0xff]
          %v409 = vld [vmem:[%s394 + $0x38] sm:$0xff]
          %v410 = vld [vmem:[%s394 + $0x40] sm:$0xff]
          %v411 = vld [vmem:[%s394 + $0x48] sm:$0xff]
          %v412 = vld [vmem:[%s394 + $0x50] sm:$0xff]
          %v413 = vld [vmem:[%s394 + $0x58] sm:$0xff]
          %v414 = vld [vmem:[%s394 + $0x60] sm:$0xff]
          %v415 = vld [vmem:[%s394 + $0x68] sm:$0xff]
          %v416 = vld [vmem:[%s394 + $0x70] sm:$0xff]
          %v417 = vld [vmem:[%s394 + $0x78] sm:$0xff]
          %v418 = vld [vmem:[%s394 + $0x80] sm:$0xff]
          %v419 = vld [vmem:[%s394 + $0x88] sm:$0xff]
          %v420 = vld [vmem:[%s394 + $0x90] sm:$0xff]
          %v421 = vld [vmem:[%s394 + $0x98] sm:$0xff]
          %v422 = vld [vmem:[%s394 + $0xa0] sm:$0xff]
          %v423 = vld [vmem:[%s394 + $0xa8] sm:$0xff]
          %v424 = vld [vmem:[%s394 + $0xb0] sm:$0xff]
          %v425 = vld [vmem:[%s394 + $0xb8] sm:$0xff]
          %v426 = vld [vmem:[%s394 + $0xc0] sm:$0xff]
          %v427 = vld [vmem:[%s394 + $0xc8] sm:$0xff]
          %v428 = vld [vmem:[%s394 + $0xd0] sm:$0xff]
          %v429 = vld [vmem:[%s394 + $0xd8] sm:$0xff]
          %v430 = vld [vmem:[%s394 + $0xe0] sm:$0xff]
          %v431 = vld [vmem:[%s394 + $0xe8] sm:$0xff]
          %v432 = vld [vmem:[%s394 + $0xf0] sm:$0xff]
          %v433 = vld [vmem:[%s394 + $0xf8] sm:$0xff]
          %v434 = vld [vmem:[%s394 + $0x100] sm:$0xff]
          %v435 = vld [vmem:[%s394 + $0x108] sm:$0xff]
          %v436 = vld [vmem:[%s394 + $0x110] sm:$0xff]
          %v437 = vld [vmem:[%s394 + $0x118] sm:$0xff]
          %v438 = vld [vmem:[%s394 + $0x120] sm:$0xff]
          %v439 = vld [vmem:[%s394 + $0x128] sm:$0xff]
          %v440 = vld [vmem:[%s394 + $0x130] sm:$0xff]
          %v441 = vld [vmem:[%s394 + $0x138] sm:$0xff]
          %v442 = vld [vmem:[%s394 + $0x140] sm:$0xff]
          %v443 = vld [vmem:[%s394 + $0x148] sm:$0xff]
          %v444 = vld [vmem:[%s394 + $0x150] sm:$0xff]
          %v445 = vld [vmem:[%s394 + $0x158] sm:$0xff]
          %v446 = vld [vmem:[%s394 + $0x160] sm:$0xff]
          %v447 = vld [vmem:[%s394 + $0x168] sm:$0xff]
          %v448 = vld [vmem:[%s394 + $0x170] sm:$0xff]
          %v449 = vld [vmem:[%s394 + $0x178] sm:$0xff]
          %v450 = vld [vmem:[%s394 + $0x180] sm:$0xff]
          %v451 = vld [vmem:[%s394 + $0x188] sm:$0xff]
          %v452 = vld [vmem:[%s394 + $0x190] sm:$0xff]
          %v453 = vld [vmem:[%s394 + $0x198] sm:$0xff]
          %v454 = vld [vmem:[%s394 + $0x1a0] sm:$0xff]
          %v455 = vld [vmem:[%s394 + $0x1a8] sm:$0xff]
          %v456 = vld [vmem:[%s394 + $0x1b0] sm:$0xff]
          %v457 = vld [vmem:[%s394 + $0x1b8] sm:$0xff]
          %v458 = vld [vmem:[%s394 + $0x1c0] sm:$0xff]
          %v459 = vld [vmem:[%s394 + $0x1c8] sm:$0xff]
          %v460 = vld [vmem:[%s394 + $0x1d0] sm:$0xff]
          %v461 = vld [vmem:[%s394 + $0x1d8] sm:$0xff]
          %v462 = vld [vmem:[%s394 + $0x1e0] sm:$0xff]
          %v463 = vld [vmem:[%s394 + $0x1e8] sm:$0xff]
          %v464 = vld [vmem:[%s394 + $0x1f0] sm:$0xff]
          %v465 = vld [vmem:[%s394 + $0x1f8] sm:$0xff]
          %v466 = vld [vmem:[%s4] sm:$0xff]
          %v467 = vld [vmem:[%s4 + $0x8] sm:$0xff]
          %v468 = vld [vmem:[%s4 + $0x10] sm:$0xff]
          %v469 = vld [vmem:[%s4 + $0x18] sm:$0xff]
          %v470 = vld [vmem:[%s5] sm:$0x1]
          %v472 = vlaneseq
          %v473 = vshrl.u32 %v472, 7
          %v474 = vsub.s32 0, %v473
          %v475 = vrot.slane %v470, %v474
          %vm477 = vcmask 261120
          %v479 = vsel %vm477, %v402, 0
          %v482 = vsel %vm477, %v403, 0
          %v485 = vsel %vm477, %v404, 0
          %v488 = vsel %vm477, %v405, 0
          %v491 = vsel %vm477, %v406, 0
          %v494 = vsel %vm477, %v407, 0
          %v497 = vsel %vm477, %v408, 0
          %v500 = vsel %vm477, %v409, 0
          %v503 = vsel %vm477, %v410, 0
          %v506 = vsel %vm477, %v411, 0
          %v509 = vsel %vm477, %v412, 0
          %v512 = vsel %vm477, %v413, 0
          %v515 = vsel %vm477, %v414, 0
          %v518 = vsel %vm477, %v415, 0
          %v521 = vsel %vm477, %v416, 0
          %v524 = vsel %vm477, %v417, 0
          %v527 = vsel %vm477, %v418, 0
          %v530 = vsel %vm477, %v419, 0
          %v533 = vsel %vm477, %v420, 0
          %v536 = vsel %vm477, %v421, 0
          %v539 = vsel %vm477, %v422, 0
          %v542 = vsel %vm477, %v423, 0
          %v545 = vsel %vm477, %v424, 0
          %v548 = vsel %vm477, %v425, 0
          %v551 = vsel %vm477, %v426, 0
          %v554 = vsel %vm477, %v427, 0
          %v557 = vsel %vm477, %v428, 0
          %v560 = vsel %vm477, %v429, 0
          %v563 = vsel %vm477, %v430, 0
          %v566 = vsel %vm477, %v431, 0
          %v569 = vsel %vm477, %v432, 0
          %v572 = vsel %vm477, %v433, 0
          %v575 = vsel %vm477, %v434, 0
          %v578 = vsel %vm477, %v435, 0
          %v581 = vsel %vm477, %v436, 0
          %v584 = vsel %vm477, %v437, 0
          %v587 = vsel %vm477, %v438, 0
          %v590 = vsel %vm477, %v439, 0
          %v593 = vsel %vm477, %v440, 0
          %v596 = vsel %vm477, %v441, 0
          %v599 = vsel %vm477, %v442, 0
          %v602 = vsel %vm477, %v443, 0
          %v605 = vsel %vm477, %v444, 0
          %v608 = vsel %vm477, %v445, 0
          %v611 = vsel %vm477, %v446, 0
          %v614 = vsel %vm477, %v447, 0
          %v617 = vsel %vm477, %v448, 0
          %v620 = vsel %vm477, %v449, 0
          %v623 = vsel %vm477, %v450, 0
          %v626 = vsel %vm477, %v451, 0
          %v629 = vsel %vm477, %v452, 0
          %v632 = vsel %vm477, %v453, 0
          %v635 = vsel %vm477, %v454, 0
          %v638 = vsel %vm477, %v455, 0
          %v641 = vsel %vm477, %v456, 0
          %v644 = vsel %vm477, %v457, 0
          %v647 = vsel %vm477, %v458, 0
          %v650 = vsel %vm477, %v459, 0
          %v653 = vsel %vm477, %v460, 0
          %v656 = vsel %vm477, %v461, 0
          %v659 = vsel %vm477, %v462, 0
          %v662 = vsel %vm477, %v463, 0
          %v665 = vsel %vm477, %v464, 0
          %v668 = vsel %vm477, %v465, 0
          %670 = vmatprep.subr.mxu0 0.0
          %671 = vmatpush1.msra.mxu0 %v466
          %672 = vmatprep.subr.mxu0 0.0
          %673 = vmatpush1.msra.mxu0 %v467
          %674 = vmatprep.subr.mxu0 0.0
          %675 = vmatpush1.msra.mxu0 %v468
          %676 = vmatprep.subr.mxu0 0.0
          %677 = vmatpush1.msra.mxu0 %v469
          %678 = vmatprep.subr.mxu0 0.0
          %679 = vmatpush1.msra.mxu0 0.0
          %680 = vmatprep.subr.mxu0 0.0
          %681 = vmatpush1.msra.mxu0 0.0
          %682 = vmatprep.subr.mxu0 0.0
          %683 = vmatpush1.msra.mxu0 0.0
          %684 = vmatprep.subr.mxu0 0.0
          %685 = vmatpush1.msra.mxu0 0.0
          %686 = vmatprep.subr.mxu0 0.0
          %687 = vmatpush1.msra.mxu0 0.0
          %688 = vmatprep.subr.mxu0 0.0
          %689 = vmatpush1.msra.mxu0 0.0
          %690 = vmatprep.subr.mxu0 0.0
          %691 = vmatpush1.msra.mxu0 0.0
          %692 = vmatprep.subr.mxu0 0.0
          %693 = vmatpush1.msra.mxu0 0.0
          %694 = vmatprep.subr.mxu0 0.0
          %695 = vmatpush1.msra.mxu0 0.0
          %696 = vmatprep.subr.mxu0 0.0
          %697 = vmatpush1.msra.mxu0 0.0
          %698 = vmatprep.subr.mxu0 0.0
          %699 = vmatpush1.msra.mxu0 0.0
          %700 = vmatprep.subr.mxu0 0.0
          %701 = vmatpush1.msra.mxu0 0.0
          %702 = vmatprep.subr.mxu0 0.0
          %703 = vmatpush1.msra.mxu0 0.0
          %704 = vmatprep.subr.mxu0 0.0
          %705 = vmatpush1.msra.mxu0 0.0
          %706 = vmatprep.subr.mxu0 0.0
          %707 = vmatpush1.msra.mxu0 0.0
          %708 = vmatprep.subr.mxu0 0.0
          %709 = vmatpush1.msra.mxu0 0.0
          %710 = vmatprep.subr.mxu0 0.0
          %711 = vmatpush1.msra.mxu0 0.0
          %712 = vmatprep.subr.mxu0 0.0
          %713 = vmatpush1.msra.mxu0 0.0
          %714 = vmatprep.subr.mxu0 0.0
          %715 = vmatpush1.msra.mxu0 0.0
          %716 = vmatprep.subr.mxu0 0.0
          %717 = vmatpush1.msra.mxu0 0.0
          %718 = vmatprep.subr.mxu0 0.0
          %719 = vmatpush1.msra.mxu0 0.0
          %720 = vmatprep.subr.mxu0 0.0
          %721 = vmatpush1.msra.mxu0 0.0
          %722 = vmatprep.subr.mxu0 0.0
          %723 = vmatpush1.msra.mxu0 0.0
          %724 = vmatprep.subr.mxu0 0.0
          %725 = vmatpush1.msra.mxu0 0.0
          %726 = vmatprep.subr.mxu0 0.0
          %727 = vmatpush1.msra.mxu0 0.0
          %728 = vmatprep.subr.mxu0 0.0
          %729 = vmatpush1.msra.mxu0 0.0
          %730 = vmatprep.subr.mxu0 0.0
          %731 = vmatpush1.msra.mxu0 0.0
          %732 = vmatprep.subr.mxu0 0.0
          %733 = vmatpush1.msra.mxu0 0.0
          %734 = vmatprep.mubr.f32.mxu0 0.0
          %735 = vmatmul.mubr.f32.gmra.mrb[0].mxu0 %v479
          %v736 = vpop.f32.mrb[0].mxu0
          %v737 = vadd.f32 %v475, %v736
          %v738 = vpop.f32.mrb[0].mxu0
          %739 = vmatprep.mubr.f32.mxu0 0.0
          %740 = vmatmul.mubr.f32.gmra.mrb[0].mxu0 %v482
          %v741 = vpop.f32.mrb[0].mxu0
          %v742 = vadd.f32 %v475, %v741
          %v743 = vpop.f32.mrb[0].mxu0
          %744 = vmatprep.mubr.f32.mxu0 0.0
          %745 = vmatmul.mubr.f32.gmra.mrb[0].mxu0 %v485
          %v746 = vpop.f32.mrb[0].mxu0
          %v747 = vadd.f32 %v475, %v746
          %v748 = vpop.f32.mrb[0].mxu0
          %749 = vmatprep.mubr.f32.mxu0 0.0
          %750 = vmatmul.mubr.f32.gmra.mrb[0].mxu0 %v488
          %v751 = vpop.f32.mrb[0].mxu0
          %v752 = vadd.f32 %v475, %v751
          %v753 = vpop.f32.mrb[0].mxu0
          %754 = vmatprep.mubr.f32.mxu0 0.0
          %755 = vmatmul.mubr.f32.gmra.mrb[0].mxu0 %v491
          %v756 = vpop.f32.mrb[0].mxu0
          %v757 = vadd.f32 %v475, %v756
          %v758 = vpop.f32.mrb[0].mxu0
          %759 = vmatprep.mubr.f32.mxu0 0.0
          %760 = vmatmul.mubr.f32.gmra.mrb[0].mxu0 %v494
          %v761 = vpop.f32.mrb[0].mxu0
          %v762 = vadd.f32 %v475, %v761
          %v763 = vpop.f32.mrb[0].mxu0
          %764 = vmatprep.mubr.f32.mxu0 0.0
          %765 = vmatmul.mubr.f32.gmra.mrb[0].mxu0 %v497
          %v766 = vpop.f32.mrb[0].mxu0
          %v767 = vadd.f32 %v475, %v766
          %v768 = vpop.f32.mrb[0].mxu0
          %769 = vmatprep.mubr.f32.mxu0 0.0
          %770 = vmatmul.mubr.f32.gmra.mrb[0].mxu0 %v500
          %v771 = vpop.f32.mrb[0].mxu0
          %v772 = vadd.f32 %v475, %v771
          %v773 = vpop.f32.mrb[0].mxu0
          %774 = vmatprep.mubr.f32.mxu0 0.0
          %775 = vmatmul.mubr.f32.gmra.mrb[0].mxu0 %v503
          %v776 = vpop.f32.mrb[0].mxu0
          %v777 = vadd.f32 %v475, %v776
          %v778 = vpop.f32.mrb[0].mxu0
          %779 = vmatprep.mubr.f32.mxu0 0.0
          %780 = vmatmul.mubr.f32.gmra.mrb[0].mxu0 %v506
          %v781 = vpop.f32.mrb[0].mxu0
          %v782 = vadd.f32 %v475, %v781
          %v783 = vpop.f32.mrb[0].mxu0
          %784 = vmatprep.mubr.f32.mxu0 0.0
          %785 = vmatmul.mubr.f32.gmra.mrb[0].mxu0 %v509
          %v786 = vpop.f32.mrb[0].mxu0
          %v787 = vadd.f32 %v475, %v786
          %v788 = vpop.f32.mrb[0].mxu0
          %789 = vmatprep.mubr.f32.mxu0 0.0
          %790 = vmatmul.mubr.f32.gmra.mrb[0].mxu0 %v512
          %v791 = vpop.f32.mrb[0].mxu0
          %v792 = vadd.f32 %v475, %v791
          %v793 = vpop.f32.mrb[0].mxu0
          %794 = vmatprep.mubr.f32.mxu0 0.0
          %795 = vmatmul.mubr.f32.gmra.mrb[0].mxu0 %v515
          %v796 = vpop.f32.mrb[0].mxu0
          %v797 = vadd.f32 %v475, %v796
          %v798 = vpop.f32.mrb[0].mxu0
          %799 = vmatprep.mubr.f32.mxu0 0.0
          %800 = vmatmul.mubr.f32.gmra.mrb[0].mxu0 %v518
          %v801 = vpop.f32.mrb[0].mxu0
          %v802 = vadd.f32 %v475, %v801
          %v803 = vpop.f32.mrb[0].mxu0
          %804 = vmatprep.mubr.f32.mxu0 0.0
          %805 = vmatmul.mubr.f32.gmra.mrb[0].mxu0 %v521
          %v806 = vpop.f32.mrb[0].mxu0
          %v807 = vadd.f32 %v475, %v806
          %v808 = vpop.f32.mrb[0].mxu0
          %809 = vmatprep.mubr.f32.mxu0 0.0
          %810 = vmatmul.mubr.f32.gmra.mrb[0].mxu0 %v524
          %v811 = vpop.f32.mrb[0].mxu0
          %v812 = vadd.f32 %v475, %v811
          %v813 = vpop.f32.mrb[0].mxu0
          %814 = vmatprep.mubr.f32.mxu0 0.0
          %815 = vmatmul.mubr.f32.gmra.mrb[0].mxu0 %v527
          %v816 = vpop.f32.mrb[0].mxu0
          %v817 = vadd.f32 %v475, %v816
          %v818 = vpop.f32.mrb[0].mxu0
          %819 = vmatprep.mubr.f32.mxu0 0.0
          %820 = vmatmul.mubr.f32.gmra.mrb[0].mxu0 %v530
          %v821 = vpop.f32.mrb[0].mxu0
          %v822 = vadd.f32 %v475, %v821
          %v823 = vpop.f32.mrb[0].mxu0
          %824 = vmatprep.mubr.f32.mxu0 0.0
          %825 = vmatmul.mubr.f32.gmra.mrb[0].mxu0 %v533
          %v826 = vpop.f32.mrb[0].mxu0
          %v827 = vadd.f32 %v475, %v826
          %v828 = vpop.f32.mrb[0].mxu0
          %829 = vmatprep.mubr.f32.mxu0 0.0
          %830 = vmatmul.mubr.f32.gmra.mrb[0].mxu0 %v536
          %v831 = vpop.f32.mrb[0].mxu0
          %v832 = vadd.f32 %v475, %v831
          %v833 = vpop.f32.mrb[0].mxu0
          %834 = vmatprep.mubr.f32.mxu0 0.0
          %835 = vmatmul.mubr.f32.gmra.mrb[0].mxu0 %v539
          %v836 = vpop.f32.mrb[0].mxu0
          %v837 = vadd.f32 %v475, %v836
          %v838 = vpop.f32.mrb[0].mxu0
          %839 = vmatprep.mubr.f32.mxu0 0.0
          %840 = vmatmul.mubr.f32.gmra.mrb[0].mxu0 %v542
          %v841 = vpop.f32.mrb[0].mxu0
          %v842 = vadd.f32 %v475, %v841
          %v843 = vpop.f32.mrb[0].mxu0
          %844 = vmatprep.mubr.f32.mxu0 0.0
          %845 = vmatmul.mubr.f32.gmra.mrb[0].mxu0 %v545
          %v846 = vpop.f32.mrb[0].mxu0
          %v847 = vadd.f32 %v475, %v846
          %v848 = vpop.f32.mrb[0].mxu0
          %849 = vmatprep.mubr.f32.mxu0 0.0
          %850 = vmatmul.mubr.f32.gmra.mrb[0].mxu0 %v548
          %v851 = vpop.f32.mrb[0].mxu0
          %v852 = vadd.f32 %v475, %v851
          %v853 = vpop.f32.mrb[0].mxu0
          %854 = vmatprep.mubr.f32.mxu0 0.0
          %855 = vmatmul.mubr.f32.gmra.mrb[0].mxu0 %v551
          %v856 = vpop.f32.mrb[0].mxu0
          %v857 = vadd.f32 %v475, %v856
          %v858 = vpop.f32.mrb[0].mxu0
          %859 = vmatprep.mubr.f32.mxu0 0.0
          %860 = vmatmul.mubr.f32.gmra.mrb[0].mxu0 %v554
          %v861 = vpop.f32.mrb[0].mxu0
          %v862 = vadd.f32 %v475, %v861
          %v863 = vpop.f32.mrb[0].mxu0
          %864 = vmatprep.mubr.f32.mxu0 0.0
          %865 = vmatmul.mubr.f32.gmra.mrb[0].mxu0 %v557
          %v866 = vpop.f32.mrb[0].mxu0
          %v867 = vadd.f32 %v475, %v866
          %v868 = vpop.f32.mrb[0].mxu0
          %869 = vmatprep.mubr.f32.mxu0 0.0
          %870 = vmatmul.mubr.f32.gmra.mrb[0].mxu0 %v560
          %v871 = vpop.f32.mrb[0].mxu0
          %v872 = vadd.f32 %v475, %v871
          %v873 = vpop.f32.mrb[0].mxu0
          %874 = vmatprep.mubr.f32.mxu0 0.0
          %875 = vmatmul.mubr.f32.gmra.mrb[0].mxu0 %v563
          %v876 = vpop.f32.mrb[0].mxu0
          %v877 = vadd.f32 %v475, %v876
          %v878 = vpop.f32.mrb[0].mxu0
          %879 = vmatprep.mubr.f32.mxu0 0.0
          %880 = vmatmul.mubr.f32.gmra.mrb[0].mxu0 %v566
          %v881 = vpop.f32.mrb[0].mxu0
          %v882 = vadd.f32 %v475, %v881
          %v883 = vpop.f32.mrb[0].mxu0
          %884 = vmatprep.mubr.f32.mxu0 0.0
          %885 = vmatmul.mubr.f32.gmra.mrb[0].mxu0 %v569
          %v886 = vpop.f32.mrb[0].mxu0
          %v887 = vadd.f32 %v475, %v886
          %v888 = vpop.f32.mrb[0].mxu0
          %889 = vmatprep.mubr.f32.mxu0 0.0
          %890 = vmatmul.mubr.f32.gmra.mrb[0].mxu0 %v572
          %v891 = vpop.f32.mrb[0].mxu0
          %v892 = vadd.f32 %v475, %v891
          %v893 = vpop.f32.mrb[0].mxu0
          %894 = vmatprep.mubr.f32.mxu0 0.0
          %895 = vmatmul.mubr.f32.gmra.mrb[0].mxu0 %v575
          %v896 = vpop.f32.mrb[0].mxu0
          %v897 = vadd.f32 %v475, %v896
          %v898 = vpop.f32.mrb[0].mxu0
          %899 = vmatprep.mubr.f32.mxu0 0.0
          %900 = vmatmul.mubr.f32.gmra.mrb[0].mxu0 %v578
          %v901 = vpop.f32.mrb[0].mxu0
          %v902 = vadd.f32 %v475, %v901
          %v903 = vpop.f32.mrb[0].mxu0
          %904 = vmatprep.mubr.f32.mxu0 0.0
          %905 = vmatmul.mubr.f32.gmra.mrb[0].mxu0 %v581
          %v906 = vpop.f32.mrb[0].mxu0
          %v907 = vadd.f32 %v475, %v906
          %v908 = vpop.f32.mrb[0].mxu0
          %909 = vmatprep.mubr.f32.mxu0 0.0
          %910 = vmatmul.mubr.f32.gmra.mrb[0].mxu0 %v584
          %v911 = vpop.f32.mrb[0].mxu0
          %v912 = vadd.f32 %v475, %v911
          %v913 = vpop.f32.mrb[0].mxu0
          %914 = vmatprep.mubr.f32.mxu0 0.0
          %915 = vmatmul.mubr.f32.gmra.mrb[0].mxu0 %v587
          %v916 = vpop.f32.mrb[0].mxu0
          %v917 = vadd.f32 %v475, %v916
          %v918 = vpop.f32.mrb[0].mxu0
          %919 = vmatprep.mubr.f32.mxu0 0.0
          %920 = vmatmul.mubr.f32.gmra.mrb[0].mxu0 %v590
          %v921 = vpop.f32.mrb[0].mxu0
          %v922 = vadd.f32 %v475, %v921
          %v923 = vpop.f32.mrb[0].mxu0
          %924 = vmatprep.mubr.f32.mxu0 0.0
          %925 = vmatmul.mubr.f32.gmra.mrb[0].mxu0 %v593
          %v926 = vpop.f32.mrb[0].mxu0
          %v927 = vadd.f32 %v475, %v926
          %v928 = vpop.f32.mrb[0].mxu0
          %929 = vmatprep.mubr.f32.mxu0 0.0
          %930 = vmatmul.mubr.f32.gmra.mrb[0].mxu0 %v596
          %v931 = vpop.f32.mrb[0].mxu0
          %v932 = vadd.f32 %v475, %v931
          %v933 = vpop.f32.mrb[0].mxu0
          %934 = vmatprep.mubr.f32.mxu0 0.0
          %935 = vmatmul.mubr.f32.gmra.mrb[0].mxu0 %v599
          %v936 = vpop.f32.mrb[0].mxu0
          %v937 = vadd.f32 %v475, %v936
          %v938 = vpop.f32.mrb[0].mxu0
          %939 = vmatprep.mubr.f32.mxu0 0.0
          %940 = vmatmul.mubr.f32.gmra.mrb[0].mxu0 %v602
          %v941 = vpop.f32.mrb[0].mxu0
          %v942 = vadd.f32 %v475, %v941
          %v943 = vpop.f32.mrb[0].mxu0
          %944 = vmatprep.mubr.f32.mxu0 0.0
          %945 = vmatmul.mubr.f32.gmra.mrb[0].mxu0 %v605
          %v946 = vpop.f32.mrb[0].mxu0
          %v947 = vadd.f32 %v475, %v946
          %v948 = vpop.f32.mrb[0].mxu0
          %949 = vmatprep.mubr.f32.mxu0 0.0
          %950 = vmatmul.mubr.f32.gmra.mrb[0].mxu0 %v608
          %v951 = vpop.f32.mrb[0].mxu0
          %v952 = vadd.f32 %v475, %v951
          %v953 = vpop.f32.mrb[0].mxu0
          %954 = vmatprep.mubr.f32.mxu0 0.0
          %955 = vmatmul.mubr.f32.gmra.mrb[0].mxu0 %v611
          %v956 = vpop.f32.mrb[0].mxu0
          %v957 = vadd.f32 %v475, %v956
          %v958 = vpop.f32.mrb[0].mxu0
          %959 = vmatprep.mubr.f32.mxu0 0.0
          %960 = vmatmul.mubr.f32.gmra.mrb[0].mxu0 %v614
          %v961 = vpop.f32.mrb[0].mxu0
          %v962 = vadd.f32 %v475, %v961
          %v963 = vpop.f32.mrb[0].mxu0
          %964 = vmatprep.mubr.f32.mxu0 0.0
          %965 = vmatmul.mubr.f32.gmra.mrb[0].mxu0 %v617
          %v966 = vpop.f32.mrb[0].mxu0
          %v967 = vadd.f32 %v475, %v966
          %v968 = vpop.f32.mrb[0].mxu0
          %969 = vmatprep.mubr.f32.mxu0 0.0
          %970 = vmatmul.mubr.f32.gmra.mrb[0].mxu0 %v620
          %v971 = vpop.f32.mrb[0].mxu0
          %v972 = vadd.f32 %v475, %v971
          %v973 = vpop.f32.mrb[0].mxu0
          %974 = vmatprep.mubr.f32.mxu0 0.0
          %975 = vmatmul.mubr.f32.gmra.mrb[0].mxu0 %v623
          %v976 = vpop.f32.mrb[0].mxu0
          %v977 = vadd.f32 %v475, %v976
          %v978 = vpop.f32.mrb[0].mxu0
          %979 = vmatprep.mubr.f32.mxu0 0.0
          %980 = vmatmul.mubr.f32.gmra.mrb[0].mxu0 %v626
          %v981 = vpop.f32.mrb[0].mxu0
          %v982 = vadd.f32 %v475, %v981
          %v983 = vpop.f32.mrb[0].mxu0
          %984 = vmatprep.mubr.f32.mxu0 0.0
          %985 = vmatmul.mubr.f32.gmra.mrb[0].mxu0 %v629
          %v986 = vpop.f32.mrb[0].mxu0
          %v987 = vadd.f32 %v475, %v986
          %v988 = vpop.f32.mrb[0].mxu0
          %989 = vmatprep.mubr.f32.mxu0 0.0
          %990 = vmatmul.mubr.f32.gmra.mrb[0].mxu0 %v632
          %v991 = vpop.f32.mrb[0].mxu0
          %v992 = vadd.f32 %v475, %v991
          %v993 = vpop.f32.mrb[0].mxu0
          %994 = vmatprep.mubr.f32.mxu0 0.0
          %995 = vmatmul.mubr.f32.gmra.mrb[0].mxu0 %v635
          %v996 = vpop.f32.mrb[0].mxu0
          %v997 = vadd.f32 %v475, %v996
          %v998 = vpop.f32.mrb[0].mxu0
          %999 = vmatprep.mubr.f32.mxu0 0.0
          %1000 = vmatmul.mubr.f32.gmra.mrb[0].mxu0 %v638
          %v1001 = vpop.f32.mrb[0].mxu0
          %v1002 = vadd.f32 %v475, %v1001
          %v1003 = vpop.f32.mrb[0].mxu0
          %1004 = vmatprep.mubr.f32.mxu0 0.0
          %1005 = vmatmul.mubr.f32.gmra.mrb[0].mxu0 %v641
          %v1006 = vpop.f32.mrb[0].mxu0
          %v1007 = vadd.f32 %v475, %v1006
          %v1008 = vpop.f32.mrb[0].mxu0
          %1009 = vmatprep.mubr.f32.mxu0 0.0
          %1010 = vmatmul.mubr.f32.gmra.mrb[0].mxu0 %v644
          %v1011 = vpop.f32.mrb[0].mxu0
          %v1012 = vadd.f32 %v475, %v1011
          %v1013 = vpop.f32.mrb[0].mxu0
          %1014 = vmatprep.mubr.f32.mxu0 0.0
          %1015 = vmatmul.mubr.f32.gmra.mrb[0].mxu0 %v647
          %v1016 = vpop.f32.mrb[0].mxu0
          %v1017 = vadd.f32 %v475, %v1016
          %v1018 = vpop.f32.mrb[0].mxu0
          %1019 = vmatprep.mubr.f32.mxu0 0.0
          %1020 = vmatmul.mubr.f32.gmra.mrb[0].mxu0 %v650
          %v1021 = vpop.f32.mrb[0].mxu0
          %v1022 = vadd.f32 %v475, %v1021
          %v1023 = vpop.f32.mrb[0].mxu0
          %1024 = vmatprep.mubr.f32.mxu0 0.0
          %1025 = vmatmul.mubr.f32.gmra.mrb[0].mxu0 %v653
          %v1026 = vpop.f32.mrb[0].mxu0
          %v1027 = vadd.f32 %v475, %v1026
          %v1028 = vpop.f32.mrb[0].mxu0
          %1029 = vmatprep.mubr.f32.mxu0 0.0
          %1030 = vmatmul.mubr.f32.gmra.mrb[0].mxu0 %v656
          %v1031 = vpop.f32.mrb[0].mxu0
          %v1032 = vadd.f32 %v475, %v1031
          %v1033 = vpop.f32.mrb[0].mxu0
          %1034 = vmatprep.mubr.f32.mxu0 0.0
          %1035 = vmatmul.mubr.f32.gmra.mrb[0].mxu0 %v659
          %v1036 = vpop.f32.mrb[0].mxu0
          %v1037 = vadd.f32 %v475, %v1036
          %v1038 = vpop.f32.mrb[0].mxu0
          %1039 = vmatprep.mubr.f32.mxu0 0.0
          %1040 = vmatmul.mubr.f32.gmra.mrb[0].mxu0 %v662
          %v1041 = vpop.f32.mrb[0].mxu0
          %v1042 = vadd.f32 %v475, %v1041
          %v1043 = vpop.f32.mrb[0].mxu0
          %1044 = vmatprep.mubr.f32.mxu0 0.0
          %1045 = vmatmul.mubr.f32.gmra.mrb[0].mxu0 %v665
          %v1046 = vpop.f32.mrb[0].mxu0
          %v1047 = vadd.f32 %v475, %v1046
          %v1048 = vpop.f32.mrb[0].mxu0
          %1049 = vmatprep.mubr.f32.mxu0 0.0
          %1050 = vmatmul.mubr.f32.gmra.mrb[0].mxu0 %v668
          %v1051 = vpop.f32.mrb[0].mxu0
          %v1052 = vadd.f32 %v475, %v1051
          %v1053 = vpop.f32.mrb[0].mxu0
          %1054 = vdwg.mxu0
          %v1055 = vld [vmem:[%s6] sm:$0xff]
          %v1056 = vld [vmem:[%s6 + $0x8] sm:$0xff]
          %v1057 = vld [vmem:[%s6 + $0x10] sm:$0xff]
          %v1058 = vld [vmem:[%s6 + $0x18] sm:$0xff]
          %v1059 = vld [vmem:[%s7] sm:$0x1]
          %v1061 = vlaneseq
          %v1062 = vshrl.u32 %v1061, 7
          %v1063 = vsub.s32 0, %v1062
          %v1064 = vrot.slane %v1059, %v1063
          %1066 = vmatprep.subr.mxu0 0.0
          %1067 = vmatpush1.msra.mxu0 %v1055
          %1068 = vmatprep.subr.mxu0 0.0
          %1069 = vmatpush1.msra.mxu0 %v1056
          %1070 = vmatprep.subr.mxu0 0.0
          %1071 = vmatpush1.msra.mxu0 %v1057
          %1072 = vmatprep.subr.mxu0 0.0
          %1073 = vmatpush1.msra.mxu0 %v1058
          %1074 = vmatprep.subr.mxu0 0.0
          %1075 = vmatpush1.msra.mxu0 0.0
          %1076 = vmatprep.subr.mxu0 0.0
          %1077 = vmatpush1.msra.mxu0 0.0
          %1078 = vmatprep.subr.mxu0 0.0
          %1079 = vmatpush1.msra.mxu0 0.0
          %1080 = vmatprep.subr.mxu0 0.0
          %1081 = vmatpush1.msra.mxu0 0.0
          %1082 = vmatprep.subr.mxu0 0.0
          %1083 = vmatpush1.msra.mxu0 0.0
          %1084 = vmatprep.subr.mxu0 0.0
          %1085 = vmatpush1.msra.mxu0 0.0
          %1086 = vmatprep.subr.mxu0 0.0
          %1087 = vmatpush1.msra.mxu0 0.0
          %1088 = vmatprep.subr.mxu0 0.0
          %1089 = vmatpush1.msra.mxu0 0.0
          %1090 = vmatprep.subr.mxu0 0.0
          %1091 = vmatpush1.msra.mxu0 0.0
          %1092 = vmatprep.subr.mxu0 0.0
          %1093 = vmatpush1.msra.mxu0 0.0
          %1094 = vmatprep.subr.mxu0 0.0
          %1095 = vmatpush1.msra.mxu0 0.0
          %1096 = vmatprep.subr.mxu0 0.0
          %1097 = vmatpush1.msra.mxu0 0.0
          %1098 = vmatprep.subr.mxu0 0.0
          %1099 = vmatpush1.msra.mxu0 0.0
          %1100 = vmatprep.subr.mxu0 0.0
          %1101 = vmatpush1.msra.mxu0 0.0
          %1102 = vmatprep.subr.mxu0 0.0
          %1103 = vmatpush1.msra.mxu0 0.0
          %1104 = vmatprep.subr.mxu0 0.0
          %1105 = vmatpush1.msra.mxu0 0.0
          %1106 = vmatprep.subr.mxu0 0.0
          %1107 = vmatpush1.msra.mxu0 0.0
          %1108 = vmatprep.subr.mxu0 0.0
          %1109 = vmatpush1.msra.mxu0 0.0
          %1110 = vmatprep.subr.mxu0 0.0
          %1111 = vmatpush1.msra.mxu0 0.0
          %1112 = vmatprep.subr.mxu0 0.0
          %1113 = vmatpush1.msra.mxu0 0.0
          %1114 = vmatprep.subr.mxu0 0.0
          %1115 = vmatpush1.msra.mxu0 0.0
          %1116 = vmatprep.subr.mxu0 0.0
          %1117 = vmatpush1.msra.mxu0 0.0
          %1118 = vmatprep.subr.mxu0 0.0
          %1119 = vmatpush1.msra.mxu0 0.0
          %1120 = vmatprep.subr.mxu0 0.0
          %1121 = vmatpush1.msra.mxu0 0.0
          %1122 = vmatprep.subr.mxu0 0.0
          %1123 = vmatpush1.msra.mxu0 0.0
          %1124 = vmatprep.subr.mxu0 0.0
          %1125 = vmatpush1.msra.mxu0 0.0
          %1126 = vmatprep.subr.mxu0 0.0
          %1127 = vmatpush1.msra.mxu0 0.0
          %1128 = vmatprep.subr.mxu0 0.0
          %1129 = vmatpush1.msra.mxu0 0.0
          %1130 = vmatprep.mubr.f32.mxu0 0.0
          %1131 = vmatmul.mubr.f32.gmra.mrb[0].mxu0 %v479
          %v1132 = vpop.f32.mrb[0].mxu0
          %v1133 = vadd.f32 %v1064, %v1132
          %v1134 = vpop.f32.mrb[0].mxu0
          %1135 = vmatprep.mubr.f32.mxu0 0.0
          %1136 = vmatmul.mubr.f32.gmra.mrb[0].mxu0 %v482
          %v1137 = vpop.f32.mrb[0].mxu0
          %v1138 = vadd.f32 %v1064, %v1137
          %v1139 = vpop.f32.mrb[0].mxu0
          %1140 = vmatprep.mubr.f32.mxu0 0.0
          %1141 = vmatmul.mubr.f32.gmra.mrb[0].mxu0 %v485
          %v1142 = vpop.f32.mrb[0].mxu0
          %v1143 = vadd.f32 %v1064, %v1142
          %v1144 = vpop.f32.mrb[0].mxu0
          %1145 = vmatprep.mubr.f32.mxu0 0.0
          %1146 = vmatmul.mubr.f32.gmra.mrb[0].mxu0 %v488
          %v1147 = vpop.f32.mrb[0].mxu0
          %v1148 = vadd.f32 %v1064, %v1147
          %v1149 = vpop.f32.mrb[0].mxu0
          %1150 = vmatprep.mubr.f32.mxu0 0.0
          %1151 = vmatmul.mubr.f32.gmra.mrb[0].mxu0 %v491
          %v1152 = vpop.f32.mrb[0].mxu0
          %v1153 = vadd.f32 %v1064, %v1152
          %v1154 = vpop.f32.mrb[0].mxu0
          %1155 = vmatprep.mubr.f32.mxu0 0.0
          %1156 = vmatmul.mubr.f32.gmra.mrb[0].mxu0 %v494
          %v1157 = vpop.f32.mrb[0].mxu0
          %v1158 = vadd.f32 %v1064, %v1157
          %v1159 = vpop.f32.mrb[0].mxu0
          %1160 = vmatprep.mubr.f32.mxu0 0.0
          %1161 = vmatmul.mubr.f32.gmra.mrb[0].mxu0 %v497
          %v1162 = vpop.f32.mrb[0].mxu0
          %v1163 = vadd.f32 %v1064, %v1162
          %v1164 = vpop.f32.mrb[0].mxu0
          %1165 = vmatprep.mubr.f32.mxu0 0.0
          %1166 = vmatmul.mubr.f32.gmra.mrb[0].mxu0 %v500
          %v1167 = vpop.f32.mrb[0].mxu0
          %v1168 = vadd.f32 %v1064, %v1167
          %v1169 = vpop.f32.mrb[0].mxu0
          %1170 = vmatprep.mubr.f32.mxu0 0.0
          %1171 = vmatmul.mubr.f32.gmra.mrb[0].mxu0 %v503
          %v1172 = vpop.f32.mrb[0].mxu0
          %v1173 = vadd.f32 %v1064, %v1172
          %v1174 = vpop.f32.mrb[0].mxu0
          %1175 = vmatprep.mubr.f32.mxu0 0.0
          %1176 = vmatmul.mubr.f32.gmra.mrb[0].mxu0 %v506
          %v1177 = vpop.f32.mrb[0].mxu0
          %v1178 = vadd.f32 %v1064, %v1177
          %v1179 = vpop.f32.mrb[0].mxu0
          %1180 = vmatprep.mubr.f32.mxu0 0.0
          %1181 = vmatmul.mubr.f32.gmra.mrb[0].mxu0 %v509
          %v1182 = vpop.f32.mrb[0].mxu0
          %v1183 = vadd.f32 %v1064, %v1182
          %v1184 = vpop.f32.mrb[0].mxu0
          %1185 = vmatprep.mubr.f32.mxu0 0.0
          %1186 = vmatmul.mubr.f32.gmra.mrb[0].mxu0 %v512
          %v1187 = vpop.f32.mrb[0].mxu0
          %v1188 = vadd.f32 %v1064, %v1187
          %v1189 = vpop.f32.mrb[0].mxu0
          %1190 = vmatprep.mubr.f32.mxu0 0.0
          %1191 = vmatmul.mubr.f32.gmra.mrb[0].mxu0 %v515
          %v1192 = vpop.f32.mrb[0].mxu0
          %v1193 = vadd.f32 %v1064, %v1192
          %v1194 = vpop.f32.mrb[0].mxu0
          %1195 = vmatprep.mubr.f32.mxu0 0.0
          %1196 = vmatmul.mubr.f32.gmra.mrb[0].mxu0 %v518
          %v1197 = vpop.f32.mrb[0].mxu0
          %v1198 = vadd.f32 %v1064, %v1197
          %v1199 = vpop.f32.mrb[0].mxu0
          %1200 = vmatprep.mubr.f32.mxu0 0.0
          %1201 = vmatmul.mubr.f32.gmra.mrb[0].mxu0 %v521
          %v1202 = vpop.f32.mrb[0].mxu0
          %v1203 = vadd.f32 %v1064, %v1202
          %v1204 = vpop.f32.mrb[0].mxu0
          %1205 = vmatprep.mubr.f32.mxu0 0.0
          %1206 = vmatmul.mubr.f32.gmra.mrb[0].mxu0 %v524
          %v1207 = vpop.f32.mrb[0].mxu0
          %v1208 = vadd.f32 %v1064, %v1207
          %v1209 = vpop.f32.mrb[0].mxu0
          %1210 = vmatprep.mubr.f32.mxu0 0.0
          %1211 = vmatmul.mubr.f32.gmra.mrb[0].mxu0 %v527
          %v1212 = vpop.f32.mrb[0].mxu0
          %v1213 = vadd.f32 %v1064, %v1212
          %v1214 = vpop.f32.mrb[0].mxu0
          %1215 = vmatprep.mubr.f32.mxu0 0.0
          %1216 = vmatmul.mubr.f32.gmra.mrb[0].mxu0 %v530
          %v1217 = vpop.f32.mrb[0].mxu0
          %v1218 = vadd.f32 %v1064, %v1217
          %v1219 = vpop.f32.mrb[0].mxu0
          %1220 = vmatprep.mubr.f32.mxu0 0.0
          %1221 = vmatmul.mubr.f32.gmra.mrb[0].mxu0 %v533
          %v1222 = vpop.f32.mrb[0].mxu0
          %v1223 = vadd.f32 %v1064, %v1222
          %v1224 = vpop.f32.mrb[0].mxu0
          %1225 = vmatprep.mubr.f32.mxu0 0.0
          %1226 = vmatmul.mubr.f32.gmra.mrb[0].mxu0 %v536
          %v1227 = vpop.f32.mrb[0].mxu0
          %v1228 = vadd.f32 %v1064, %v1227
          %v1229 = vpop.f32.mrb[0].mxu0
          %1230 = vmatprep.mubr.f32.mxu0 0.0
          %1231 = vmatmul.mubr.f32.gmra.mrb[0].mxu0 %v539
          %v1232 = vpop.f32.mrb[0].mxu0
          %v1233 = vadd.f32 %v1064, %v1232
          %v1234 = vpop.f32.mrb[0].mxu0
          %1235 = vmatprep.mubr.f32.mxu0 0.0
          %1236 = vmatmul.mubr.f32.gmra.mrb[0].mxu0 %v542
          %v1237 = vpop.f32.mrb[0].mxu0
          %v1238 = vadd.f32 %v1064, %v1237
          %v1239 = vpop.f32.mrb[0].mxu0
          %1240 = vmatprep.mubr.f32.mxu0 0.0
          %1241 = vmatmul.mubr.f32.gmra.mrb[0].mxu0 %v545
          %v1242 = vpop.f32.mrb[0].mxu0
          %v1243 = vadd.f32 %v1064, %v1242
          %v1244 = vpop.f32.mrb[0].mxu0
          %1245 = vmatprep.mubr.f32.mxu0 0.0
          %1246 = vmatmul.mubr.f32.gmra.mrb[0].mxu0 %v548
          %v1247 = vpop.f32.mrb[0].mxu0
          %v1248 = vadd.f32 %v1064, %v1247
          %v1249 = vpop.f32.mrb[0].mxu0
          %1250 = vmatprep.mubr.f32.mxu0 0.0
          %1251 = vmatmul.mubr.f32.gmra.mrb[0].mxu0 %v551
          %v1252 = vpop.f32.mrb[0].mxu0
          %v1253 = vadd.f32 %v1064, %v1252
          %v1254 = vpop.f32.mrb[0].mxu0
          %1255 = vmatprep.mubr.f32.mxu0 0.0
          %1256 = vmatmul.mubr.f32.gmra.mrb[0].mxu0 %v554
          %v1257 = vpop.f32.mrb[0].mxu0
          %v1258 = vadd.f32 %v1064, %v1257
          %v1259 = vpop.f32.mrb[0].mxu0
          %1260 = vmatprep.mubr.f32.mxu0 0.0
          %1261 = vmatmul.mubr.f32.gmra.mrb[0].mxu0 %v557
          %v1262 = vpop.f32.mrb[0].mxu0
          %v1263 = vadd.f32 %v1064, %v1262
          %v1264 = vpop.f32.mrb[0].mxu0
          %1265 = vmatprep.mubr.f32.mxu0 0.0
          %1266 = vmatmul.mubr.f32.gmra.mrb[0].mxu0 %v560
          %v1267 = vpop.f32.mrb[0].mxu0
          %v1268 = vadd.f32 %v1064, %v1267
          %v1269 = vpop.f32.mrb[0].mxu0
          %1270 = vmatprep.mubr.f32.mxu0 0.0
          %1271 = vmatmul.mubr.f32.gmra.mrb[0].mxu0 %v563
          %v1272 = vpop.f32.mrb[0].mxu0
          %v1273 = vadd.f32 %v1064, %v1272
          %v1274 = vpop.f32.mrb[0].mxu0
          %1275 = vmatprep.mubr.f32.mxu0 0.0
          %1276 = vmatmul.mubr.f32.gmra.mrb[0].mxu0 %v566
          %v1277 = vpop.f32.mrb[0].mxu0
          %v1278 = vadd.f32 %v1064, %v1277
          %v1279 = vpop.f32.mrb[0].mxu0
          %1280 = vmatprep.mubr.f32.mxu0 0.0
          %1281 = vmatmul.mubr.f32.gmra.mrb[0].mxu0 %v569
          %v1282 = vpop.f32.mrb[0].mxu0
          %v1283 = vadd.f32 %v1064, %v1282
          %v1284 = vpop.f32.mrb[0].mxu0
          %1285 = vmatprep.mubr.f32.mxu0 0.0
          %1286 = vmatmul.mubr.f32.gmra.mrb[0].mxu0 %v572
          %v1287 = vpop.f32.mrb[0].mxu0
          %v1288 = vadd.f32 %v1064, %v1287
          %v1289 = vpop.f32.mrb[0].mxu0
          %1290 = vmatprep.mubr.f32.mxu0 0.0
          %1291 = vmatmul.mubr.f32.gmra.mrb[0].mxu0 %v575
          %v1292 = vpop.f32.mrb[0].mxu0
          %v1293 = vadd.f32 %v1064, %v1292
          %v1294 = vpop.f32.mrb[0].mxu0
          %1295 = vmatprep.mubr.f32.mxu0 0.0
          %1296 = vmatmul.mubr.f32.gmra.mrb[0].mxu0 %v578
          %v1297 = vpop.f32.mrb[0].mxu0
          %v1298 = vadd.f32 %v1064, %v1297
          %v1299 = vpop.f32.mrb[0].mxu0
          %1300 = vmatprep.mubr.f32.mxu0 0.0
          %1301 = vmatmul.mubr.f32.gmra.mrb[0].mxu0 %v581
          %v1302 = vpop.f32.mrb[0].mxu0
          %v1303 = vadd.f32 %v1064, %v1302
          %v1304 = vpop.f32.mrb[0].mxu0
          %1305 = vmatprep.mubr.f32.mxu0 0.0
          %1306 = vmatmul.mubr.f32.gmra.mrb[0].mxu0 %v584
          %v1307 = vpop.f32.mrb[0].mxu0
          %v1308 = vadd.f32 %v1064, %v1307
          %v1309 = vpop.f32.mrb[0].mxu0
          %1310 = vmatprep.mubr.f32.mxu0 0.0
          %1311 = vmatmul.mubr.f32.gmra.mrb[0].mxu0 %v587
          %v1312 = vpop.f32.mrb[0].mxu0
          %v1313 = vadd.f32 %v1064, %v1312
          %v1314 = vpop.f32.mrb[0].mxu0
          %1315 = vmatprep.mubr.f32.mxu0 0.0
          %1316 = vmatmul.mubr.f32.gmra.mrb[0].mxu0 %v590
          %v1317 = vpop.f32.mrb[0].mxu0
          %v1318 = vadd.f32 %v1064, %v1317
          %v1319 = vpop.f32.mrb[0].mxu0
          %1320 = vmatprep.mubr.f32.mxu0 0.0
          %1321 = vmatmul.mubr.f32.gmra.mrb[0].mxu0 %v593
          %v1322 = vpop.f32.mrb[0].mxu0
          %v1323 = vadd.f32 %v1064, %v1322
          %v1324 = vpop.f32.mrb[0].mxu0
          %1325 = vmatprep.mubr.f32.mxu0 0.0
          %1326 = vmatmul.mubr.f32.gmra.mrb[0].mxu0 %v596
          %v1327 = vpop.f32.mrb[0].mxu0
          %v1328 = vadd.f32 %v1064, %v1327
          %v1329 = vpop.f32.mrb[0].mxu0
          %1330 = vmatprep.mubr.f32.mxu0 0.0
          %1331 = vmatmul.mubr.f32.gmra.mrb[0].mxu0 %v599
          %v1332 = vpop.f32.mrb[0].mxu0
          %v1333 = vadd.f32 %v1064, %v1332
          %v1334 = vpop.f32.mrb[0].mxu0
          %1335 = vmatprep.mubr.f32.mxu0 0.0
          %1336 = vmatmul.mubr.f32.gmra.mrb[0].mxu0 %v602
          %v1337 = vpop.f32.mrb[0].mxu0
          %v1338 = vadd.f32 %v1064, %v1337
          %v1339 = vpop.f32.mrb[0].mxu0
          %1340 = vmatprep.mubr.f32.mxu0 0.0
          %1341 = vmatmul.mubr.f32.gmra.mrb[0].mxu0 %v605
          %v1342 = vpop.f32.mrb[0].mxu0
          %v1343 = vadd.f32 %v1064, %v1342
          %v1344 = vpop.f32.mrb[0].mxu0
          %1345 = vmatprep.mubr.f32.mxu0 0.0
          %1346 = vmatmul.mubr.f32.gmra.mrb[0].mxu0 %v608
          %v1347 = vpop.f32.mrb[0].mxu0
          %v1348 = vadd.f32 %v1064, %v1347
          %v1349 = vpop.f32.mrb[0].mxu0
          %1350 = vmatprep.mubr.f32.mxu0 0.0
          %1351 = vmatmul.mubr.f32.gmra.mrb[0].mxu0 %v611
          %v1352 = vpop.f32.mrb[0].mxu0
          %v1353 = vadd.f32 %v1064, %v1352
          %v1354 = vpop.f32.mrb[0].mxu0
          %1355 = vmatprep.mubr.f32.mxu0 0.0
          %1356 = vmatmul.mubr.f32.gmra.mrb[0].mxu0 %v614
          %v1357 = vpop.f32.mrb[0].mxu0
          %v1358 = vadd.f32 %v1064, %v1357
          %v1359 = vpop.f32.mrb[0].mxu0
          %1360 = vmatprep.mubr.f32.mxu0 0.0
          %1361 = vmatmul.mubr.f32.gmra.mrb[0].mxu0 %v617
          %v1362 = vpop.f32.mrb[0].mxu0
          %v1363 = vadd.f32 %v1064, %v1362
          %v1364 = vpop.f32.mrb[0].mxu0
          %1365 = vmatprep.mubr.f32.mxu0 0.0
          %1366 = vmatmul.mubr.f32.gmra.mrb[0].mxu0 %v620
          %v1367 = vpop.f32.mrb[0].mxu0
          %v1368 = vadd.f32 %v1064, %v1367
          %v1369 = vpop.f32.mrb[0].mxu0
          %1370 = vmatprep.mubr.f32.mxu0 0.0
          %1371 = vmatmul.mubr.f32.gmra.mrb[0].mxu0 %v623
          %v1372 = vpop.f32.mrb[0].mxu0
          %v1373 = vadd.f32 %v1064, %v1372
          %v1374 = vpop.f32.mrb[0].mxu0
          %1375 = vmatprep.mubr.f32.mxu0 0.0
          %1376 = vmatmul.mubr.f32.gmra.mrb[0].mxu0 %v626
          %v1377 = vpop.f32.mrb[0].mxu0
          %v1378 = vadd.f32 %v1064, %v1377
          %v1379 = vpop.f32.mrb[0].mxu0
          %1380 = vmatprep.mubr.f32.mxu0 0.0
          %1381 = vmatmul.mubr.f32.gmra.mrb[0].mxu0 %v629
          %v1382 = vpop.f32.mrb[0].mxu0
          %v1383 = vadd.f32 %v1064, %v1382
          %v1384 = vpop.f32.mrb[0].mxu0
          %1385 = vmatprep.mubr.f32.mxu0 0.0
          %1386 = vmatmul.mubr.f32.gmra.mrb[0].mxu0 %v632
          %v1387 = vpop.f32.mrb[0].mxu0
          %v1388 = vadd.f32 %v1064, %v1387
          %v1389 = vpop.f32.mrb[0].mxu0
          %1390 = vmatprep.mubr.f32.mxu0 0.0
          %1391 = vmatmul.mubr.f32.gmra.mrb[0].mxu0 %v635
          %v1392 = vpop.f32.mrb[0].mxu0
          %v1393 = vadd.f32 %v1064, %v1392
          %v1394 = vpop.f32.mrb[0].mxu0
          %1395 = vmatprep.mubr.f32.mxu0 0.0
          %1396 = vmatmul.mubr.f32.gmra.mrb[0].mxu0 %v638
          %v1397 = vpop.f32.mrb[0].mxu0
          %v1398 = vadd.f32 %v1064, %v1397
          %v1399 = vpop.f32.mrb[0].mxu0
          %1400 = vmatprep.mubr.f32.mxu0 0.0
          %1401 = vmatmul.mubr.f32.gmra.mrb[0].mxu0 %v641
          %v1402 = vpop.f32.mrb[0].mxu0
          %v1403 = vadd.f32 %v1064, %v1402
          %v1404 = vpop.f32.mrb[0].mxu0
          %1405 = vmatprep.mubr.f32.mxu0 0.0
          %1406 = vmatmul.mubr.f32.gmra.mrb[0].mxu0 %v644
          %v1407 = vpop.f32.mrb[0].mxu0
          %v1408 = vadd.f32 %v1064, %v1407
          %v1409 = vpop.f32.mrb[0].mxu0
          %1410 = vmatprep.mubr.f32.mxu0 0.0
          %1411 = vmatmul.mubr.f32.gmra.mrb[0].mxu0 %v647
          %v1412 = vpop.f32.mrb[0].mxu0
          %v1413 = vadd.f32 %v1064, %v1412
          %v1414 = vpop.f32.mrb[0].mxu0
          %1415 = vmatprep.mubr.f32.mxu0 0.0
          %1416 = vmatmul.mubr.f32.gmra.mrb[0].mxu0 %v650
          %v1417 = vpop.f32.mrb[0].mxu0
          %v1418 = vadd.f32 %v1064, %v1417
          %v1419 = vpop.f32.mrb[0].mxu0
          %1420 = vmatprep.mubr.f32.mxu0 0.0
          %1421 = vmatmul.mubr.f32.gmra.mrb[0].mxu0 %v653
          %v1422 = vpop.f32.mrb[0].mxu0
          %v1423 = vadd.f32 %v1064, %v1422
          %v1424 = vpop.f32.mrb[0].mxu0
          %1425 = vmatprep.mubr.f32.mxu0 0.0
          %1426 = vmatmul.mubr.f32.gmra.mrb[0].mxu0 %v656
          %v1427 = vpop.f32.mrb[0].mxu0
          %v1428 = vadd.f32 %v1064, %v1427
          %v1429 = vpop.f32.mrb[0].mxu0
          %1430 = vmatprep.mubr.f32.mxu0 0.0
          %1431 = vmatmul.mubr.f32.gmra.mrb[0].mxu0 %v659
          %v1432 = vpop.f32.mrb[0].mxu0
          %v1433 = vadd.f32 %v1064, %v1432
          %v1434 = vpop.f32.mrb[0].mxu0
          %1435 = vmatprep.mubr.f32.mxu0 0.0
          %1436 = vmatmul.mubr.f32.gmra.mrb[0].mxu0 %v662
          %v1437 = vpop.f32.mrb[0].mxu0
          %v1438 = vadd.f32 %v1064, %v1437
          %v1439 = vpop.f32.mrb[0].mxu0
          %1440 = vmatprep.mubr.f32.mxu0 0.0
          %1441 = vmatmul.mubr.f32.gmra.mrb[0].mxu0 %v665
          %v1442 = vpop.f32.mrb[0].mxu0
          %v1443 = vadd.f32 %v1064, %v1442
          %v1444 = vpop.f32.mrb[0].mxu0
          %1445 = vmatprep.mubr.f32.mxu0 0.0
          %1446 = vmatmul.mubr.f32.gmra.mrb[0].mxu0 %v668
          %v1447 = vpop.f32.mrb[0].mxu0
          %v1448 = vadd.f32 %v1064, %v1447
          %v1449 = vpop.f32.mrb[0].mxu0
          %1450 = vdwg.mxu0
          %1451 = vst.msk [vmem:[#allocation2] sm:$0xff] %vm477, %v737
          %1452 = vst.msk [vmem:[#allocation2 + $0x8] sm:$0xff] %vm477, %v742
          %1453 = vst.msk [vmem:[#allocation2 + $0x10] sm:$0xff] %vm477, %v747
          %1454 = vst.msk [vmem:[#allocation2 + $0x18] sm:$0xff] %vm477, %v752
          %1455 = vst.msk [vmem:[#allocation2 + $0x20] sm:$0xff] %vm477, %v757
          %1456 = vst.msk [vmem:[#allocation2 + $0x28] sm:$0xff] %vm477, %v762
          %1457 = vst.msk [vmem:[#allocation2 + $0x30] sm:$0xff] %vm477, %v767
          %1458 = vst.msk [vmem:[#allocation2 + $0x38] sm:$0xff] %vm477, %v772
          %1459 = vst.msk [vmem:[#allocation2 + $0x40] sm:$0xff] %vm477, %v777
          %1460 = vst.msk [vmem:[#allocation2 + $0x48] sm:$0xff] %vm477, %v782
          %1461 = vst.msk [vmem:[#allocation2 + $0x50] sm:$0xff] %vm477, %v787
          %1462 = vst.msk [vmem:[#allocation2 + $0x58] sm:$0xff] %vm477, %v792
          %1463 = vst.msk [vmem:[#allocation2 + $0x60] sm:$0xff] %vm477, %v797
          %1464 = vst.msk [vmem:[#allocation2 + $0x68] sm:$0xff] %vm477, %v802
          %1465 = vst.msk [vmem:[#allocation2 + $0x70] sm:$0xff] %vm477, %v807
          %1466 = vst.msk [vmem:[#allocation2 + $0x78] sm:$0xff] %vm477, %v812
          %1467 = vst.msk [vmem:[#allocation2 + $0x80] sm:$0xff] %vm477, %v817
          %1468 = vst.msk [vmem:[#allocation2 + $0x88] sm:$0xff] %vm477, %v822
          %1469 = vst.msk [vmem:[#allocation2 + $0x90] sm:$0xff] %vm477, %v827
          %1470 = vst.msk [vmem:[#allocation2 + $0x98] sm:$0xff] %vm477, %v832
          %1471 = vst.msk [vmem:[#allocation2 + $0xa0] sm:$0xff] %vm477, %v837
          %1472 = vst.msk [vmem:[#allocation2 + $0xa8] sm:$0xff] %vm477, %v842
          %1473 = vst.msk [vmem:[#allocation2 + $0xb0] sm:$0xff] %vm477, %v847
          %1474 = vst.msk [vmem:[#allocation2 + $0xb8] sm:$0xff] %vm477, %v852
          %1475 = vst.msk [vmem:[#allocation2 + $0xc0] sm:$0xff] %vm477, %v857
          %1476 = vst.msk [vmem:[#allocation2 + $0xc8] sm:$0xff] %vm477, %v862
          %1477 = vst.msk [vmem:[#allocation2 + $0xd0] sm:$0xff] %vm477, %v867
          %1478 = vst.msk [vmem:[#allocation2 + $0xd8] sm:$0xff] %vm477, %v872
          %1479 = vst.msk [vmem:[#allocation2 + $0xe0] sm:$0xff] %vm477, %v877
          %1480 = vst.msk [vmem:[#allocation2 + $0xe8] sm:$0xff] %vm477, %v882
          %1481 = vst.msk [vmem:[#allocation2 + $0xf0] sm:$0xff] %vm477, %v887
          %1482 = vst.msk [vmem:[#allocation2 + $0xf8] sm:$0xff] %vm477, %v892
          %1483 = vst.msk [vmem:[#allocation2 + $0x100] sm:$0xff] %vm477, %v897
          %1484 = vst.msk [vmem:[#allocation2 + $0x108] sm:$0xff] %vm477, %v902
          %1485 = vst.msk [vmem:[#allocation2 + $0x110] sm:$0xff] %vm477, %v907
          %1486 = vst.msk [vmem:[#allocation2 + $0x118] sm:$0xff] %vm477, %v912
          %1487 = vst.msk [vmem:[#allocation2 + $0x120] sm:$0xff] %vm477, %v917
          %1488 = vst.msk [vmem:[#allocation2 + $0x128] sm:$0xff] %vm477, %v922
          %1489 = vst.msk [vmem:[#allocation2 + $0x130] sm:$0xff] %vm477, %v927
          %1490 = vst.msk [vmem:[#allocation2 + $0x138] sm:$0xff] %vm477, %v932
          %1491 = vst.msk [vmem:[#allocation2 + $0x140] sm:$0xff] %vm477, %v937
          %1492 = vst.msk [vmem:[#allocation2 + $0x148] sm:$0xff] %vm477, %v942
          %1493 = vst.msk [vmem:[#allocation2 + $0x150] sm:$0xff] %vm477, %v947
          %1494 = vst.msk [vmem:[#allocation2 + $0x158] sm:$0xff] %vm477, %v952
          %1495 = vst.msk [vmem:[#allocation2 + $0x160] sm:$0xff] %vm477, %v957
          %1496 = vst.msk [vmem:[#allocation2 + $0x168] sm:$0xff] %vm477, %v962
          %1497 = vst.msk [vmem:[#allocation2 + $0x170] sm:$0xff] %vm477, %v967
          %1498 = vst.msk [vmem:[#allocation2 + $0x178] sm:$0xff] %vm477, %v972
          %1499 = vst.msk [vmem:[#allocation2 + $0x180] sm:$0xff] %vm477, %v977
          %1500 = vst.msk [vmem:[#allocation2 + $0x188] sm:$0xff] %vm477, %v982
          %1501 = vst.msk [vmem:[#allocation2 + $0x190] sm:$0xff] %vm477, %v987
          %1502 = vst.msk [vmem:[#allocation2 + $0x198] sm:$0xff] %vm477, %v992
          %1503 = vst.msk [vmem:[#allocation2 + $0x1a0] sm:$0xff] %vm477, %v997
          %1504 = vst.msk [vmem:[#allocation2 + $0x1a8] sm:$0xff] %vm477, %v1002
          %1505 = vst.msk [vmem:[#allocation2 + $0x1b0] sm:$0xff] %vm477, %v1007
          %1506 = vst.msk [vmem:[#allocation2 + $0x1b8] sm:$0xff] %vm477, %v1012
          %1507 = vst.msk [vmem:[#allocation2 + $0x1c0] sm:$0xff] %vm477, %v1017
          %1508 = vst.msk [vmem:[#allocation2 + $0x1c8] sm:$0xff] %vm477, %v1022
          %1509 = vst.msk [vmem:[#allocation2 + $0x1d0] sm:$0xff] %vm477, %v1027
          %1510 = vst.msk [vmem:[#allocation2 + $0x1d8] sm:$0xff] %vm477, %v1032
          %1511 = vst.msk [vmem:[#allocation2 + $0x1e0] sm:$0xff] %vm477, %v1037
          %1512 = vst.msk [vmem:[#allocation2 + $0x1e8] sm:$0xff] %vm477, %v1042
          %1513 = vst.msk [vmem:[#allocation2 + $0x1f0] sm:$0xff] %vm477, %v1047
          %1514 = vst.msk [vmem:[#allocation2 + $0x1f8] sm:$0xff] %vm477, %v1052
          %1515 = vst.msk [vmem:[#allocation3] sm:$0xff] %vm477, %v1133
          %1516 = vst.msk [vmem:[#allocation3 + $0x8] sm:$0xff] %vm477, %v1138
          %1517 = vst.msk [vmem:[#allocation3 + $0x10] sm:$0xff] %vm477, %v1143
          %1518 = vst.msk [vmem:[#allocation3 + $0x18] sm:$0xff] %vm477, %v1148
          %1519 = vst.msk [vmem:[#allocation3 + $0x20] sm:$0xff] %vm477, %v1153
          %1520 = vst.msk [vmem:[#allocation3 + $0x28] sm:$0xff] %vm477, %v1158
          %1521 = vst.msk [vmem:[#allocation3 + $0x30] sm:$0xff] %vm477, %v1163
          %1522 = vst.msk [vmem:[#allocation3 + $0x38] sm:$0xff] %vm477, %v1168
          %1523 = vst.msk [vmem:[#allocation3 + $0x40] sm:$0xff] %vm477, %v1173
          %1524 = vst.msk [vmem:[#allocation3 + $0x48] sm:$0xff] %vm477, %v1178
          %1525 = vst.msk [vmem:[#allocation3 + $0x50] sm:$0xff] %vm477, %v1183
          %1526 = vst.msk [vmem:[#allocation3 + $0x58] sm:$0xff] %vm477, %v1188
          %1527 = vst.msk [vmem:[#allocation3 + $0x60] sm:$0xff] %vm477, %v1193
          %1528 = vst.msk [vmem:[#allocation3 + $0x68] sm:$0xff] %vm477, %v1198
          %1529 = vst.msk [vmem:[#allocation3 + $0x70] sm:$0xff] %vm477, %v1203
          %1530 = vst.msk [vmem:[#allocation3 + $0x78] sm:$0xff] %vm477, %v1208
          %1531 = vst.msk [vmem:[#allocation3 + $0x80] sm:$0xff] %vm477, %v1213
          %1532 = vst.msk [vmem:[#allocation3 + $0x88] sm:$0xff] %vm477, %v1218
          %1533 = vst.msk [vmem:[#allocation3 + $0x90] sm:$0xff] %vm477, %v1223
          %1534 = vst.msk [vmem:[#allocation3 + $0x98] sm:$0xff] %vm477, %v1228
          %1535 = vst.msk [vmem:[#allocation3 + $0xa0] sm:$0xff] %vm477, %v1233
          %1536 = vst.msk [vmem:[#allocation3 + $0xa8] sm:$0xff] %vm477, %v1238
          %1537 = vst.msk [vmem:[#allocation3 + $0xb0] sm:$0xff] %vm477, %v1243
          %1538 = vst.msk [vmem:[#allocation3 + $0xb8] sm:$0xff] %vm477, %v1248
          %1539 = vst.msk [vmem:[#allocation3 + $0xc0] sm:$0xff] %vm477, %v1253
          %1540 = vst.msk [vmem:[#allocation3 + $0xc8] sm:$0xff] %vm477, %v1258
          %1541 = vst.msk [vmem:[#allocation3 + $0xd0] sm:$0xff] %vm477, %v1263
          %1542 = vst.msk [vmem:[#allocation3 + $0xd8] sm:$0xff] %vm477, %v1268
          %1543 = vst.msk [vmem:[#allocation3 + $0xe0] sm:$0xff] %vm477, %v1273
          %1544 = vst.msk [vmem:[#allocation3 + $0xe8] sm:$0xff] %vm477, %v1278
          %1545 = vst.msk [vmem:[#allocation3 + $0xf0] sm:$0xff] %vm477, %v1283
          %1546 = vst.msk [vmem:[#allocation3 + $0xf8] sm:$0xff] %vm477, %v1288
          %1547 = vst.msk [vmem:[#allocation3 + $0x100] sm:$0xff] %vm477, %v1293
          %1548 = vst.msk [vmem:[#allocation3 + $0x108] sm:$0xff] %vm477, %v1298
          %1549 = vst.msk [vmem:[#allocation3 + $0x110] sm:$0xff] %vm477, %v1303
          %1550 = vst.msk [vmem:[#allocation3 + $0x118] sm:$0xff] %vm477, %v1308
          %1551 = vst.msk [vmem:[#allocation3 + $0x120] sm:$0xff] %vm477, %v1313
          %1552 = vst.msk [vmem:[#allocation3 + $0x128] sm:$0xff] %vm477, %v1318
          %1553 = vst.msk [vmem:[#allocation3 + $0x130] sm:$0xff] %vm477, %v1323
          %1554 = vst.msk [vmem:[#allocation3 + $0x138] sm:$0xff] %vm477, %v1328
          %1555 = vst.msk [vmem:[#allocation3 + $0x140] sm:$0xff] %vm477, %v1333
          %1556 = vst.msk [vmem:[#allocation3 + $0x148] sm:$0xff] %vm477, %v1338
          %1557 = vst.msk [vmem:[#allocation3 + $0x150] sm:$0xff] %vm477, %v1343
          %1558 = vst.msk [vmem:[#allocation3 + $0x158] sm:$0xff] %vm477, %v1348
          %1559 = vst.msk [vmem:[#allocation3 + $0x160] sm:$0xff] %vm477, %v1353
          %1560 = vst.msk [vmem:[#allocation3 + $0x168] sm:$0xff] %vm477, %v1358
          %1561 = vst.msk [vmem:[#allocation3 + $0x170] sm:$0xff] %vm477, %v1363
          %1562 = vst.msk [vmem:[#allocation3 + $0x178] sm:$0xff] %vm477, %v1368
          %1563 = vst.msk [vmem:[#allocation3 + $0x180] sm:$0xff] %vm477, %v1373
          %1564 = vst.msk [vmem:[#allocation3 + $0x188] sm:$0xff] %vm477, %v1378
          %1565 = vst.msk [vmem:[#allocation3 + $0x190] sm:$0xff] %vm477, %v1383
          %1566 = vst.msk [vmem:[#allocation3 + $0x198] sm:$0xff] %vm477, %v1388
          %1567 = vst.msk [vmem:[#allocation3 + $0x1a0] sm:$0xff] %vm477, %v1393
          %1568 = vst.msk [vmem:[#allocation3 + $0x1a8] sm:$0xff] %vm477, %v1398
          %1569 = vst.msk [vmem:[#allocation3 + $0x1b0] sm:$0xff] %vm477, %v1403
          %1570 = vst.msk [vmem:[#allocation3 + $0x1b8] sm:$0xff] %vm477, %v1408
          %1571 = vst.msk [vmem:[#allocation3 + $0x1c0] sm:$0xff] %vm477, %v1413
          %1572 = vst.msk [vmem:[#allocation3 + $0x1c8] sm:$0xff] %vm477, %v1418
          %1573 = vst.msk [vmem:[#allocation3 + $0x1d0] sm:$0xff] %vm477, %v1423
          %1574 = vst.msk [vmem:[#allocation3 + $0x1d8] sm:$0xff] %vm477, %v1428
          %1575 = vst.msk [vmem:[#allocation3 + $0x1e0] sm:$0xff] %vm477, %v1433
          %1576 = vst.msk [vmem:[#allocation3 + $0x1e8] sm:$0xff] %vm477, %v1438
          %1577 = vst.msk [vmem:[#allocation3 + $0x1f0] sm:$0xff] %vm477, %v1443
          %1578 = vst.msk [vmem:[#allocation3 + $0x1f8] sm:$0xff] %vm477, %v1448
        $region56: #{tpu_custom_call.1} parent=51 // pred_fallthru
          _
        %v1579 = vld [vmem:[%s387] sm:$0xff]
        %v1580 = vld [vmem:[%s387 + $0x8] sm:$0xff]
        %v1581 = vld [vmem:[%s387 + $0x10] sm:$0xff]
        %v1582 = vld [vmem:[%s387 + $0x18] sm:$0xff]
        %v1583 = vld [vmem:[%s2] sm:$0xff]
        %v1584 = vld [vmem:[%s2 + $0x8] sm:$0xff]
        %v1585 = vld [vmem:[%s2 + $0x10] sm:$0xff]
        %v1586 = vld [vmem:[%s2 + $0x18] sm:$0xff]
        %v1587 = vld [vmem:[%s3] sm:$0x1]
        %v1589 = vlaneseq
        %v1590 = vshrl.u32 %v1589, 7
        %v1591 = vsub.s32 0, %v1590
        %v1592 = vrot.slane %v1587, %v1591
        %vm1594 = vcmask 261120
        %v1596 = vsel %vm1594, %v1579, 0
        %v1599 = vsel %vm1594, %v1580, 0
        %v1602 = vsel %vm1594, %v1581, 0
        %v1605 = vsel %vm1594, %v1582, 0
        %1607 = vmatprep.subr.mxu0 0.0
        %1608 = vmatpush1.msra.mxu0 %v1583
        %1609 = vmatprep.subr.mxu0 0.0
        %1610 = vmatpush1.msra.mxu0 %v1584
        %1611 = vmatprep.subr.mxu0 0.0
        %1612 = vmatpush1.msra.mxu0 %v1585
        %1613 = vmatprep.subr.mxu0 0.0
        %1614 = vmatpush1.msra.mxu0 %v1586
        %1615 = vmatprep.subr.mxu0 0.0
        %1616 = vmatpush1.msra.mxu0 0.0
        %1617 = vmatprep.subr.mxu0 0.0
        %1618 = vmatpush1.msra.mxu0 0.0
        %1619 = vmatprep.subr.mxu0 0.0
        %1620 = vmatpush1.msra.mxu0 0.0
        %1621 = vmatprep.subr.mxu0 0.0
        %1622 = vmatpush1.msra.mxu0 0.0
        %1623 = vmatprep.subr.mxu0 0.0
        %1624 = vmatpush1.msra.mxu0 0.0
        %1625 = vmatprep.subr.mxu0 0.0
        %1626 = vmatpush1.msra.mxu0 0.0
        %1627 = vmatprep.subr.mxu0 0.0
        %1628 = vmatpush1.msra.mxu0 0.0
        %1629 = vmatprep.subr.mxu0 0.0
        %1630 = vmatpush1.msra.mxu0 0.0
        %1631 = vmatprep.subr.mxu0 0.0
        %1632 = vmatpush1.msra.mxu0 0.0
        %1633 = vmatprep.subr.mxu0 0.0
        %1634 = vmatpush1.msra.mxu0 0.0
        %1635 = vmatprep.subr.mxu0 0.0
        %1636 = vmatpush1.msra.mxu0 0.0
        %1637 = vmatprep.subr.mxu0 0.0
        %1638 = vmatpush1.msra.mxu0 0.0
        %1639 = vmatprep.subr.mxu0 0.0
        %1640 = vmatpush1.msra.mxu0 0.0
        %1641 = vmatprep.subr.mxu0 0.0
        %1642 = vmatpush1.msra.mxu0 0.0
        %1643 = vmatprep.subr.mxu0 0.0
        %1644 = vmatpush1.msra.mxu0 0.0
        %1645 = vmatprep.subr.mxu0 0.0
        %1646 = vmatpush1.msra.mxu0 0.0
        %1647 = vmatprep.subr.mxu0 0.0
        %1648 = vmatpush1.msra.mxu0 0.0
        %1649 = vmatprep.subr.mxu0 0.0
        %1650 = vmatpush1.msra.mxu0 0.0
        %1651 = vmatprep.subr.mxu0 0.0
        %1652 = vmatpush1.msra.mxu0 0.0
        %1653 = vmatprep.subr.mxu0 0.0
        %1654 = vmatpush1.msra.mxu0 0.0
        %1655 = vmatprep.subr.mxu0 0.0
        %1656 = vmatpush1.msra.mxu0 0.0
        %1657 = vmatprep.subr.mxu0 0.0
        %1658 = vmatpush1.msra.mxu0 0.0
        %1659 = vmatprep.subr.mxu0 0.0
        %1660 = vmatpush1.msra.mxu0 0.0
        %1661 = vmatprep.subr.mxu0 0.0
        %1662 = vmatpush1.msra.mxu0 0.0
        %1663 = vmatprep.subr.mxu0 0.0
        %1664 = vmatpush1.msra.mxu0 0.0
        %1665 = vmatprep.subr.mxu0 0.0
        %1666 = vmatpush1.msra.mxu0 0.0
        %1667 = vmatprep.subr.mxu0 0.0
        %1668 = vmatpush1.msra.mxu0 0.0
        %1669 = vmatprep.subr.mxu0 0.0
        %1670 = vmatpush1.msra.mxu0 0.0
        %1671 = vmatprep.mubr.f32.mxu0 0.0
        %1672 = vmatmul.mubr.f32.gmra.mrb[0].mxu0 %v1596
        %v1673 = vpop.f32.mrb[0].mxu0
        %v1674 = vadd.f32 %v1592, %v1673
        %v1675 = vpop.f32.mrb[0].mxu0
        %1676 = vmatprep.mubr.f32.mxu0 0.0
        %1677 = vmatmul.mubr.f32.gmra.mrb[0].mxu0 %v1599
        %v1678 = vpop.f32.mrb[0].mxu0
        %v1679 = vadd.f32 %v1592, %v1678
        %v1680 = vpop.f32.mrb[0].mxu0
        %1681 = vmatprep.mubr.f32.mxu0 0.0
        %1682 = vmatmul.mubr.f32.gmra.mrb[0].mxu0 %v1602
        %v1683 = vpop.f32.mrb[0].mxu0
        %v1684 = vadd.f32 %v1592, %v1683
        %v1685 = vpop.f32.mrb[0].mxu0
        %1686 = vmatprep.mubr.f32.mxu0 0.0
        %1687 = vmatmul.mubr.f32.gmra.mrb[0].mxu0 %v1605
        %v1688 = vpop.f32.mrb[0].mxu0
        %v1689 = vadd.f32 %v1592, %v1688
        %v1690 = vpop.f32.mrb[0].mxu0
        %1691 = vdwg.mxu0
        %v1692 = vld [vmem:[#allocation2] sm:$0xff]
        %v1693 = vld [vmem:[#allocation2 + $0x8] sm:$0xff]
        %v1694 = vld [vmem:[#allocation2 + $0x10] sm:$0xff]
        %v1695 = vld [vmem:[#allocation2 + $0x18] sm:$0xff]
        %v1696 = vld [vmem:[#allocation2 + $0x20] sm:$0xff]
        %v1697 = vld [vmem:[#allocation2 + $0x28] sm:$0xff]
        %v1698 = vld [vmem:[#allocation2 + $0x30] sm:$0xff]
        %v1699 = vld [vmem:[#allocation2 + $0x38] sm:$0xff]
        %v1700 = vld [vmem:[#allocation2 + $0x40] sm:$0xff]
        %v1701 = vld [vmem:[#allocation2 + $0x48] sm:$0xff]
        %v1702 = vld [vmem:[#allocation2 + $0x50] sm:$0xff]
        %v1703 = vld [vmem:[#allocation2 + $0x58] sm:$0xff]
        %v1704 = vld [vmem:[#allocation2 + $0x60] sm:$0xff]
        %v1705 = vld [vmem:[#allocation2 + $0x68] sm:$0xff]
        %v1706 = vld [vmem:[#allocation2 + $0x70] sm:$0xff]
        %v1707 = vld [vmem:[#allocation2 + $0x78] sm:$0xff]
        %v1708 = vld [vmem:[#allocation2 + $0x80] sm:$0xff]
        %v1709 = vld [vmem:[#allocation2 + $0x88] sm:$0xff]
        %v1710 = vld [vmem:[#allocation2 + $0x90] sm:$0xff]
        %v1711 = vld [vmem:[#allocation2 + $0x98] sm:$0xff]
        %v1712 = vld [vmem:[#allocation2 + $0xa0] sm:$0xff]
        %v1713 = vld [vmem:[#allocation2 + $0xa8] sm:$0xff]
        %v1714 = vld [vmem:[#allocation2 + $0xb0] sm:$0xff]
        %v1715 = vld [vmem:[#allocation2 + $0xb8] sm:$0xff]
        %v1716 = vld [vmem:[#allocation2 + $0xc0] sm:$0xff]
        %v1717 = vld [vmem:[#allocation2 + $0xc8] sm:$0xff]
        %v1718 = vld [vmem:[#allocation2 + $0xd0] sm:$0xff]
        %v1719 = vld [vmem:[#allocation2 + $0xd8] sm:$0xff]
        %v1720 = vld [vmem:[#allocation2 + $0xe0] sm:$0xff]
        %v1721 = vld [vmem:[#allocation2 + $0xe8] sm:$0xff]
        %v1722 = vld [vmem:[#allocation2 + $0xf0] sm:$0xff]
        %v1723 = vld [vmem:[#allocation2 + $0xf8] sm:$0xff]
        %v1724 = vld [vmem:[#allocation2 + $0x100] sm:$0xff]
        %v1725 = vld [vmem:[#allocation2 + $0x108] sm:$0xff]
        %v1726 = vld [vmem:[#allocation2 + $0x110] sm:$0xff]
        %v1727 = vld [vmem:[#allocation2 + $0x118] sm:$0xff]
        %v1728 = vld [vmem:[#allocation2 + $0x120] sm:$0xff]
        %v1729 = vld [vmem:[#allocation2 + $0x128] sm:$0xff]
        %v1730 = vld [vmem:[#allocation2 + $0x130] sm:$0xff]
        %v1731 = vld [vmem:[#allocation2 + $0x138] sm:$0xff]
        %v1732 = vld [vmem:[#allocation2 + $0x140] sm:$0xff]
        %v1733 = vld [vmem:[#allocation2 + $0x148] sm:$0xff]
        %v1734 = vld [vmem:[#allocation2 + $0x150] sm:$0xff]
        %v1735 = vld [vmem:[#allocation2 + $0x158] sm:$0xff]
        %v1736 = vld [vmem:[#allocation2 + $0x160] sm:$0xff]
        %v1737 = vld [vmem:[#allocation2 + $0x168] sm:$0xff]
        %v1738 = vld [vmem:[#allocation2 + $0x170] sm:$0xff]
        %v1739 = vld [vmem:[#allocation2 + $0x178] sm:$0xff]
        %v1740 = vld [vmem:[#allocation2 + $0x180] sm:$0xff]
        %v1741 = vld [vmem:[#allocation2 + $0x188] sm:$0xff]
        %v1742 = vld [vmem:[#allocation2 + $0x190] sm:$0xff]
        %v1743 = vld [vmem:[#allocation2 + $0x198] sm:$0xff]
        %v1744 = vld [vmem:[#allocation2 + $0x1a0] sm:$0xff]
        %v1745 = vld [vmem:[#allocation2 + $0x1a8] sm:$0xff]
        %v1746 = vld [vmem:[#allocation2 + $0x1b0] sm:$0xff]
        %v1747 = vld [vmem:[#allocation2 + $0x1b8] sm:$0xff]
        %v1748 = vld [vmem:[#allocation2 + $0x1c0] sm:$0xff]
        %v1749 = vld [vmem:[#allocation2 + $0x1c8] sm:$0xff]
        %v1750 = vld [vmem:[#allocation2 + $0x1d0] sm:$0xff]
        %v1751 = vld [vmem:[#allocation2 + $0x1d8] sm:$0xff]
        %v1752 = vld [vmem:[#allocation2 + $0x1e0] sm:$0xff]
        %v1753 = vld [vmem:[#allocation2 + $0x1e8] sm:$0xff]
        %v1754 = vld [vmem:[#allocation2 + $0x1f0] sm:$0xff]
        %v1755 = vld [vmem:[#allocation2 + $0x1f8] sm:$0xff]
        %v1757 = vsel %vm1594, %v1674, 0
        %v1760 = vsel %vm1594, %v1692, 0
        %v1763 = vsel %vm1594, %v1693, 0
        %v1766 = vsel %vm1594, %v1694, 0
        %v1769 = vsel %vm1594, %v1695, 0
        %v1772 = vsel %vm1594, %v1696, 0
        %v1775 = vsel %vm1594, %v1697, 0
        %v1778 = vsel %vm1594, %v1698, 0
        %v1781 = vsel %vm1594, %v1699, 0
        %v1784 = vsel %vm1594, %v1700, 0
        %v1787 = vsel %vm1594, %v1701, 0
        %v1790 = vsel %vm1594, %v1702, 0
        %v1793 = vsel %vm1594, %v1703, 0
        %v1796 = vsel %vm1594, %v1704, 0
        %v1799 = vsel %vm1594, %v1705, 0
        %v1802 = vsel %vm1594, %v1706, 0
        %v1805 = vsel %vm1594, %v1707, 0
        %1807 = vmatprep.subr.mxu0 0.0
        %1808 = vmatpush1.xpose.msra.mxu0 %v1760
        %1809 = vmatprep.subr.mxu0 0.0
        %1810 = vmatpush1.xpose.msra.mxu0 %v1763
        %1811 = vmatprep.subr.mxu0 0.0
        %1812 = vmatpush1.xpose.msra.mxu0 %v1766
        %1813 = vmatprep.subr.mxu0 0.0
        %1814 = vmatpush1.xpose.msra.mxu0 %v1769
        %1815 = vmatprep.subr.mxu0 0.0
        %1816 = vmatpush1.xpose.msra.mxu0 %v1772
        %1817 = vmatprep.subr.mxu0 0.0
        %1818 = vmatpush1.xpose.msra.mxu0 %v1775
        %1819 = vmatprep.subr.mxu0 0.0
        %1820 = vmatpush1.xpose.msra.mxu0 %v1778
        %1821 = vmatprep.subr.mxu0 0.0
        %1822 = vmatpush1.xpose.msra.mxu0 %v1781
        %1823 = vmatprep.subr.mxu0 0.0
        %1824 = vmatpush1.xpose.msra.mxu0 %v1784
        %1825 = vmatprep.subr.mxu0 0.0
        %1826 = vmatpush1.xpose.msra.mxu0 %v1787
        %1827 = vmatprep.subr.mxu0 0.0
        %1828 = vmatpush1.xpose.msra.mxu0 %v1790
        %1829 = vmatprep.subr.mxu0 0.0
        %1830 = vmatpush1.xpose.msra.mxu0 %v1793
        %1831 = vmatprep.subr.mxu0 0.0
        %1832 = vmatpush1.xpose.msra.mxu0 %v1796
        %1833 = vmatprep.subr.mxu0 0.0
        %1834 = vmatpush1.xpose.msra.mxu0 %v1799
        %1835 = vmatprep.subr.mxu0 0.0
        %1836 = vmatpush1.xpose.msra.mxu0 %v1802
        %1837 = vmatprep.subr.mxu0 0.0
        %1838 = vmatpush1.xpose.msra.mxu0 %v1805
        %1839 = vmatprep.subr.mxu0 0.0
        %1840 = vmatpush1.xpose.msra.mxu0 0.0
        %1841 = vmatprep.subr.mxu0 0.0
        %1842 = vmatpush1.xpose.msra.mxu0 0.0
        %1843 = vmatprep.subr.mxu0 0.0
        %1844 = vmatpush1.xpose.msra.mxu0 0.0
        %1845 = vmatprep.subr.mxu0 0.0
        %1846 = vmatpush1.xpose.msra.mxu0 0.0
        %1847 = vmatprep.subr.mxu0 0.0
        %1848 = vmatpush1.xpose.msra.mxu0 0.0
        %1849 = vmatprep.subr.mxu0 0.0
        %1850 = vmatpush1.xpose.msra.mxu0 0.0
        %1851 = vmatprep.subr.mxu0 0.0
        %1852 = vmatpush1.xpose.msra.mxu0 0.0
        %1853 = vmatprep.subr.mxu0 0.0
        %1854 = vmatpush1.xpose.msra.mxu0 0.0
        %1855 = vmatprep.subr.mxu0 0.0
        %1856 = vmatpush1.xpose.msra.mxu0 0.0
        %1857 = vmatprep.subr.mxu0 0.0
        %1858 = vmatpush1.xpose.msra.mxu0 0.0
        %1859 = vmatprep.subr.mxu0 0.0
        %1860 = vmatpush1.xpose.msra.mxu0 0.0
        %1861 = vmatprep.subr.mxu0 0.0
        %1862 = vmatpush1.xpose.msra.mxu0 0.0
        %1863 = vmatprep.subr.mxu0 0.0
        %1864 = vmatpush1.xpose.msra.mxu0 0.0
        %1865 = vmatprep.subr.mxu0 0.0
        %1866 = vmatpush1.xpose.msra.mxu0 0.0
        %1867 = vmatprep.subr.mxu0 0.0
        %1868 = vmatpush1.xpose.msra.mxu0 0.0
        %1869 = vmatprep.subr.mxu0 0.0
        %1870 = vmatpush1.xpose.msra.mxu0 0.0
        %1871 = vmatprep.mubr.f32.mxu0 0.0
        %1872 = vmatmul.mubr.f32.gmra.mrb[0].mxu0 %v1757
        %v1873 = vpop.f32.mrb[0].mxu0
        %v1874 = vadd.f32 0.0, %v1873
        %v1875 = vpop.f32.mrb[0].mxu0
        %1876 = vdwg.mxu0
        %v1878 = vsel %vm1594, %v1679, 0
        %v1881 = vsel %vm1594, %v1708, 0
        %v1884 = vsel %vm1594, %v1709, 0
        %v1887 = vsel %vm1594, %v1710, 0
        %v1890 = vsel %vm1594, %v1711, 0
        %v1893 = vsel %vm1594, %v1712, 0
        %v1896 = vsel %vm1594, %v1713, 0
        %v1899 = vsel %vm1594, %v1714, 0
        %v1902 = vsel %vm1594, %v1715, 0
        %v1905 = vsel %vm1594, %v1716, 0
        %v1908 = vsel %vm1594, %v1717, 0
        %v1911 = vsel %vm1594, %v1718, 0
        %v1914 = vsel %vm1594, %v1719, 0
        %v1917 = vsel %vm1594, %v1720, 0
        %v1920 = vsel %vm1594, %v1721, 0
        %v1923 = vsel %vm1594, %v1722, 0
        %v1926 = vsel %vm1594, %v1723, 0
        %1928 = vmatprep.subr.mxu0 0.0
        %1929 = vmatpush1.xpose.msra.mxu0 %v1881
        %1930 = vmatprep.subr.mxu0 0.0
        %1931 = vmatpush1.xpose.msra.mxu0 %v1884
        %1932 = vmatprep.subr.mxu0 0.0
        %1933 = vmatpush1.xpose.msra.mxu0 %v1887
        %1934 = vmatprep.subr.mxu0 0.0
        %1935 = vmatpush1.xpose.msra.mxu0 %v1890
        %1936 = vmatprep.subr.mxu0 0.0
        %1937 = vmatpush1.xpose.msra.mxu0 %v1893
        %1938 = vmatprep.subr.mxu0 0.0
        %1939 = vmatpush1.xpose.msra.mxu0 %v1896
        %1940 = vmatprep.subr.mxu0 0.0
        %1941 = vmatpush1.xpose.msra.mxu0 %v1899
        %1942 = vmatprep.subr.mxu0 0.0
        %1943 = vmatpush1.xpose.msra.mxu0 %v1902
        %1944 = vmatprep.subr.mxu0 0.0
        %1945 = vmatpush1.xpose.msra.mxu0 %v1905
        %1946 = vmatprep.subr.mxu0 0.0
        %1947 = vmatpush1.xpose.msra.mxu0 %v1908
        %1948 = vmatprep.subr.mxu0 0.0
        %1949 = vmatpush1.xpose.msra.mxu0 %v1911
        %1950 = vmatprep.subr.mxu0 0.0
        %1951 = vmatpush1.xpose.msra.mxu0 %v1914
        %1952 = vmatprep.subr.mxu0 0.0
        %1953 = vmatpush1.xpose.msra.mxu0 %v1917
        %1954 = vmatprep.subr.mxu0 0.0
        %1955 = vmatpush1.xpose.msra.mxu0 %v1920
        %1956 = vmatprep.subr.mxu0 0.0
        %1957 = vmatpush1.xpose.msra.mxu0 %v1923
        %1958 = vmatprep.subr.mxu0 0.0
        %1959 = vmatpush1.xpose.msra.mxu0 %v1926
        %1960 = vmatprep.subr.mxu0 0.0
        %1961 = vmatpush1.xpose.msra.mxu0 0.0
        %1962 = vmatprep.subr.mxu0 0.0
        %1963 = vmatpush1.xpose.msra.mxu0 0.0
        %1964 = vmatprep.subr.mxu0 0.0
        %1965 = vmatpush1.xpose.msra.mxu0 0.0
        %1966 = vmatprep.subr.mxu0 0.0
        %1967 = vmatpush1.xpose.msra.mxu0 0.0
        %1968 = vmatprep.subr.mxu0 0.0
        %1969 = vmatpush1.xpose.msra.mxu0 0.0
        %1970 = vmatprep.subr.mxu0 0.0
        %1971 = vmatpush1.xpose.msra.mxu0 0.0
        %1972 = vmatprep.subr.mxu0 0.0
        %1973 = vmatpush1.xpose.msra.mxu0 0.0
        %1974 = vmatprep.subr.mxu0 0.0
        %1975 = vmatpush1.xpose.msra.mxu0 0.0
        %1976 = vmatprep.subr.mxu0 0.0
        %1977 = vmatpush1.xpose.msra.mxu0 0.0
        %1978 = vmatprep.subr.mxu0 0.0
        %1979 = vmatpush1.xpose.msra.mxu0 0.0
        %1980 = vmatprep.subr.mxu0 0.0
        %1981 = vmatpush1.xpose.msra.mxu0 0.0
        %1982 = vmatprep.subr.mxu0 0.0
        %1983 = vmatpush1.xpose.msra.mxu0 0.0
        %1984 = vmatprep.subr.mxu0 0.0
        %1985 = vmatpush1.xpose.msra.mxu0 0.0
        %1986 = vmatprep.subr.mxu0 0.0
        %1987 = vmatpush1.xpose.msra.mxu0 0.0
        %1988 = vmatprep.subr.mxu0 0.0
        %1989 = vmatpush1.xpose.msra.mxu0 0.0
        %1990 = vmatprep.subr.mxu0 0.0
        %1991 = vmatpush1.xpose.msra.mxu0 0.0
        %1992 = vmatprep.mubr.f32.mxu0 0.0
        %1993 = vmatmul.mubr.f32.gmra.mrb[0].mxu0 %v1878
        %v1994 = vpop.f32.mrb[0].mxu0
        %v1995 = vadd.f32 0.0, %v1994
        %v1996 = vpop.f32.mrb[0].mxu0
        %1997 = vdwg.mxu0
        %v1999 = vsel %vm1594, %v1684, 0
        %v2002 = vsel %vm1594, %v1724, 0
        %v2005 = vsel %vm1594, %v1725, 0
        %v2008 = vsel %vm1594, %v1726, 0
        %v2011 = vsel %vm1594, %v1727, 0
        %v2014 = vsel %vm1594, %v1728, 0
        %v2017 = vsel %vm1594, %v1729, 0
        %v2020 = vsel %vm1594, %v1730, 0
        %v2023 = vsel %vm1594, %v1731, 0
        %v2026 = vsel %vm1594, %v1732, 0
        %v2029 = vsel %vm1594, %v1733, 0
        %v2032 = vsel %vm1594, %v1734, 0
        %v2035 = vsel %vm1594, %v1735, 0
        %v2038 = vsel %vm1594, %v1736, 0
        %v2041 = vsel %vm1594, %v1737, 0
        %v2044 = vsel %vm1594, %v1738, 0
        %v2047 = vsel %vm1594, %v1739, 0
        %2049 = vmatprep.subr.mxu0 0.0
        %2050 = vmatpush1.xpose.msra.mxu0 %v2002
        %2051 = vmatprep.subr.mxu0 0.0
        %2052 = vmatpush1.xpose.msra.mxu0 %v2005
        %2053 = vmatprep.subr.mxu0 0.0
        %2054 = vmatpush1.xpose.msra.mxu0 %v2008
        %2055 = vmatprep.subr.mxu0 0.0
        %2056 = vmatpush1.xpose.msra.mxu0 %v2011
        %2057 = vmatprep.subr.mxu0 0.0
        %2058 = vmatpush1.xpose.msra.mxu0 %v2014
        %2059 = vmatprep.subr.mxu0 0.0
        %2060 = vmatpush1.xpose.msra.mxu0 %v2017
        %2061 = vmatprep.subr.mxu0 0.0
        %2062 = vmatpush1.xpose.msra.mxu0 %v2020
        %2063 = vmatprep.subr.mxu0 0.0
        %2064 = vmatpush1.xpose.msra.mxu0 %v2023
        %2065 = vmatprep.subr.mxu0 0.0
        %2066 = vmatpush1.xpose.msra.mxu0 %v2026
        %2067 = vmatprep.subr.mxu0 0.0
        %2068 = vmatpush1.xpose.msra.mxu0 %v2029
        %2069 = vmatprep.subr.mxu0 0.0
        %2070 = vmatpush1.xpose.msra.mxu0 %v2032
        %2071 = vmatprep.subr.mxu0 0.0
        %2072 = vmatpush1.xpose.msra.mxu0 %v2035
        %2073 = vmatprep.subr.mxu0 0.0
        %2074 = vmatpush1.xpose.msra.mxu0 %v2038
        %2075 = vmatprep.subr.mxu0 0.0
        %2076 = vmatpush1.xpose.msra.mxu0 %v2041
        %2077 = vmatprep.subr.mxu0 0.0
        %2078 = vmatpush1.xpose.msra.mxu0 %v2044
        %2079 = vmatprep.subr.mxu0 0.0
        %2080 = vmatpush1.xpose.msra.mxu0 %v2047
        %2081 = vmatprep.subr.mxu0 0.0
        %2082 = vmatpush1.xpose.msra.mxu0 0.0
        %2083 = vmatprep.subr.mxu0 0.0
        %2084 = vmatpush1.xpose.msra.mxu0 0.0
        %2085 = vmatprep.subr.mxu0 0.0
        %2086 = vmatpush1.xpose.msra.mxu0 0.0
        %2087 = vmatprep.subr.mxu0 0.0
        %2088 = vmatpush1.xpose.msra.mxu0 0.0
        %2089 = vmatprep.subr.mxu0 0.0
        %2090 = vmatpush1.xpose.msra.mxu0 0.0
        %2091 = vmatprep.subr.mxu0 0.0
        %2092 = vmatpush1.xpose.msra.mxu0 0.0
        %2093 = vmatprep.subr.mxu0 0.0
        %2094 = vmatpush1.xpose.msra.mxu0 0.0
        %2095 = vmatprep.subr.mxu0 0.0
        %2096 = vmatpush1.xpose.msra.mxu0 0.0
        %2097 = vmatprep.subr.mxu0 0.0
        %2098 = vmatpush1.xpose.msra.mxu0 0.0
        %2099 = vmatprep.subr.mxu0 0.0
        %2100 = vmatpush1.xpose.msra.mxu0 0.0
        %2101 = vmatprep.subr.mxu0 0.0
        %2102 = vmatpush1.xpose.msra.mxu0 0.0
        %2103 = vmatprep.subr.mxu0 0.0
        %2104 = vmatpush1.xpose.msra.mxu0 0.0
        %2105 = vmatprep.subr.mxu0 0.0
        %2106 = vmatpush1.xpose.msra.mxu0 0.0
        %2107 = vmatprep.subr.mxu0 0.0
        %2108 = vmatpush1.xpose.msra.mxu0 0.0
        %2109 = vmatprep.subr.mxu0 0.0
        %2110 = vmatpush1.xpose.msra.mxu0 0.0
        %2111 = vmatprep.subr.mxu0 0.0
        %2112 = vmatpush1.xpose.msra.mxu0 0.0
        %2113 = vmatprep.mubr.f32.mxu0 0.0
        %2114 = vmatmul.mubr.f32.gmra.mrb[0].mxu0 %v1999
        %v2115 = vpop.f32.mrb[0].mxu0
        %v2116 = vadd.f32 0.0, %v2115
        %v2117 = vpop.f32.mrb[0].mxu0
        %2118 = vdwg.mxu0
        %v2120 = vsel %vm1594, %v1689, 0
        %v2123 = vsel %vm1594, %v1740, 0
        %v2126 = vsel %vm1594, %v1741, 0
        %v2129 = vsel %vm1594, %v1742, 0
        %v2132 = vsel %vm1594, %v1743, 0
        %v2135 = vsel %vm1594, %v1744, 0
        %v2138 = vsel %vm1594, %v1745, 0
        %v2141 = vsel %vm1594, %v1746, 0
        %v2144 = vsel %vm1594, %v1747, 0
        %v2147 = vsel %vm1594, %v1748, 0
        %v2150 = vsel %vm1594, %v1749, 0
        %v2153 = vsel %vm1594, %v1750, 0
        %v2156 = vsel %vm1594, %v1751, 0
        %v2159 = vsel %vm1594, %v1752, 0
        %v2162 = vsel %vm1594, %v1753, 0
        %v2165 = vsel %vm1594, %v1754, 0
        %v2168 = vsel %vm1594, %v1755, 0
        %2170 = vmatprep.subr.mxu0 0.0
        %2171 = vmatpush1.xpose.msra.mxu0 %v2123
        %2172 = vmatprep.subr.mxu0 0.0
        %2173 = vmatpush1.xpose.msra.mxu0 %v2126
        %2174 = vmatprep.subr.mxu0 0.0
        %2175 = vmatpush1.xpose.msra.mxu0 %v2129
        %2176 = vmatprep.subr.mxu0 0.0
        %2177 = vmatpush1.xpose.msra.mxu0 %v2132
        %2178 = vmatprep.subr.mxu0 0.0
        %2179 = vmatpush1.xpose.msra.mxu0 %v2135
        %2180 = vmatprep.subr.mxu0 0.0
        %2181 = vmatpush1.xpose.msra.mxu0 %v2138
        %2182 = vmatprep.subr.mxu0 0.0
        %2183 = vmatpush1.xpose.msra.mxu0 %v2141
        %2184 = vmatprep.subr.mxu0 0.0
        %2185 = vmatpush1.xpose.msra.mxu0 %v2144
        %2186 = vmatprep.subr.mxu0 0.0
        %2187 = vmatpush1.xpose.msra.mxu0 %v2147
        %2188 = vmatprep.subr.mxu0 0.0
        %2189 = vmatpush1.xpose.msra.mxu0 %v2150
        %2190 = vmatprep.subr.mxu0 0.0
        %2191 = vmatpush1.xpose.msra.mxu0 %v2153
        %2192 = vmatprep.subr.mxu0 0.0
        %2193 = vmatpush1.xpose.msra.mxu0 %v2156
        %2194 = vmatprep.subr.mxu0 0.0
        %2195 = vmatpush1.xpose.msra.mxu0 %v2159
        %2196 = vmatprep.subr.mxu0 0.0
        %2197 = vmatpush1.xpose.msra.mxu0 %v2162
        %2198 = vmatprep.subr.mxu0 0.0
        %2199 = vmatpush1.xpose.msra.mxu0 %v2165
        %2200 = vmatprep.subr.mxu0 0.0
        %2201 = vmatpush1.xpose.msra.mxu0 %v2168
        %2202 = vmatprep.subr.mxu0 0.0
        %2203 = vmatpush1.xpose.msra.mxu0 0.0
        %2204 = vmatprep.subr.mxu0 0.0
        %2205 = vmatpush1.xpose.msra.mxu0 0.0
        %2206 = vmatprep.subr.mxu0 0.0
        %2207 = vmatpush1.xpose.msra.mxu0 0.0
        %2208 = vmatprep.subr.mxu0 0.0
        %2209 = vmatpush1.xpose.msra.mxu0 0.0
        %2210 = vmatprep.subr.mxu0 0.0
        %2211 = vmatpush1.xpose.msra.mxu0 0.0
        %2212 = vmatprep.subr.mxu0 0.0
        %2213 = vmatpush1.xpose.msra.mxu0 0.0
        %2214 = vmatprep.subr.mxu0 0.0
        %2215 = vmatpush1.xpose.msra.mxu0 0.0
        %2216 = vmatprep.subr.mxu0 0.0
        %2217 = vmatpush1.xpose.msra.mxu0 0.0
        %2218 = vmatprep.subr.mxu0 0.0
        %2219 = vmatpush1.xpose.msra.mxu0 0.0
        %2220 = vmatprep.subr.mxu0 0.0
        %2221 = vmatpush1.xpose.msra.mxu0 0.0
        %2222 = vmatprep.subr.mxu0 0.0
        %2223 = vmatpush1.xpose.msra.mxu0 0.0
        %2224 = vmatprep.subr.mxu0 0.0
        %2225 = vmatpush1.xpose.msra.mxu0 0.0
        %2226 = vmatprep.subr.mxu0 0.0
        %2227 = vmatpush1.xpose.msra.mxu0 0.0
        %2228 = vmatprep.subr.mxu0 0.0
        %2229 = vmatpush1.xpose.msra.mxu0 0.0
        %2230 = vmatprep.subr.mxu0 0.0
        %2231 = vmatpush1.xpose.msra.mxu0 0.0
        %2232 = vmatprep.subr.mxu0 0.0
        %2233 = vmatpush1.xpose.msra.mxu0 0.0
        %2234 = vmatprep.mubr.f32.mxu0 0.0
        %2235 = vmatmul.mubr.f32.gmra.mrb[0].mxu0 %v2120
        %v2236 = vpop.f32.mrb[0].mxu0
        %v2237 = vadd.f32 0.0, %v2236
        %v2238 = vpop.f32.mrb[0].mxu0
        %2239 = vdwg.mxu0
        %v2240 = vlaneseq
        %v2241 = vand.u32 %v2240, 127
        %vm2242 = vcmp.lt.s32.totalorder %v2241, 16
        %v2243 = vsel %vm2242, 1, 0
        %vm2244 = vcmp.eq.s32.totalorder %v2243, 1
        %v2245 = vsel %vm2244, %v1874, -1e+30
        %v2246 = vsel %vm2244, %v1995, -1e+30
        %v2247 = vsel %vm2244, %v2116, -1e+30
        %v2248 = vsel %vm2244, %v2237, -1e+30
        %2249 = vmax.xlane.f32.xlu0 %v2245
        %v2250 = vpop.xlane.xlu0 %2249
        %2251 = vmax.xlane.f32.xlu0 %v2246
        %v2252 = vpop.xlane.xlu0 %2251
        %2253 = vmax.xlane.f32.xlu0 %v2247
        %v2254 = vpop.xlane.xlu0 %2253
        %2255 = vmax.xlane.f32.xlu0 %v2248
        %v2256 = vpop.xlane.xlu0 %2255
        %v2257 = vsub.f32 %v2245, %v2250
        %v2258 = vsub.f32 %v2246, %v2252
        %v2259 = vsub.f32 %v2247, %v2254
        %v2260 = vsub.f32 %v2248, %v2256
        %v2261 = vmul.f32 %v2257, 1.442695
        %v2262 = vpow.pop %v2261
        %v2263 = vmul.f32 %v2258, 1.442695
        %v2264 = vpow.pop %v2263
        %v2265 = vmul.f32 %v2259, 1.442695
        %v2266 = vpow.pop %v2265
        %v2267 = vmul.f32 %v2260, 1.442695
        %v2268 = vpow.pop %v2267
        %2269 = vadd.xlane.f32.xlu0 %v2262
        %v2270 = vpop.xlane.xlu0 %2269
        %2271 = vadd.xlane.f32.xlu0 %v2264
        %v2272 = vpop.xlane.xlu0 %2271
        %2273 = vadd.xlane.f32.xlu0 %v2266
        %v2274 = vpop.xlane.xlu0 %2273
        %2275 = vadd.xlane.f32.xlu0 %v2268
        %v2276 = vpop.xlane.xlu0 %2275
        %v2277 = vrcp.pop %v2270
        %v2278 = vrcp.pop %v2272
        %v2279 = vrcp.pop %v2274
        %v2280 = vrcp.pop %v2276
        %v2281 = vmul.f32 %v2262, %v2277
        %v2282 = vmul.f32 %v2264, %v2278
        %v2283 = vmul.f32 %v2266, %v2279
        %v2284 = vmul.f32 %v2268, %v2280
        %v2285 = vld [vmem:[#allocation3] sm:$0xff]
        %v2286 = vld [vmem:[#allocation3 + $0x8] sm:$0xff]
        %v2287 = vld [vmem:[#allocation3 + $0x10] sm:$0xff]
        %v2288 = vld [vmem:[#allocation3 + $0x18] sm:$0xff]
        %v2289 = vld [vmem:[#allocation3 + $0x20] sm:$0xff]
        %v2290 = vld [vmem:[#allocation3 + $0x28] sm:$0xff]
        %v2291 = vld [vmem:[#allocation3 + $0x30] sm:$0xff]
        %v2292 = vld [vmem:[#allocation3 + $0x38] sm:$0xff]
        %v2293 = vld [vmem:[#allocation3 + $0x40] sm:$0xff]
        %v2294 = vld [vmem:[#allocation3 + $0x48] sm:$0xff]
        %v2295 = vld [vmem:[#allocation3 + $0x50] sm:$0xff]
        %v2296 = vld [vmem:[#allocation3 + $0x58] sm:$0xff]
        %v2297 = vld [vmem:[#allocation3 + $0x60] sm:$0xff]
        %v2298 = vld [vmem:[#allocation3 + $0x68] sm:$0xff]
        %v2299 = vld [vmem:[#allocation3 + $0x70] sm:$0xff]
        %v2300 = vld [vmem:[#allocation3 + $0x78] sm:$0xff]
        %v2301 = vld [vmem:[#allocation3 + $0x80] sm:$0xff]
        %v2302 = vld [vmem:[#allocation3 + $0x88] sm:$0xff]
        %v2303 = vld [vmem:[#allocation3 + $0x90] sm:$0xff]
        %v2304 = vld [vmem:[#allocation3 + $0x98] sm:$0xff]
        %v2305 = vld [vmem:[#allocation3 + $0xa0] sm:$0xff]
        %v2306 = vld [vmem:[#allocation3 + $0xa8] sm:$0xff]
        %v2307 = vld [vmem:[#allocation3 + $0xb0] sm:$0xff]
        %v2308 = vld [vmem:[#allocation3 + $0xb8] sm:$0xff]
        %v2309 = vld [vmem:[#allocation3 + $0xc0] sm:$0xff]
        %v2310 = vld [vmem:[#allocation3 + $0xc8] sm:$0xff]
        %v2311 = vld [vmem:[#allocation3 + $0xd0] sm:$0xff]
        %v2312 = vld [vmem:[#allocation3 + $0xd8] sm:$0xff]
        %v2313 = vld [vmem:[#allocation3 + $0xe0] sm:$0xff]
        %v2314 = vld [vmem:[#allocation3 + $0xe8] sm:$0xff]
        %v2315 = vld [vmem:[#allocation3 + $0xf0] sm:$0xff]
        %v2316 = vld [vmem:[#allocation3 + $0xf8] sm:$0xff]
        %v2317 = vld [vmem:[#allocation3 + $0x100] sm:$0xff]
        %v2318 = vld [vmem:[#allocation3 + $0x108] sm:$0xff]
        %v2319 = vld [vmem:[#allocation3 + $0x110] sm:$0xff]
        %v2320 = vld [vmem:[#allocation3 + $0x118] sm:$0xff]
        %v2321 = vld [vmem:[#allocation3 + $0x120] sm:$0xff]
        %v2322 = vld [vmem:[#allocation3 + $0x128] sm:$0xff]
        %v2323 = vld [vmem:[#allocation3 + $0x130] sm:$0xff]
        %v2324 = vld [vmem:[#allocation3 + $0x138] sm:$0xff]
        %v2325 = vld [vmem:[#allocation3 + $0x140] sm:$0xff]
        %v2326 = vld [vmem:[#allocation3 + $0x148] sm:$0xff]
        %v2327 = vld [vmem:[#allocation3 + $0x150] sm:$0xff]
        %v2328 = vld [vmem:[#allocation3 + $0x158] sm:$0xff]
        %v2329 = vld [vmem:[#allocation3 + $0x160] sm:$0xff]
        %v2330 = vld [vmem:[#allocation3 + $0x168] sm:$0xff]
        %v2331 = vld [vmem:[#allocation3 + $0x170] sm:$0xff]
        %v2332 = vld [vmem:[#allocation3 + $0x178] sm:$0xff]
        %v2333 = vld [vmem:[#allocation3 + $0x180] sm:$0xff]
        %v2334 = vld [vmem:[#allocation3 + $0x188] sm:$0xff]
        %v2335 = vld [vmem:[#allocation3 + $0x190] sm:$0xff]
        %v2336 = vld [vmem:[#allocation3 + $0x198] sm:$0xff]
        %v2337 = vld [vmem:[#allocation3 + $0x1a0] sm:$0xff]
        %v2338 = vld [vmem:[#allocation3 + $0x1a8] sm:$0xff]
        %v2339 = vld [vmem:[#allocation3 + $0x1b0] sm:$0xff]
        %v2340 = vld [vmem:[#allocation3 + $0x1b8] sm:$0xff]
        %v2341 = vld [vmem:[#allocation3 + $0x1c0] sm:$0xff]
        %v2342 = vld [vmem:[#allocation3 + $0x1c8] sm:$0xff]
        %v2343 = vld [vmem:[#allocation3 + $0x1d0] sm:$0xff]
        %v2344 = vld [vmem:[#allocation3 + $0x1d8] sm:$0xff]
        %v2345 = vld [vmem:[#allocation3 + $0x1e0] sm:$0xff]
        %v2346 = vld [vmem:[#allocation3 + $0x1e8] sm:$0xff]
        %v2347 = vld [vmem:[#allocation3 + $0x1f0] sm:$0xff]
        %v2348 = vld [vmem:[#allocation3 + $0x1f8] sm:$0xff]
        %2349 = vmatprep.subr.mxu0 0.0
        %2350 = vmatpush1.msra.mxu0 %v2285
        %2351 = vmatprep.subr.mxu0 0.0
        %2352 = vmatpush1.msra.mxu0 %v2286
        %2353 = vmatprep.subr.mxu0 0.0
        %2354 = vmatpush1.msra.mxu0 %v2287
        %2355 = vmatprep.subr.mxu0 0.0
        %2356 = vmatpush1.msra.mxu0 %v2288
        %2357 = vmatprep.subr.mxu0 0.0
        %2358 = vmatpush1.msra.mxu0 %v2289
        %2359 = vmatprep.subr.mxu0 0.0
        %2360 = vmatpush1.msra.mxu0 %v2290
        %2361 = vmatprep.subr.mxu0 0.0
        %2362 = vmatpush1.msra.mxu0 %v2291
        %2363 = vmatprep.subr.mxu0 0.0
        %2364 = vmatpush1.msra.mxu0 %v2292
        %2365 = vmatprep.subr.mxu0 0.0
        %2366 = vmatpush1.msra.mxu0 %v2293
        %2367 = vmatprep.subr.mxu0 0.0
        %2368 = vmatpush1.msra.mxu0 %v2294
        %2369 = vmatprep.subr.mxu0 0.0
        %2370 = vmatpush1.msra.mxu0 %v2295
        %2371 = vmatprep.subr.mxu0 0.0
        %2372 = vmatpush1.msra.mxu0 %v2296
        %2373 = vmatprep.subr.mxu0 0.0
        %2374 = vmatpush1.msra.mxu0 %v2297
        %2375 = vmatprep.subr.mxu0 0.0
        %2376 = vmatpush1.msra.mxu0 %v2298
        %2377 = vmatprep.subr.mxu0 0.0
        %2378 = vmatpush1.msra.mxu0 %v2299
        %2379 = vmatprep.subr.mxu0 0.0
        %2380 = vmatpush1.msra.mxu0 %v2300
        %2381 = vmatprep.subr.mxu0 0.0
        %2382 = vmatpush1.msra.mxu0 0.0
        %2383 = vmatprep.subr.mxu0 0.0
        %2384 = vmatpush1.msra.mxu0 0.0
        %2385 = vmatprep.subr.mxu0 0.0
        %2386 = vmatpush1.msra.mxu0 0.0
        %2387 = vmatprep.subr.mxu0 0.0
        %2388 = vmatpush1.msra.mxu0 0.0
        %2389 = vmatprep.subr.mxu0 0.0
        %2390 = vmatpush1.msra.mxu0 0.0
        %2391 = vmatprep.subr.mxu0 0.0
        %2392 = vmatpush1.msra.mxu0 0.0
        %2393 = vmatprep.subr.mxu0 0.0
        %2394 = vmatpush1.msra.mxu0 0.0
        %2395 = vmatprep.subr.mxu0 0.0
        %2396 = vmatpush1.msra.mxu0 0.0
        %2397 = vmatprep.subr.mxu0 0.0
        %2398 = vmatpush1.msra.mxu0 0.0
        %2399 = vmatprep.subr.mxu0 0.0
        %2400 = vmatpush1.msra.mxu0 0.0
        %2401 = vmatprep.subr.mxu0 0.0
        %2402 = vmatpush1.msra.mxu0 0.0
        %2403 = vmatprep.subr.mxu0 0.0
        %2404 = vmatpush1.msra.mxu0 0.0
        %2405 = vmatprep.subr.mxu0 0.0
        %2406 = vmatpush1.msra.mxu0 0.0
        %2407 = vmatprep.subr.mxu0 0.0
        %2408 = vmatpush1.msra.mxu0 0.0
        %2409 = vmatprep.subr.mxu0 0.0
        %2410 = vmatpush1.msra.mxu0 0.0
        %2411 = vmatprep.subr.mxu0 0.0
        %2412 = vmatpush1.msra.mxu0 0.0
        %2413 = vmatprep.mubr.f32.mxu0 0.0
        %2414 = vmatmul.mubr.f32.gmra.mrb[0].mxu0 %v2281
        %v2415 = vpop.f32.mrb[0].mxu0
        %v2416 = vadd.f32 0.0, %v2415
        %v2417 = vpop.f32.mrb[0].mxu0
        %2418 = vdwg.mxu0
        %2419 = vmatprep.subr.mxu0 0.0
        %2420 = vmatpush1.msra.mxu0 %v2301
        %2421 = vmatprep.subr.mxu0 0.0
        %2422 = vmatpush1.msra.mxu0 %v2302
        %2423 = vmatprep.subr.mxu0 0.0
        %2424 = vmatpush1.msra.mxu0 %v2303
        %2425 = vmatprep.subr.mxu0 0.0
        %2426 = vmatpush1.msra.mxu0 %v2304
        %2427 = vmatprep.subr.mxu0 0.0
        %2428 = vmatpush1.msra.mxu0 %v2305
        %2429 = vmatprep.subr.mxu0 0.0
        %2430 = vmatpush1.msra.mxu0 %v2306
        %2431 = vmatprep.subr.mxu0 0.0
        %2432 = vmatpush1.msra.mxu0 %v2307
        %2433 = vmatprep.subr.mxu0 0.0
        %2434 = vmatpush1.msra.mxu0 %v2308
        %2435 = vmatprep.subr.mxu0 0.0
        %2436 = vmatpush1.msra.mxu0 %v2309
        %2437 = vmatprep.subr.mxu0 0.0
        %2438 = vmatpush1.msra.mxu0 %v2310
        %2439 = vmatprep.subr.mxu0 0.0
        %2440 = vmatpush1.msra.mxu0 %v2311
        %2441 = vmatprep.subr.mxu0 0.0
        %2442 = vmatpush1.msra.mxu0 %v2312
        %2443 = vmatprep.subr.mxu0 0.0
        %2444 = vmatpush1.msra.mxu0 %v2313
        %2445 = vmatprep.subr.mxu0 0.0
        %2446 = vmatpush1.msra.mxu0 %v2314
        %2447 = vmatprep.subr.mxu0 0.0
        %2448 = vmatpush1.msra.mxu0 %v2315
        %2449 = vmatprep.subr.mxu0 0.0
        %2450 = vmatpush1.msra.mxu0 %v2316
        %2451 = vmatprep.subr.mxu0 0.0
        %2452 = vmatpush1.msra.mxu0 0.0
        %2453 = vmatprep.subr.mxu0 0.0
        %2454 = vmatpush1.msra.mxu0 0.0
        %2455 = vmatprep.subr.mxu0 0.0
        %2456 = vmatpush1.msra.mxu0 0.0
        %2457 = vmatprep.subr.mxu0 0.0
        %2458 = vmatpush1.msra.mxu0 0.0
        %2459 = vmatprep.subr.mxu0 0.0
        %2460 = vmatpush1.msra.mxu0 0.0
        %2461 = vmatprep.subr.mxu0 0.0
        %2462 = vmatpush1.msra.mxu0 0.0
        %2463 = vmatprep.subr.mxu0 0.0
        %2464 = vmatpush1.msra.mxu0 0.0
        %2465 = vmatprep.subr.mxu0 0.0
        %2466 = vmatpush1.msra.mxu0 0.0
        %2467 = vmatprep.subr.mxu0 0.0
        %2468 = vmatpush1.msra.mxu0 0.0
        %2469 = vmatprep.subr.mxu0 0.0
        %2470 = vmatpush1.msra.mxu0 0.0
        %2471 = vmatprep.subr.mxu0 0.0
        %2472 = vmatpush1.msra.mxu0 0.0
        %2473 = vmatprep.subr.mxu0 0.0
        %2474 = vmatpush1.msra.mxu0 0.0
        %2475 = vmatprep.subr.mxu0 0.0
        %2476 = vmatpush1.msra.mxu0 0.0
        %2477 = vmatprep.subr.mxu0 0.0
        %2478 = vmatpush1.msra.mxu0 0.0
        %2479 = vmatprep.subr.mxu0 0.0
        %2480 = vmatpush1.msra.mxu0 0.0
        %2481 = vmatprep.subr.mxu0 0.0
        %2482 = vmatpush1.msra.mxu0 0.0
        %2483 = vmatprep.mubr.f32.mxu0 0.0
        %2484 = vmatmul.mubr.f32.gmra.mrb[0].mxu0 %v2282
        %v2485 = vpop.f32.mrb[0].mxu0
        %v2486 = vadd.f32 0.0, %v2485
        %v2487 = vpop.f32.mrb[0].mxu0
        %2488 = vdwg.mxu0
        %2489 = vmatprep.subr.mxu0 0.0
        %2490 = vmatpush1.msra.mxu0 %v2317
        %2491 = vmatprep.subr.mxu0 0.0
        %2492 = vmatpush1.msra.mxu0 %v2318
        %2493 = vmatprep.subr.mxu0 0.0
        %2494 = vmatpush1.msra.mxu0 %v2319
        %2495 = vmatprep.subr.mxu0 0.0
        %2496 = vmatpush1.msra.mxu0 %v2320
        %2497 = vmatprep.subr.mxu0 0.0
        %2498 = vmatpush1.msra.mxu0 %v2321
        %2499 = vmatprep.subr.mxu0 0.0
        %2500 = vmatpush1.msra.mxu0 %v2322
        %2501 = vmatprep.subr.mxu0 0.0
        %2502 = vmatpush1.msra.mxu0 %v2323
        %2503 = vmatprep.subr.mxu0 0.0
        %2504 = vmatpush1.msra.mxu0 %v2324
        %2505 = vmatprep.subr.mxu0 0.0
        %2506 = vmatpush1.msra.mxu0 %v2325
        %2507 = vmatprep.subr.mxu0 0.0
        %2508 = vmatpush1.msra.mxu0 %v2326
        %2509 = vmatprep.subr.mxu0 0.0
        %2510 = vmatpush1.msra.mxu0 %v2327
        %2511 = vmatprep.subr.mxu0 0.0
        %2512 = vmatpush1.msra.mxu0 %v2328
        %2513 = vmatprep.subr.mxu0 0.0
        %2514 = vmatpush1.msra.mxu0 %v2329
        %2515 = vmatprep.subr.mxu0 0.0
        %2516 = vmatpush1.msra.mxu0 %v2330
        %2517 = vmatprep.subr.mxu0 0.0
        %2518 = vmatpush1.msra.mxu0 %v2331
        %2519 = vmatprep.subr.mxu0 0.0
        %2520 = vmatpush1.msra.mxu0 %v2332
        %2521 = vmatprep.subr.mxu0 0.0
        %2522 = vmatpush1.msra.mxu0 0.0
        %2523 = vmatprep.subr.mxu0 0.0
        %2524 = vmatpush1.msra.mxu0 0.0
        %2525 = vmatprep.subr.mxu0 0.0
        %2526 = vmatpush1.msra.mxu0 0.0
        %2527 = vmatprep.subr.mxu0 0.0
        %2528 = vmatpush1.msra.mxu0 0.0
        %2529 = vmatprep.subr.mxu0 0.0
        %2530 = vmatpush1.msra.mxu0 0.0
        %2531 = vmatprep.subr.mxu0 0.0
        %2532 = vmatpush1.msra.mxu0 0.0
        %2533 = vmatprep.subr.mxu0 0.0
        %2534 = vmatpush1.msra.mxu0 0.0
        %2535 = vmatprep.subr.mxu0 0.0
        %2536 = vmatpush1.msra.mxu0 0.0
        %2537 = vmatprep.subr.mxu0 0.0
        %2538 = vmatpush1.msra.mxu0 0.0
        %2539 = vmatprep.subr.mxu0 0.0
        %2540 = vmatpush1.msra.mxu0 0.0
        %2541 = vmatprep.subr.mxu0 0.0
        %2542 = vmatpush1.msra.mxu0 0.0
        %2543 = vmatprep.subr.mxu0 0.0
        %2544 = vmatpush1.msra.mxu0 0.0
        %2545 = vmatprep.subr.mxu0 0.0
        %2546 = vmatpush1.msra.mxu0 0.0
        %2547 = vmatprep.subr.mxu0 0.0
        %2548 = vmatpush1.msra.mxu0 0.0
        %2549 = vmatprep.subr.mxu0 0.0
        %2550 = vmatpush1.msra.mxu0 0.0
        %2551 = vmatprep.subr.mxu0 0.0
        %2552 = vmatpush1.msra.mxu0 0.0
        %2553 = vmatprep.mubr.f32.mxu0 0.0
        %2554 = vmatmul.mubr.f32.gmra.mrb[0].mxu0 %v2283
        %v2555 = vpop.f32.mrb[0].mxu0
        %v2556 = vadd.f32 0.0, %v2555
        %v2557 = vpop.f32.mrb[0].mxu0
        %2558 = vdwg.mxu0
        %2559 = vmatprep.subr.mxu0 0.0
        %2560 = vmatpush1.msra.mxu0 %v2333
        %2561 = vmatprep.subr.mxu0 0.0
        %2562 = vmatpush1.msra.mxu0 %v2334
        %2563 = vmatprep.subr.mxu0 0.0
        %2564 = vmatpush1.msra.mxu0 %v2335
        %2565 = vmatprep.subr.mxu0 0.0
        %2566 = vmatpush1.msra.mxu0 %v2336
        %2567 = vmatprep.subr.mxu0 0.0
        %2568 = vmatpush1.msra.mxu0 %v2337
        %2569 = vmatprep.subr.mxu0 0.0
        %2570 = vmatpush1.msra.mxu0 %v2338
        %2571 = vmatprep.subr.mxu0 0.0
        %2572 = vmatpush1.msra.mxu0 %v2339
        %2573 = vmatprep.subr.mxu0 0.0
        %2574 = vmatpush1.msra.mxu0 %v2340
        %2575 = vmatprep.subr.mxu0 0.0
        %2576 = vmatpush1.msra.mxu0 %v2341
        %2577 = vmatprep.subr.mxu0 0.0
        %2578 = vmatpush1.msra.mxu0 %v2342
        %2579 = vmatprep.subr.mxu0 0.0
        %2580 = vmatpush1.msra.mxu0 %v2343
        %2581 = vmatprep.subr.mxu0 0.0
        %2582 = vmatpush1.msra.mxu0 %v2344
        %2583 = vmatprep.subr.mxu0 0.0
        %2584 = vmatpush1.msra.mxu0 %v2345
        %2585 = vmatprep.subr.mxu0 0.0
        %2586 = vmatpush1.msra.mxu0 %v2346
        %2587 = vmatprep.subr.mxu0 0.0
        %2588 = vmatpush1.msra.mxu0 %v2347
        %2589 = vmatprep.subr.mxu0 0.0
        %2590 = vmatpush1.msra.mxu0 %v2348
        %2591 = vmatprep.subr.mxu0 0.0
        %2592 = vmatpush1.msra.mxu0 0.0
        %2593 = vmatprep.subr.mxu0 0.0
        %2594 = vmatpush1.msra.mxu0 0.0
        %2595 = vmatprep.subr.mxu0 0.0
        %2596 = vmatpush1.msra.mxu0 0.0
        %2597 = vmatprep.subr.mxu0 0.0
        %2598 = vmatpush1.msra.mxu0 0.0
        %2599 = vmatprep.subr.mxu0 0.0
        %2600 = vmatpush1.msra.mxu0 0.0
        %2601 = vmatprep.subr.mxu0 0.0
        %2602 = vmatpush1.msra.mxu0 0.0
        %2603 = vmatprep.subr.mxu0 0.0
        %2604 = vmatpush1.msra.mxu0 0.0
        %2605 = vmatprep.subr.mxu0 0.0
        %2606 = vmatpush1.msra.mxu0 0.0
        %2607 = vmatprep.subr.mxu0 0.0
        %2608 = vmatpush1.msra.mxu0 0.0
        %2609 = vmatprep.subr.mxu0 0.0
        %2610 = vmatpush1.msra.mxu0 0.0
        %2611 = vmatprep.subr.mxu0 0.0
        %2612 = vmatpush1.msra.mxu0 0.0
        %2613 = vmatprep.subr.mxu0 0.0
        %2614 = vmatpush1.msra.mxu0 0.0
        %2615 = vmatprep.subr.mxu0 0.0
        %2616 = vmatpush1.msra.mxu0 0.0
        %2617 = vmatprep.subr.mxu0 0.0
        %2618 = vmatpush1.msra.mxu0 0.0
        %2619 = vmatprep.subr.mxu0 0.0
        %2620 = vmatpush1.msra.mxu0 0.0
        %2621 = vmatprep.subr.mxu0 0.0
        %2622 = vmatpush1.msra.mxu0 0.0
        %2623 = vmatprep.mubr.f32.mxu0 0.0
        %2624 = vmatmul.mubr.f32.gmra.mrb[0].mxu0 %v2284
        %v2625 = vpop.f32.mrb[0].mxu0
        %v2626 = vadd.f32 0.0, %v2625
        %v2627 = vpop.f32.mrb[0].mxu0
        %2628 = vdwg.mxu0
        %2629 = vst.msk [vmem:[%s372] sm:$0xff] %vm1594, %v2416
        %2630 = vst.msk [vmem:[%s372 + $0x8] sm:$0xff] %vm1594, %v2486
        %2631 = vst.msk [vmem:[%s372 + $0x10] sm:$0xff] %vm1594, %v2556
        %2632 = vst.msk [vmem:[%s372 + $0x18] sm:$0xff] %vm1594, %v2626
        %2633 = vst [vmem:[%s379] sm:$0xff] %v2281
        %2634 = vst [vmem:[%s379 + $0x8] sm:$0xff] %v2282
        %2635 = vst [vmem:[%s379 + $0x10] sm:$0xff] %v2283
        %2636 = vst [vmem:[%s379 + $0x18] sm:$0xff] %v2284
        %s2637 = sand.u32 %s229, 1
        %s2638 = scalar_lea.sflag [#allocation5], %s2637
        %s2639 = sand.u32 %s229, 1
        %s2640 = smul.addr %s2639, 32
        %s2641 = scalar_lea.vmem [#allocation4], %s2640
        %s2642 = sand.u32 %s257, 1
        %s2643 = scalar_lea.sflag [#allocation7], %s2642
        %s2644 = sand.u32 %s257, 1
        %s2645 = smul.addr %s2644, 32
        %s2646 = scalar_lea.vmem [#allocation6], %s2645
        // Predicated region
        $region57: #{tpu_custom_call.1} parent=51 // pred_check
          %p2647 = pneg %p239
        $region58: #{tpu_custom_call.1} parent=51 // pred_check_branch
          %2649 = sbr.rel (%p2647) target = $region60
        $region59: #{tpu_custom_call.1} parent=51 // pred_region
          %s2650 = smul.u32 4, %s31
          %s2652 = ssub.s32 512, 512
          %2653 = vsyncadd %s2638, %s2652
          %s2654 = sadd.s32 %s32, %s2650
          %s2655 = smul.addr %s2654, 128
          %s2656 = scalar_lea.hbm %s8, %s2655
          %s2657 = sshll.u32 %s2641, 4
          %s2658 = int_to_ptr.vmem [resolvable:$true] %s2657
          %2663 = dma.vmem_to_hbm [thread:$0]  %s2658, 512, %s2656, %s2638, 128, 128, 8
        $region60: #{tpu_custom_call.1} parent=51 // pred_fallthru
          _
        // Predicated region
        $region61: #{tpu_custom_call.1} parent=51 // pred_check
          %p2664 = pneg %p267
        $region62: #{tpu_custom_call.1} parent=51 // pred_check_branch
          %2666 = sbr.rel (%p2664) target = $region64
        $region63: #{tpu_custom_call.1} parent=51 // pred_region
          %s2667 = smul.u32 4, %s31
          %s2669 = ssub.s32 512, 512
          %2670 = vsyncadd %s2643, %s2669
          %s2671 = sadd.s32 %s32, %s2667
          %s2672 = smul.addr %s2671, 128
          %s2673 = scalar_lea.hbm %s9, %s2672
          %s2674 = sshll.u32 %s2646, 4
          %s2675 = int_to_ptr.vmem [resolvable:$true] %s2674
          %2680 = dma.vmem_to_hbm [thread:$0]  %s2675, 512, %s2673, %s2643, 128, 128, 8
        $region64: #{tpu_custom_call.1} parent=51 // pred_fallthru
          _
      $region52: #{tpu_custom_call.1} parent=5 // pred_fallthru
        _
      %p2681 = scmp.le.s32.totalorder 2, %s22
      // Predicated region
      $region65: #{tpu_custom_call.1} parent=5 // pred_check
        %p2682 = pneg %p2681
      $region66: #{tpu_custom_call.1} parent=5 // pred_check_branch
        %2684 = sbr.rel (%p2682) target = $region68
      $region67: #{tpu_custom_call.1} parent=5 // pred_region
        %s2685 = ssub.s32 %s22, 2
        // Predicated region
        $region69: #{tpu_custom_call.1} parent=67 // pred_check
          %p2686 = pneg %p245
        $region70: #{tpu_custom_call.1} parent=67 // pred_check_branch
          %2688 = sbr.rel (%p2686) target = $region72
        $region71: #{tpu_custom_call.1} parent=67 // pred_region
          %s2689 = sand.u32 %s230, 1
          %s2690 = scalar_lea.sflag [#allocation5], %s2689
          %s2691 = sand.u32 %s230, 1
          %s2692 = smul.addr %s2691, 32
          %s2693 = scalar_lea.vmem [#allocation4], %s2692
          %2694 = dma.done %s2690, 512
        $region72: #{tpu_custom_call.1} parent=67 // pred_fallthru
          _
        // Predicated region
        $region73: #{tpu_custom_call.1} parent=67 // pred_check
          %p2695 = pneg %p273
        $region74: #{tpu_custom_call.1} parent=67 // pred_check_branch
          %2697 = sbr.rel (%p2695) target = $region76
        $region75: #{tpu_custom_call.1} parent=67 // pred_region
          %s2698 = sand.u32 %s258, 1
          %s2699 = scalar_lea.sflag [#allocation7], %s2698
          %s2700 = sand.u32 %s258, 1
          %s2701 = smul.addr %s2700, 32
          %s2702 = scalar_lea.vmem [#allocation6], %s2701
          %2703 = dma.done %s2699, 512
        $region76: #{tpu_custom_call.1} parent=67 // pred_fallthru
          _
      $region68: #{tpu_custom_call.1} parent=5 // pred_fallthru
        _
    $region6: #{tpu_custom_call.1} parent=1 // loop_footer
      %s26 = sadd.s32 1, %s22
    $region7: #{tpu_custom_call.1} parent=1 // loop_footer_branch
      %21 = sbr.rel target = $region3
    $region8: #{tpu_custom_call.1} parent=1 // loop_exit
      _
    %2704 = vsyncpa [#allocation5], 1
    %s2705 = scalar_lea.sflag [#allocation5], 1
    %2706 = vsyncpa %s2705, 1
    %2707 = vsyncpa [#allocation7], 1
    %s2708 = scalar_lea.sflag [#allocation7], 1
    %2709 = vsyncpa %s2708, 1

</llo_original>
